<compile_context>
chip_gen: v5e
topology: v5e:2x2
jax: 0.10.0
libtpu: 0.0.40
codegen_flags: <defaults>
</compile_context>

<pallas_src>
import functools
import math
import numpy as np
import jax
import jax.numpy as jnp
from jax import lax
from jax.experimental import pallas as pl
from jax.experimental.pallas import tpu as pltpu

D_MODEL = 32                        # embed_dim
D_STATE = 16
D_CONV = 4
EXPAND = 2
D_INNER = EXPAND * D_MODEL          # 64
DT_RANK = math.ceil(D_MODEL / 16)   # 2  (dt_rank='auto')
BATCH = 2
SEQ = 16
EPS = 1e-5

# bf16 MXU inputs (f32 accumulate). Set to jnp.float32 to recover near-exact f32 numerics.
MATMUL_DTYPE = jnp.bfloat16


def _sigmoid(x):
    return 1.0 / (1.0 + jnp.exp(-x))


def _softplus(x):
    return jnp.maximum(x, 0.0) + jnp.log1p(jnp.exp(-jnp.abs(x)))


def mamba_block_kernel(hs_ref, wn_ref, w_in_ref, w_taps_ref, conv_b_ref, w_big_ref,
                       A_cat_ref, D_ref, w_out_ref, out_ref,
                       dA_ref, dBu_ref, h_all_ref, *, structured_a):
    f32 = jnp.float32
    L = SEQ
    R = BATCH * SEQ
    BD = BATCH * D_INNER
    mdt = w_in_ref.dtype                                         # matmul input dtype (bf16)

    hs = hs_ref[...]                                              # (R, d_model)

    # ---- RMSNorm (row-wise over d_model) ----
    ms = jnp.mean(hs * hs, axis=-1, keepdims=True)
    hn = hs * lax.rsqrt(ms + EPS) * wn_ref[...]

    # ---- fused in_proj (bias=False): one (d_model, 2*d_inner) matmul, then split ----
    xz = jnp.dot(hn.astype(mdt), w_in_ref[...], preferred_element_type=f32)  # (R, 2*d_inner)
    x_in = xz[:, :D_INNER]                                        # (R, d_inner)
    z = xz[:, D_INNER:]                                           # (R, d_inner)

    # ---- depthwise causal conv1d: sublane rolls + causal masks + tap FMAs, then SiLU ----
    row = lax.broadcasted_iota(jnp.int32, (R, D_INNER), 0)
    if (SEQ & (SEQ - 1)) == 0:
        lpos = jnp.bitwise_and(row, SEQ - 1)                      # position within its batch block
    else:
        lpos = row % SEQ
    w_taps = w_taps_ref[...]                                      # (d_conv, d_inner); tap j = conv_w[:, d_conv-1-j]
    xc = conv_b_ref[...] + x_in * w_taps[0:1, :]
    for j in range(1, D_CONV):                                    # unrolled taps
        xj = pltpu.roll(x_in, shift=j, axis=0)                    # row r <- row r-j (wrap killed by mask)
        xj = jnp.where(lpos >= j, xj, 0.0)                        # causal + batch-boundary mask
        xc = xc + xj * w_taps[j:j + 1, :]
    u = xc * _sigmoid(xc)                                         # "u" of selective_scan

    # ---- fused x_proj + dt_proj: [delta | B | C] in one matmul ----
    # TODO(synk): dt_proj.bias exists in __init__ but the reference forward computes
    # `dt_proj.weight @ dt.t()` only, so the bias is intentionally omitted here too.
    dbc = jnp.dot(u.astype(mdt), w_big_ref[...], preferred_element_type=f32)  # (R, d_inner+2*d_state)
    delta = dbc[:, :D_INNER]
    Bm = dbc[:, D_INNER:D_INNER + D_STATE]
    Cm = dbc[:, D_INNER + D_STATE:]

    sp = _softplus(delta)                                         # (R, d_inner)
    du = delta * u                                                # (R, d_inner)

    # Pack both batches side-by-side in the 128 lanes (done once on the small 2-vreg tensor).
    sp_p = jnp.concatenate([sp[b * L:(b + 1) * L] for b in range(BATCH)], axis=-1)  # (L, BD)

    # ---- discretization: dA (L, d_state, BD) ----
    if structured_a:
        # S4D-real init: A[n, d] = -(n+1)  =>  dA[:, n, :] = exp(-sp)^(n+1).
        # EUP only touches 2 vregs; the power tower is built with VPU selects/multiplies.
        E1 = jnp.exp(-sp_p)                                       # (L, BD)
        E2 = E1 * E1
        E4 = E2 * E2
        E8 = E4 * E4
        E16 = E8 * E8
        np1 = lax.broadcasted_iota(jnp.int32, (L, D_STATE, BD), 1) + 1   # exponent n+1 per sublane row

        def pw(Ek, bit):
            return jnp.where((np1 & bit) != 0, Ek[:, None, :], 1.0)

        dA = pw(E1, 1) * pw(E2, 2) * pw(E4, 4) * pw(E8, 8) * pw(E16, 16)
    else:
        dA = jnp.exp(sp_p[:, None, :] * A_cat_ref[...][None, :, :])
    dA_ref[...] = dA

    # ---- dBu (L, d_state, BD): per-batch lane halves, one aligned slab store ----
    dBu_halves = []
    for b in range(BATCH):
        sl = slice(b * L, (b + 1) * L)
        dBu_halves.append(du[sl][:, None, :] * Bm[sl][:, :, None])    # (L, d_state, d_inner)
    dBu_ref[...] = jnp.concatenate(dBu_halves, axis=-1)

    # ---- selective scan: fully unrolled, pure-VPU 2-vreg recurrence, aligned slab stores ----
    h = dBu_ref[0]                                                # h0 = 0 -> first step is just dBu
    h_all_ref[0] = h
    for l in range(1, L):
        h = dA_ref[l] * h + dBu_ref[l]
        h_all_ref[l] = h

    # ---- deferred C-contraction (off the serial chain): multiply + sublane-axis reduce ----
    H = h_all_ref[...]                                            # (L, d_state, BD)
    y_rows = []
    for b in range(BATCH):
        sl = slice(b * L, (b + 1) * L)
        y_rows.append(jnp.sum(H[:, :, b * D_INNER:(b + 1) * D_INNER] * Cm[sl][:, :, None],
                              axis=1))                            # (L, d_inner)
    y = jnp.concatenate(y_rows, axis=0)                           # (R, d_inner), rows r = b*L + l

    y = y + u * D_ref[...]
    y = y * (z * _sigmoid(z))                                     # gate with SiLU(z)
    out = jnp.dot(y.astype(mdt), w_out_ref[...], preferred_element_type=f32)  # (R, d_model)
    out_ref[...] = hs + out                                       # residual add (pre-norm input)


def prepare_mamba_params(params):
    """One-time weight prep. Call once, cache the result, and reuse across invocations."""
    (wn, w_in_x, w_in_z, conv_wT, conv_b, w_x_dt, w_x_B, w_x_C,
     w_dtT, A_T, Dp, w_out) = params

    w_in_xz = jnp.concatenate([w_in_x, w_in_z], axis=1).astype(MATMUL_DTYPE)   # (d_model, 2*d_inner)
    w_delta = jnp.dot(w_x_dt, w_dtT, precision=lax.Precision.HIGHEST)          # (d_inner, d_inner), f32
    w_big = jnp.concatenate([w_delta, w_x_B, w_x_C], axis=1).astype(MATMUL_DTYPE)  # (d_inner, d_inner+2*d_state)
    w_taps = conv_wT[::-1, :]                                                  # tap j uses conv_w[:, d_conv-1-j]
    A_cat = jnp.concatenate([A_T, A_T], axis=1)                                # (d_state, 2*d_inner)
    w_out_c = w_out.astype(MATMUL_DTYPE)

    # Gate for the structured-A fast path (valid only while A keeps the S4D-real arange init).
    structured_a = bool(np.allclose(
        np.asarray(A_T), -np.arange(1, D_STATE + 1, dtype=np.float32)[:, None],
        rtol=1e-5, atol=1e-5))

    ops = (wn, w_in_xz, w_taps, conv_b, w_big, A_cat, Dp, w_out_c)
    ops = tuple(jnp.asarray(o) for o in ops)   # materialize on device once
    return ops, structured_a


def make_mamba_block(prepared):
    """Build a jitted forward closure over prepared (cached) weights."""
    ops, structured_a = prepared
    R = BATCH * SEQ
    kernel = functools.partial(mamba_block_kernel, structured_a=structured_a)

    def full_spec(a):
        return pl.BlockSpec(a.shape, lambda i, _nd=a.ndim: (0,) * _nd)

    def call(hs2, *weights):
        operands = (hs2,) + weights
        return pl.pallas_call(
            kernel,
            out_shape=jax.ShapeDtypeStruct((R, D_MODEL), jnp.float32),
            grid_spec=pltpu.PrefetchScalarGridSpec(
                num_scalar_prefetch=0,
                grid=(1,),
                in_specs=[full_spec(a) for a in operands],
                out_specs=pl.BlockSpec((R, D_MODEL), lambda i: (0, 0)),
                scratch_shapes=[
                    pltpu.VMEM((SEQ, D_STATE, BATCH * D_INNER), jnp.float32),   # deltaA
                    pltpu.VMEM((SEQ, D_STATE, BATCH * D_INNER), jnp.float32),   # deltaB * u
                    pltpu.VMEM((SEQ, D_STATE, BATCH * D_INNER), jnp.float32),   # h after each step
                ]),
            compiler_params=pltpu.CompilerParams(
                dimension_semantics=("arbitrary",)),
        )(*operands)

    @jax.jit
    def _run(hs, *weights):
        B, L, E = hs.shape
        out2 = call(hs.reshape(B * L, E), *weights)
        return out2.reshape(B, L, E)

    def fwd(hs):
        assert hs.shape == (BATCH, SEQ, D_MODEL)
        return _run(hs, *ops)

    return fwd


def ref_mamba_block(hs, p):
    """Pure-JAX f32 reference of the same forward (for verification)."""
    HP = lax.Precision.HIGHEST
    (wn, w_in_x, w_in_z, conv_wT, conv_b, w_x_dt, w_x_B, w_x_C, w_dtT, A_T, Dp, w_out) = p
    res = hs
    ms = jnp.mean(hs * hs, axis=-1, keepdims=True)
    hn = hs * lax.rsqrt(ms + EPS) * wn[0]
    x = jnp.einsum('ble,ed->bld', hn, w_in_x, precision=HP)
    z = jnp.einsum('ble,ed->bld', hn, w_in_z, precision=HP)
    xpad = jnp.pad(x, ((0, 0), (D_CONV - 1, 0), (0, 0)))
    xc = jnp.zeros_like(x) + conv_b[0]
    for k in range(D_CONV):
        xc = xc + xpad[:, k:k + SEQ, :] * conv_wT[k]
    xa = xc * _sigmoid(xc)
    dt_low = jnp.einsum('bld,dr->blr', xa, w_x_dt, precision=HP)
    Bm = jnp.einsum('bld,dn->bln', xa, w_x_B, precision=HP)
    Cm = jnp.einsum('bld,dn->bln', xa, w_x_C, precision=HP)
    delta = jnp.einsum('blr,rd->bld', dt_low, w_dtT, precision=HP)
    sp = _softplus(delta)
    A = A_T.T                                                   # (d_inner, d_state)
    dA = jnp.exp(sp[..., None] * A[None, None, :, :])
    dBu = (delta * xa)[..., None] * Bm[:, :, None, :]

    def step(h, inp):
        dA_l, dBu_l, C_l = inp
        h = dA_l * h + dBu_l
        y = jnp.einsum('bdn,bn->bd', h, C_l, precision=HP)
        return h, y

    h0 = jnp.zeros((hs.shape[0], D_INNER, D_STATE), jnp.float32)
    _, ys = lax.scan(step, h0, (jnp.swapaxes(dA, 0, 1),
                                jnp.swapaxes(dBu, 0, 1),
                                jnp.swapaxes(Cm, 0, 1)))
    y = jnp.swapaxes(ys, 0, 1)
    y = y + xa * Dp[0]
    y = y * (z * _sigmoid(z))
    out = jnp.einsum('bld,de->ble', y, w_out, precision=HP)
    return res + out


if __name__ == "__main__":
    key = jax.random.PRNGKey(0)
    ks = jax.random.split(key, 8)

    def uni(k, shape, fan_in):
        b = 1.0 / math.sqrt(fan_in)
        return jax.random.uniform(k, shape, jnp.float32, -b, b)

    wn = jnp.ones((1, D_MODEL), jnp.float32)                       # RMSNorm weight
    in_w = uni(ks[0], (2 * D_INNER, D_MODEL), D_MODEL)             # in_proj.weight
    w_in_x = in_w[:D_INNER].T
    w_in_z = in_w[D_INNER:].T
    conv_w = uni(ks[1], (D_INNER, D_CONV), D_CONV)                 # conv1d.weight[:,0,:]
    conv_wT = conv_w.T                                             # (d_conv, d_inner)
    conv_b = uni(ks[2], (1, D_INNER), D_CONV)                      # conv1d.bias
    x_w = uni(ks[3], (DT_RANK + 2 * D_STATE, D_INNER), D_INNER)    # x_proj.weight
    w_x_dt = x_w[:DT_RANK].T
    w_x_B = x_w[DT_RANK:DT_RANK + D_STATE].T
    w_x_C = x_w[DT_RANK + D_STATE:].T
    dt_std = DT_RANK ** -0.5                                       # dt_init='random', dt_scale=1
    dt_w = jax.random.uniform(ks[4], (D_INNER, DT_RANK), jnp.float32, -dt_std, dt_std)
    w_dtT = dt_w.T
    A_log = jnp.log(jnp.broadcast_to(
        jnp.arange(1, D_STATE + 1, dtype=jnp.float32)[None, :], (D_INNER, D_STATE)))
    A_T = (-jnp.exp(A_log)).T                                      # (d_state, d_inner)
    Dp = jnp.ones((1, D_INNER), jnp.float32)
    out_w = uni(ks[5], (D_MODEL, D_INNER), D_INNER)                # out_proj.weight
    w_out = out_w.T

    params = (wn, w_in_x, w_in_z, conv_wT, conv_b, w_x_dt, w_x_B, w_x_C,
              w_dtT, A_T, Dp, w_out)

    hs = jax.random.normal(ks[6], (BATCH, SEQ, D_MODEL), jnp.float32)

    # One-time prep (cached); per-call path is a single jitted pallas_call.
    prepared = prepare_mamba_params(params)
    fwd = make_mamba_block(prepared)

    out = jax.block_until_ready(fwd(hs))

    ref = ref_mamba_block(hs, params)
    assert out.shape == (BATCH, SEQ, D_MODEL)
    max_err = float(jnp.max(jnp.abs(out - ref)))
    # bf16 MXU inputs -> slightly looser tolerance than the pure-f32 variant.
    assert jnp.allclose(out, ref, rtol=2e-2, atol=2e-2), max_err
    print("KERNEL_OK")
</pallas_src>

<mosaic_0001>
module attributes {stable_mosaic.version = 11 : i64} {
  func.func @mamba_block_kernel(%arg0: i32, %arg1: memref<32x32xf32, #tpu.memory_space<vmem>>, %arg2: memref<1x32xf32, #tpu.memory_space<vmem>>, %arg3: memref<32x128xbf16, #tpu.memory_space<vmem>>, %arg4: memref<4x64xf32, #tpu.memory_space<vmem>>, %arg5: memref<1x64xf32, #tpu.memory_space<vmem>>, %arg6: memref<64x96xbf16, #tpu.memory_space<vmem>>, %arg7: memref<16x128xf32, #tpu.memory_space<vmem>>, %arg8: memref<1x64xf32, #tpu.memory_space<vmem>>, %arg9: memref<64x32xbf16, #tpu.memory_space<vmem>>, %arg10: memref<32x32xf32, #tpu.memory_space<vmem>>, %arg11: memref<16x16x128xf32, #tpu.memory_space<vmem>>, %arg12: memref<16x16x128xf32, #tpu.memory_space<vmem>>, %arg13: memref<16x16x128xf32, #tpu.memory_space<vmem>>) attributes {dimension_semantics = [#tpu.dimension_semantics<arbitrary>], iteration_bounds = array<i64: 1>, scalar_prefetch = 0 : i64, scratch_operands = 3 : i64, tpu.core_type = #tpu.core_type<tc>, window_params = [{pipeline_mode = #tpu.pipeline_mode<synchronous>, transform_indices = @transform_0, window_bounds = array<i64: 32, 32>}, {pipeline_mode = #tpu.pipeline_mode<synchronous>, transform_indices = @transform_1, window_bounds = array<i64: 1, 32>}, {pipeline_mode = #tpu.pipeline_mode<synchronous>, transform_indices = @transform_2, window_bounds = array<i64: 32, 128>}, {pipeline_mode = #tpu.pipeline_mode<synchronous>, transform_indices = @transform_3, window_bounds = array<i64: 4, 64>}, {pipeline_mode = #tpu.pipeline_mode<synchronous>, transform_indices = @transform_4, window_bounds = array<i64: 1, 64>}, {pipeline_mode = #tpu.pipeline_mode<synchronous>, transform_indices = @transform_5, window_bounds = array<i64: 64, 96>}, {pipeline_mode = #tpu.pipeline_mode<synchronous>, transform_indices = @transform_6, window_bounds = array<i64: 16, 128>}, {pipeline_mode = #tpu.pipeline_mode<synchronous>, transform_indices = @transform_7, window_bounds = array<i64: 1, 64>}, {pipeline_mode = #tpu.pipeline_mode<synchronous>, transform_indices = @transform_8, window_bounds = array<i64: 64, 32>}, {pipeline_mode = #tpu.pipeline_mode<synchronous>, transform_indices = @transform_9, window_bounds = array<i64: 32, 32>}]} {
    %c0 = arith.constant 0 : index
    %c0_0 = arith.constant 0 : index
    %0 = vector.load %arg1[%c0, %c0_0] : memref<32x32xf32, #tpu.memory_space<vmem>>, vector<32x32xf32>
    %1 = arith.mulf %0, %0 : vector<32x32xf32>
    %cst = arith.constant dense<0.000000e+00> : vector<32xf32>
    %2 = vector.multi_reduction <add>, %1, %cst [1] : vector<32x32xf32> to vector<32xf32>
    %3 = vector.shape_cast %2 : vector<32xf32> to vector<32x1xf32>
    %cst_1 = arith.constant 3.200000e+01 : f32
    %4 = vector.broadcast %cst_1 : f32 to vector<32x1xf32>
    %5 = arith.divf %3, %4 : vector<32x1xf32>
    %cst_2 = arith.constant 9.99999974E-6 : f32
    %6 = vector.broadcast %cst_2 : f32 to vector<32x1xf32>
    %7 = arith.addf %5, %6 : vector<32x1xf32>
    %8 = math.rsqrt %7 : vector<32x1xf32>
    %9 = vector.broadcast %8 : vector<32x1xf32> to vector<32x32xf32>
    %10 = arith.mulf %0, %9 : vector<32x32xf32>
    %c0_3 = arith.constant 0 : index
    %c0_4 = arith.constant 0 : index
    %11 = vector.load %arg2[%c0_3, %c0_4] : memref<1x32xf32, #tpu.memory_space<vmem>>, vector<1x32xf32>
    %12 = vector.broadcast %11 : vector<1x32xf32> to vector<32x32xf32>
    %13 = arith.mulf %10, %12 : vector<32x32xf32>
    %14 = arith.truncf %13 : vector<32x32xf32> to vector<32x32xbf16>
    %c0_5 = arith.constant 0 : index
    %c0_6 = arith.constant 0 : index
    %15 = vector.load %arg3[%c0_5, %c0_6] : memref<32x128xbf16, #tpu.memory_space<vmem>>, vector<32x128xbf16>
    %cst_7 = arith.constant dense<0.000000e+00> : vector<32x128xf32>
    %16 = tpu.matmul %14, %15, %cst_7 {dimension_numbers = #tpu.dot_dimension_numbers<[1], [0], [0], [1], [0, 0, 1, 1], [], []>} : vector<32x32xbf16>, vector<32x128xbf16>, vector<32x128xf32> -> vector<32x128xf32>
    %17 = vector.extract_strided_slice %16 {offsets = [0, 0], sizes = [32, 64], strides = [1, 1]} : vector<32x128xf32> to vector<32x64xf32>
    %18 = vector.extract_strided_slice %16 {offsets = [0, 64], sizes = [32, 64], strides = [1, 1]} : vector<32x128xf32> to vector<32x64xf32>
    %19 = tpu.iota {dimensions = array<i32: 0>} : vector<32x64xi32>
    %c15_i32 = arith.constant 15 : i32
    %20 = vector.broadcast %c15_i32 : i32 to vector<32x64xi32>
    %21 = arith.andi %19, %20 : vector<32x64xi32>
    %c0_8 = arith.constant 0 : index
    %c0_9 = arith.constant 0 : index
    %22 = vector.load %arg4[%c0_8, %c0_9] : memref<4x64xf32, #tpu.memory_space<vmem>>, vector<4x64xf32>
    %c0_10 = arith.constant 0 : index
    %c0_11 = arith.constant 0 : index
    %23 = vector.load %arg5[%c0_10, %c0_11] : memref<1x64xf32, #tpu.memory_space<vmem>>, vector<1x64xf32>
    %24 = vector.extract_strided_slice %22 {offsets = [0, 0], sizes = [1, 64], strides = [1, 1]} : vector<4x64xf32> to vector<1x64xf32>
    %25 = vector.broadcast %24 : vector<1x64xf32> to vector<32x64xf32>
    %26 = arith.mulf %17, %25 : vector<32x64xf32>
    %27 = vector.broadcast %23 : vector<1x64xf32> to vector<32x64xf32>
    %28 = arith.addf %27, %26 : vector<32x64xf32>
    %c1_i32 = arith.constant 1 : i32
    %29 = tpu.dynamic_rotate %17 by %c1_i32 dim 0 : vector<32x64xf32>, i32 -> vector<32x64xf32>
    %c1_i32_12 = arith.constant 1 : i32
    %30 = vector.broadcast %c1_i32_12 : i32 to vector<32x64xi32>
    %31 = arith.cmpi sge, %21, %30 : vector<32x64xi32>
    %cst_13 = arith.constant 0.000000e+00 : f32
    %32 = vector.broadcast %cst_13 : f32 to vector<32x64xf32>
    %33 = arith.select %31, %29, %32 : vector<32x64xi1>, vector<32x64xf32>
    %34 = vector.extract_strided_slice %22 {offsets = [1, 0], sizes = [1, 64], strides = [1, 1]} : vector<4x64xf32> to vector<1x64xf32>
    %35 = vector.broadcast %34 : vector<1x64xf32> to vector<32x64xf32>
    %36 = arith.mulf %33, %35 : vector<32x64xf32>
    %37 = arith.addf %28, %36 : vector<32x64xf32>
    %c2_i32 = arith.constant 2 : i32
    %38 = tpu.dynamic_rotate %17 by %c2_i32 dim 0 : vector<32x64xf32>, i32 -> vector<32x64xf32>
    %c2_i32_14 = arith.constant 2 : i32
    %39 = vector.broadcast %c2_i32_14 : i32 to vector<32x64xi32>
    %40 = arith.cmpi sge, %21, %39 : vector<32x64xi32>
    %cst_15 = arith.constant 0.000000e+00 : f32
    %41 = vector.broadcast %cst_15 : f32 to vector<32x64xf32>
    %42 = arith.select %40, %38, %41 : vector<32x64xi1>, vector<32x64xf32>
    %43 = vector.extract_strided_slice %22 {offsets = [2, 0], sizes = [1, 64], strides = [1, 1]} : vector<4x64xf32> to vector<1x64xf32>
    %44 = vector.broadcast %43 : vector<1x64xf32> to vector<32x64xf32>
    %45 = arith.mulf %42, %44 : vector<32x64xf32>
    %46 = arith.addf %37, %45 : vector<32x64xf32>
    %c3_i32 = arith.constant 3 : i32
    %47 = tpu.dynamic_rotate %17 by %c3_i32 dim 0 : vector<32x64xf32>, i32 -> vector<32x64xf32>
    %c3_i32_16 = arith.constant 3 : i32
    %48 = vector.broadcast %c3_i32_16 : i32 to vector<32x64xi32>
    %49 = arith.cmpi sge, %21, %48 : vector<32x64xi32>
    %cst_17 = arith.constant 0.000000e+00 : f32
    %50 = vector.broadcast %cst_17 : f32 to vector<32x64xf32>
    %51 = arith.select %49, %47, %50 : vector<32x64xi1>, vector<32x64xf32>
    %52 = vector.extract_strided_slice %22 {offsets = [3, 0], sizes = [1, 64], strides = [1, 1]} : vector<4x64xf32> to vector<1x64xf32>
    %53 = vector.broadcast %52 : vector<1x64xf32> to vector<32x64xf32>
    %54 = arith.mulf %51, %53 : vector<32x64xf32>
    %55 = arith.addf %46, %54 : vector<32x64xf32>
    %cst_18 = arith.constant 0.000000e+00 : f32
    %56 = vector.broadcast %cst_18 : f32 to vector<32x64xf32>
    %57 = arith.subf %56, %55 : vector<32x64xf32>
    %58 = math.exp %57 : vector<32x64xf32>
    %cst_19 = arith.constant 1.000000e+00 : f32
    %59 = vector.broadcast %cst_19 : f32 to vector<32x64xf32>
    %60 = arith.addf %59, %58 : vector<32x64xf32>
    %cst_20 = arith.constant 1.000000e+00 : f32
    %61 = vector.broadcast %cst_20 : f32 to vector<32x64xf32>
    %62 = arith.divf %61, %60 : vector<32x64xf32>
    %63 = arith.mulf %55, %62 : vector<32x64xf32>
    %64 = arith.truncf %63 : vector<32x64xf32> to vector<32x64xbf16>
    %c0_21 = arith.constant 0 : index
    %c0_22 = arith.constant 0 : index
    %65 = vector.load %arg6[%c0_21, %c0_22] : memref<64x96xbf16, #tpu.memory_space<vmem>>, vector<64x96xbf16>
    %cst_23 = arith.constant dense<0.000000e+00> : vector<32x96xf32>
    %66 = tpu.matmul %64, %65, %cst_23 {dimension_numbers = #tpu.dot_dimension_numbers<[1], [0], [0], [1], [0, 0, 1, 1], [], []>} : vector<32x64xbf16>, vector<64x96xbf16>, vector<32x96xf32> -> vector<32x96xf32>
    %67 = vector.extract_strided_slice %66 {offsets = [0, 0], sizes = [32, 64], strides = [1, 1]} : vector<32x96xf32> to vector<32x64xf32>
    %68 = vector.extract_strided_slice %66 {offsets = [0, 64], sizes = [32, 16], strides = [1, 1]} : vector<32x96xf32> to vector<32x16xf32>
    %69 = vector.extract_strided_slice %66 {offsets = [0, 80], sizes = [32, 16], strides = [1, 1]} : vector<32x96xf32> to vector<32x16xf32>
    %cst_24 = arith.constant 0.000000e+00 : f32
    %70 = vector.broadcast %cst_24 : f32 to vector<32x64xf32>
    %71 = arith.maximumf %67, %70 : vector<32x64xf32>
    %72 = math.absf %67 : vector<32x64xf32>
    %cst_25 = arith.constant 0.000000e+00 : f32
    %73 = vector.broadcast %cst_25 : f32 to vector<32x64xf32>
    %74 = arith.subf %73, %72 : vector<32x64xf32>
    %75 = math.exp %74 : vector<32x64xf32>
    %76 = math.log1p %75 : vector<32x64xf32>
    %77 = arith.addf %71, %76 : vector<32x64xf32>
    %78 = arith.mulf %67, %63 : vector<32x64xf32>
    %79 = vector.extract_strided_slice %77 {offsets = [0, 0], sizes = [16, 64], strides = [1, 1]} : vector<32x64xf32> to vector<16x64xf32>
    %80 = vector.extract_strided_slice %77 {offsets = [16, 0], sizes = [16, 64], strides = [1, 1]} : vector<32x64xf32> to vector<16x64xf32>
    %81 = tpu.concatenate %79, %80 in 1 : vector<16x64xf32>, vector<16x64xf32> -> vector<16x128xf32>
    %cst_26 = arith.constant 0.000000e+00 : f32
    %82 = vector.broadcast %cst_26 : f32 to vector<16x128xf32>
    %83 = arith.subf %82, %81 : vector<16x128xf32>
    %84 = math.exp %83 : vector<16x128xf32>
    %85 = arith.mulf %84, %84 : vector<16x128xf32>
    %86 = arith.mulf %85, %85 : vector<16x128xf32>
    %87 = arith.mulf %86, %86 : vector<16x128xf32>
    %88 = arith.mulf %87, %87 : vector<16x128xf32>
    %89 = tpu.iota {dimensions = array<i32: 1>} : vector<16x16x128xi32>
    %c1_i32_27 = arith.constant 1 : i32
    %90 = vector.broadcast %c1_i32_27 : i32 to vector<16x16x128xi32>
    %91 = arith.addi %89, %90 : vector<16x16x128xi32>
    %c1_i32_28 = arith.constant 1 : i32
    %92 = vector.broadcast %c1_i32_28 : i32 to vector<16x16x128xi32>
    %93 = arith.andi %91, %92 : vector<16x16x128xi32>
    %c0_i32 = arith.constant 0 : i32
    %94 = vector.broadcast %c0_i32 : i32 to vector<16x16x128xi32>
    %95 = arith.cmpi ne, %93, %94 : vector<16x16x128xi32>
    %96 = vector.shape_cast %84 : vector<16x128xf32> to vector<16x1x128xf32>
    %cst_29 = arith.constant 1.000000e+00 : f32
    %97 = vector.shape_cast %96 : vector<16x1x128xf32> to vector<16x1x128xf32>
    %98 = vector.broadcast %97 : vector<16x1x128xf32> to vector<16x16x128xf32>
    %99 = vector.broadcast %cst_29 : f32 to vector<16x16x128xf32>
    %100 = arith.select %95, %98, %99 : vector<16x16x128xi1>, vector<16x16x128xf32>
    %c2_i32_30 = arith.constant 2 : i32
    %101 = vector.broadcast %c2_i32_30 : i32 to vector<16x16x128xi32>
    %102 = arith.andi %91, %101 : vector<16x16x128xi32>
    %c0_i32_31 = arith.constant 0 : i32
    %103 = vector.broadcast %c0_i32_31 : i32 to vector<16x16x128xi32>
    %104 = arith.cmpi ne, %102, %103 : vector<16x16x128xi32>
    %105 = vector.shape_cast %85 : vector<16x128xf32> to vector<16x1x128xf32>
    %cst_32 = arith.constant 1.000000e+00 : f32
    %106 = vector.shape_cast %105 : vector<16x1x128xf32> to vector<16x1x128xf32>
    %107 = vector.broadcast %106 : vector<16x1x128xf32> to vector<16x16x128xf32>
    %108 = vector.broadcast %cst_32 : f32 to vector<16x16x128xf32>
    %109 = arith.select %104, %107, %108 : vector<16x16x128xi1>, vector<16x16x128xf32>
    %110 = arith.mulf %100, %109 : vector<16x16x128xf32>
    %c4_i32 = arith.constant 4 : i32
    %111 = vector.broadcast %c4_i32 : i32 to vector<16x16x128xi32>
    %112 = arith.andi %91, %111 : vector<16x16x128xi32>
    %c0_i32_33 = arith.constant 0 : i32
    %113 = vector.broadcast %c0_i32_33 : i32 to vector<16x16x128xi32>
    %114 = arith.cmpi ne, %112, %113 : vector<16x16x128xi32>
    %115 = vector.shape_cast %86 : vector<16x128xf32> to vector<16x1x128xf32>
    %cst_34 = arith.constant 1.000000e+00 : f32
    %116 = vector.shape_cast %115 : vector<16x1x128xf32> to vector<16x1x128xf32>
    %117 = vector.broadcast %116 : vector<16x1x128xf32> to vector<16x16x128xf32>
    %118 = vector.broadcast %cst_34 : f32 to vector<16x16x128xf32>
    %119 = arith.select %114, %117, %118 : vector<16x16x128xi1>, vector<16x16x128xf32>
    %120 = arith.mulf %110, %119 : vector<16x16x128xf32>
    %c8_i32 = arith.constant 8 : i32
    %121 = vector.broadcast %c8_i32 : i32 to vector<16x16x128xi32>
    %122 = arith.andi %91, %121 : vector<16x16x128xi32>
    %c0_i32_35 = arith.constant 0 : i32
    %123 = vector.broadcast %c0_i32_35 : i32 to vector<16x16x128xi32>
    %124 = arith.cmpi ne, %122, %123 : vector<16x16x128xi32>
    %125 = vector.shape_cast %87 : vector<16x128xf32> to vector<16x1x128xf32>
    %cst_36 = arith.constant 1.000000e+00 : f32
    %126 = vector.shape_cast %125 : vector<16x1x128xf32> to vector<16x1x128xf32>
    %127 = vector.broadcast %126 : vector<16x1x128xf32> to vector<16x16x128xf32>
    %128 = vector.broadcast %cst_36 : f32 to vector<16x16x128xf32>
    %129 = arith.select %124, %127, %128 : vector<16x16x128xi1>, vector<16x16x128xf32>
    %130 = arith.mulf %120, %129 : vector<16x16x128xf32>
    %c16_i32 = arith.constant 16 : i32
    %131 = vector.broadcast %c16_i32 : i32 to vector<16x16x128xi32>
    %132 = arith.andi %91, %131 : vector<16x16x128xi32>
    %c0_i32_37 = arith.constant 0 : i32
    %133 = vector.broadcast %c0_i32_37 : i32 to vector<16x16x128xi32>
    %134 = arith.cmpi ne, %132, %133 : vector<16x16x128xi32>
    %135 = vector.shape_cast %88 : vector<16x128xf32> to vector<16x1x128xf32>
    %cst_38 = arith.constant 1.000000e+00 : f32
    %136 = vector.shape_cast %135 : vector<16x1x128xf32> to vector<16x1x128xf32>
    %137 = vector.broadcast %136 : vector<16x1x128xf32> to vector<16x16x128xf32>
    %138 = vector.broadcast %cst_38 : f32 to vector<16x16x128xf32>
    %139 = arith.select %134, %137, %138 : vector<16x16x128xi1>, vector<16x16x128xf32>
    %140 = arith.mulf %130, %139 : vector<16x16x128xf32>
    %c0_39 = arith.constant 0 : index
    %c0_40 = arith.constant 0 : index
    %c0_41 = arith.constant 0 : index
    %141 = vector.load %arg11[%c0_39, %c0_40, %c0_41] : memref<16x16x128xf32, #tpu.memory_space<vmem>>, vector<16x16x128xf32>
    tpu.vector_store %arg11[%c0_39, %c0_40, %c0_41], %140 {strides = array<i32>} : memref<16x16x128xf32, #tpu.memory_space<vmem>>, vector<16x16x128xf32>,
    %142 = vector.extract_strided_slice %78 {offsets = [0, 0], sizes = [16, 64], strides = [1, 1]} : vector<32x64xf32> to vector<16x64xf32>
    %143 = vector.shape_cast %142 : vector<16x64xf32> to vector<16x1x64xf32>
    %144 = vector.extract_strided_slice %68 {offsets = [0, 0], sizes = [16, 16], strides = [1, 1]} : vector<32x16xf32> to vector<16x16xf32>
    %145 = vector.shape_cast %144 : vector<16x16xf32> to vector<16x16x1xf32>
    %146 = vector.broadcast %143 : vector<16x1x64xf32> to vector<16x16x64xf32>
    %147 = vector.broadcast %145 : vector<16x16x1xf32> to vector<16x16x64xf32>
    %148 = arith.mulf %146, %147 : vector<16x16x64xf32>
    %149 = vector.extract_strided_slice %78 {offsets = [16, 0], sizes = [16, 64], strides = [1, 1]} : vector<32x64xf32> to vector<16x64xf32>
    %150 = vector.shape_cast %149 : vector<16x64xf32> to vector<16x1x64xf32>
    %151 = vector.extract_strided_slice %68 {offsets = [16, 0], sizes = [16, 16], strides = [1, 1]} : vector<32x16xf32> to vector<16x16xf32>
    %152 = vector.shape_cast %151 : vector<16x16xf32> to vector<16x16x1xf32>
    %153 = vector.broadcast %150 : vector<16x1x64xf32> to vector<16x16x64xf32>
    %154 = vector.broadcast %152 : vector<16x16x1xf32> to vector<16x16x64xf32>
    %155 = arith.mulf %153, %154 : vector<16x16x64xf32>
    %156 = tpu.concatenate %148, %155 in 2 : vector<16x16x64xf32>, vector<16x16x64xf32> -> vector<16x16x128xf32>
    %c0_42 = arith.constant 0 : index
    %c0_43 = arith.constant 0 : index
    %c0_44 = arith.constant 0 : index
    %157 = vector.load %arg12[%c0_42, %c0_43, %c0_44] : memref<16x16x128xf32, #tpu.memory_space<vmem>>, vector<16x16x128xf32>
    tpu.vector_store %arg12[%c0_42, %c0_43, %c0_44], %156 {strides = array<i32>} : memref<16x16x128xf32, #tpu.memory_space<vmem>>, vector<16x16x128xf32>,
    %c0_45 = arith.constant 0 : index
    %c0_46 = arith.constant 0 : index
    %c0_47 = arith.constant 0 : index
    %158 = vector.load %arg12[%c0_45, %c0_46, %c0_47] : memref<16x16x128xf32, #tpu.memory_space<vmem>>, vector<1x16x128xf32>
    %159 = vector.shape_cast %158 : vector<1x16x128xf32> to vector<16x128xf32>
    %c0_48 = arith.constant 0 : index
    %c0_49 = arith.constant 0 : index
    %c0_50 = arith.constant 0 : index
    %160 = vector.load %arg13[%c0_48, %c0_49, %c0_50] : memref<16x16x128xf32, #tpu.memory_space<vmem>>, vector<1x16x128xf32>
    %161 = vector.shape_cast %160 : vector<1x16x128xf32> to vector<16x128xf32>
    %162 = vector.shape_cast %159 : vector<16x128xf32> to vector<1x16x128xf32>
    tpu.vector_store %arg13[%c0_48, %c0_49, %c0_50], %162 {strides = array<i32>} : memref<16x16x128xf32, #tpu.memory_space<vmem>>, vector<1x16x128xf32>,
    %c1 = arith.constant 1 : index
    %c0_51 = arith.constant 0 : index
    %c0_52 = arith.constant 0 : index
    %163 = vector.load %arg11[%c1, %c0_51, %c0_52] : memref<16x16x128xf32, #tpu.memory_space<vmem>>, vector<1x16x128xf32>
    %164 = vector.shape_cast %163 : vector<1x16x128xf32> to vector<16x128xf32>
    %165 = arith.mulf %164, %159 : vector<16x128xf32>
    %c1_53 = arith.constant 1 : index
    %c0_54 = arith.constant 0 : index
    %c0_55 = arith.constant 0 : index
    %166 = vector.load %arg12[%c1_53, %c0_54, %c0_55] : memref<16x16x128xf32, #tpu.memory_space<vmem>>, vector<1x16x128xf32>
    %167 = vector.shape_cast %166 : vector<1x16x128xf32> to vector<16x128xf32>
    %168 = arith.addf %165, %167 : vector<16x128xf32>
    %c1_56 = arith.constant 1 : index
    %c0_57 = arith.constant 0 : index
    %c0_58 = arith.constant 0 : index
    %169 = vector.load %arg13[%c1_56, %c0_57, %c0_58] : memref<16x16x128xf32, #tpu.memory_space<vmem>>, vector<1x16x128xf32>
    %170 = vector.shape_cast %169 : vector<1x16x128xf32> to vector<16x128xf32>
    %171 = vector.shape_cast %168 : vector<16x128xf32> to vector<1x16x128xf32>
    tpu.vector_store %arg13[%c1_56, %c0_57, %c0_58], %171 {strides = array<i32>} : memref<16x16x128xf32, #tpu.memory_space<vmem>>, vector<1x16x128xf32>,
    %c2 = arith.constant 2 : index
    %c0_59 = arith.constant 0 : index
    %c0_60 = arith.constant 0 : index
    %172 = vector.load %arg11[%c2, %c0_59, %c0_60] : memref<16x16x128xf32, #tpu.memory_space<vmem>>, vector<1x16x128xf32>
    %173 = vector.shape_cast %172 : vector<1x16x128xf32> to vector<16x128xf32>
    %174 = arith.mulf %173, %168 : vector<16x128xf32>
    %c2_61 = arith.constant 2 : index
    %c0_62 = arith.constant 0 : index
    %c0_63 = arith.constant 0 : index
    %175 = vector.load %arg12[%c2_61, %c0_62, %c0_63] : memref<16x16x128xf32, #tpu.memory_space<vmem>>, vector<1x16x128xf32>
    %176 = vector.shape_cast %175 : vector<1x16x128xf32> to vector<16x128xf32>
    %177 = arith.addf %174, %176 : vector<16x128xf32>
    %c2_64 = arith.constant 2 : index
    %c0_65 = arith.constant 0 : index
    %c0_66 = arith.constant 0 : index
    %178 = vector.load %arg13[%c2_64, %c0_65, %c0_66] : memref<16x16x128xf32, #tpu.memory_space<vmem>>, vector<1x16x128xf32>
    %179 = vector.shape_cast %178 : vector<1x16x128xf32> to vector<16x128xf32>
    %180 = vector.shape_cast %177 : vector<16x128xf32> to vector<1x16x128xf32>
    tpu.vector_store %arg13[%c2_64, %c0_65, %c0_66], %180 {strides = array<i32>} : memref<16x16x128xf32, #tpu.memory_space<vmem>>, vector<1x16x128xf32>,
    %c3 = arith.constant 3 : index
    %c0_67 = arith.constant 0 : index
    %c0_68 = arith.constant 0 : index
    %181 = vector.load %arg11[%c3, %c0_67, %c0_68] : memref<16x16x128xf32, #tpu.memory_space<vmem>>, vector<1x16x128xf32>
    %182 = vector.shape_cast %181 : vector<1x16x128xf32> to vector<16x128xf32>
    %183 = arith.mulf %182, %177 : vector<16x128xf32>
    %c3_69 = arith.constant 3 : index
    %c0_70 = arith.constant 0 : index
    %c0_71 = arith.constant 0 : index
    %184 = vector.load %arg12[%c3_69, %c0_70, %c0_71] : memref<16x16x128xf32, #tpu.memory_space<vmem>>, vector<1x16x128xf32>
    %185 = vector.shape_cast %184 : vector<1x16x128xf32> to vector<16x128xf32>
    %186 = arith.addf %183, %185 : vector<16x128xf32>
    %c3_72 = arith.constant 3 : index
    %c0_73 = arith.constant 0 : index
    %c0_74 = arith.constant 0 : index
    %187 = vector.load %arg13[%c3_72, %c0_73, %c0_74] : memref<16x16x128xf32, #tpu.memory_space<vmem>>, vector<1x16x128xf32>
    %188 = vector.shape_cast %187 : vector<1x16x128xf32> to vector<16x128xf32>
    %189 = vector.shape_cast %186 : vector<16x128xf32> to vector<1x16x128xf32>
    tpu.vector_store %arg13[%c3_72, %c0_73, %c0_74], %189 {strides = array<i32>} : memref<16x16x128xf32, #tpu.memory_space<vmem>>, vector<1x16x128xf32>,
    %c4 = arith.constant 4 : index
    %c0_75 = arith.constant 0 : index
    %c0_76 = arith.constant 0 : index
    %190 = vector.load %arg11[%c4, %c0_75, %c0_76] : memref<16x16x128xf32, #tpu.memory_space<vmem>>, vector<1x16x128xf32>
    %191 = vector.shape_cast %190 : vector<1x16x128xf32> to vector<16x128xf32>
    %192 = arith.mulf %191, %186 : vector<16x128xf32>
    %c4_77 = arith.constant 4 : index
    %c0_78 = arith.constant 0 : index
    %c0_79 = arith.constant 0 : index
    %193 = vector.load %arg12[%c4_77, %c0_78, %c0_79] : memref<16x16x128xf32, #tpu.memory_space<vmem>>, vector<1x16x128xf32>
    %194 = vector.shape_cast %193 : vector<1x16x128xf32> to vector<16x128xf32>
    %195 = arith.addf %192, %194 : vector<16x128xf32>
    %c4_80 = arith.constant 4 : index
    %c0_81 = arith.constant 0 : index
    %c0_82 = arith.constant 0 : index
    %196 = vector.load %arg13[%c4_80, %c0_81, %c0_82] : memref<16x16x128xf32, #tpu.memory_space<vmem>>, vector<1x16x128xf32>
    %197 = vector.shape_cast %196 : vector<1x16x128xf32> to vector<16x128xf32>
    %198 = vector.shape_cast %195 : vector<16x128xf32> to vector<1x16x128xf32>
    tpu.vector_store %arg13[%c4_80, %c0_81, %c0_82], %198 {strides = array<i32>} : memref<16x16x128xf32, #tpu.memory_space<vmem>>, vector<1x16x128xf32>,
    %c5 = arith.constant 5 : index
    %c0_83 = arith.constant 0 : index
    %c0_84 = arith.constant 0 : index
    %199 = vector.load %arg11[%c5, %c0_83, %c0_84] : memref<16x16x128xf32, #tpu.memory_space<vmem>>, vector<1x16x128xf32>
    %200 = vector.shape_cast %199 : vector<1x16x128xf32> to vector<16x128xf32>
    %201 = arith.mulf %200, %195 : vector<16x128xf32>
    %c5_85 = arith.constant 5 : index
    %c0_86 = arith.constant 0 : index
    %c0_87 = arith.constant 0 : index
    %202 = vector.load %arg12[%c5_85, %c0_86, %c0_87] : memref<16x16x128xf32, #tpu.memory_space<vmem>>, vector<1x16x128xf32>
    %203 = vector.shape_cast %202 : vector<1x16x128xf32> to vector<16x128xf32>
    %204 = arith.addf %201, %203 : vector<16x128xf32>
    %c5_88 = arith.constant 5 : index
    %c0_89 = arith.constant 0 : index
    %c0_90 = arith.constant 0 : index
    %205 = vector.load %arg13[%c5_88, %c0_89, %c0_90] : memref<16x16x128xf32, #tpu.memory_space<vmem>>, vector<1x16x128xf32>
    %206 = vector.shape_cast %205 : vector<1x16x128xf32> to vector<16x128xf32>
    %207 = vector.shape_cast %204 : vector<16x128xf32> to vector<1x16x128xf32>
    tpu.vector_store %arg13[%c5_88, %c0_89, %c0_90], %207 {strides = array<i32>} : memref<16x16x128xf32, #tpu.memory_space<vmem>>, vector<1x16x128xf32>,
    %c6 = arith.constant 6 : index
    %c0_91 = arith.constant 0 : index
    %c0_92 = arith.constant 0 : index
    %208 = vector.load %arg11[%c6, %c0_91, %c0_92] : memref<16x16x128xf32, #tpu.memory_space<vmem>>, vector<1x16x128xf32>
    %209 = vector.shape_cast %208 : vector<1x16x128xf32> to vector<16x128xf32>
    %210 = arith.mulf %209, %204 : vector<16x128xf32>
    %c6_93 = arith.constant 6 : index
    %c0_94 = arith.constant 0 : index
    %c0_95 = arith.constant 0 : index
    %211 = vector.load %arg12[%c6_93, %c0_94, %c0_95] : memref<16x16x128xf32, #tpu.memory_space<vmem>>, vector<1x16x128xf32>
    %212 = vector.shape_cast %211 : vector<1x16x128xf32> to vector<16x128xf32>
    %213 = arith.addf %210, %212 : vector<16x128xf32>
    %c6_96 = arith.constant 6 : index
    %c0_97 = arith.constant 0 : index
    %c0_98 = arith.constant 0 : index
    %214 = vector.load %arg13[%c6_96, %c0_97, %c0_98] : memref<16x16x128xf32, #tpu.memory_space<vmem>>, vector<1x16x128xf32>
    %215 = vector.shape_cast %214 : vector<1x16x128xf32> to vector<16x128xf32>
    %216 = vector.shape_cast %213 : vector<16x128xf32> to vector<1x16x128xf32>
    tpu.vector_store %arg13[%c6_96, %c0_97, %c0_98], %216 {strides = array<i32>} : memref<16x16x128xf32, #tpu.memory_space<vmem>>, vector<1x16x128xf32>,
    %c7 = arith.constant 7 : index
    %c0_99 = arith.constant 0 : index
    %c0_100 = arith.constant 0 : index
    %217 = vector.load %arg11[%c7, %c0_99, %c0_100] : memref<16x16x128xf32, #tpu.memory_space<vmem>>, vector<1x16x128xf32>
    %218 = vector.shape_cast %217 : vector<1x16x128xf32> to vector<16x128xf32>
    %219 = arith.mulf %218, %213 : vector<16x128xf32>
    %c7_101 = arith.constant 7 : index
    %c0_102 = arith.constant 0 : index
    %c0_103 = arith.constant 0 : index
    %220 = vector.load %arg12[%c7_101, %c0_102, %c0_103] : memref<16x16x128xf32, #tpu.memory_space<vmem>>, vector<1x16x128xf32>
    %221 = vector.shape_cast %220 : vector<1x16x128xf32> to vector<16x128xf32>
    %222 = arith.addf %219, %221 : vector<16x128xf32>
    %c7_104 = arith.constant 7 : index
    %c0_105 = arith.constant 0 : index
    %c0_106 = arith.constant 0 : index
    %223 = vector.load %arg13[%c7_104, %c0_105, %c0_106] : memref<16x16x128xf32, #tpu.memory_space<vmem>>, vector<1x16x128xf32>
    %224 = vector.shape_cast %223 : vector<1x16x128xf32> to vector<16x128xf32>
    %225 = vector.shape_cast %222 : vector<16x128xf32> to vector<1x16x128xf32>
    tpu.vector_store %arg13[%c7_104, %c0_105, %c0_106], %225 {strides = array<i32>} : memref<16x16x128xf32, #tpu.memory_space<vmem>>, vector<1x16x128xf32>,
    %c8 = arith.constant 8 : index
    %c0_107 = arith.constant 0 : index
    %c0_108 = arith.constant 0 : index
    %226 = vector.load %arg11[%c8, %c0_107, %c0_108] : memref<16x16x128xf32, #tpu.memory_space<vmem>>, vector<1x16x128xf32>
    %227 = vector.shape_cast %226 : vector<1x16x128xf32> to vector<16x128xf32>
    %228 = arith.mulf %227, %222 : vector<16x128xf32>
    %c8_109 = arith.constant 8 : index
    %c0_110 = arith.constant 0 : index
    %c0_111 = arith.constant 0 : index
    %229 = vector.load %arg12[%c8_109, %c0_110, %c0_111] : memref<16x16x128xf32, #tpu.memory_space<vmem>>, vector<1x16x128xf32>
    %230 = vector.shape_cast %229 : vector<1x16x128xf32> to vector<16x128xf32>
    %231 = arith.addf %228, %230 : vector<16x128xf32>
    %c8_112 = arith.constant 8 : index
    %c0_113 = arith.constant 0 : index
    %c0_114 = arith.constant 0 : index
    %232 = vector.load %arg13[%c8_112, %c0_113, %c0_114] : memref<16x16x128xf32, #tpu.memory_space<vmem>>, vector<1x16x128xf32>
    %233 = vector.shape_cast %232 : vector<1x16x128xf32> to vector<16x128xf32>
    %234 = vector.shape_cast %231 : vector<16x128xf32> to vector<1x16x128xf32>
    tpu.vector_store %arg13[%c8_112, %c0_113, %c0_114], %234 {strides = array<i32>} : memref<16x16x128xf32, #tpu.memory_space<vmem>>, vector<1x16x128xf32>,
    %c9 = arith.constant 9 : index
    %c0_115 = arith.constant 0 : index
    %c0_116 = arith.constant 0 : index
    %235 = vector.load %arg11[%c9, %c0_115, %c0_116] : memref<16x16x128xf32, #tpu.memory_space<vmem>>, vector<1x16x128xf32>
    %236 = vector.shape_cast %235 : vector<1x16x128xf32> to vector<16x128xf32>
    %237 = arith.mulf %236, %231 : vector<16x128xf32>
    %c9_117 = arith.constant 9 : index
    %c0_118 = arith.constant 0 : index
    %c0_119 = arith.constant 0 : index
    %238 = vector.load %arg12[%c9_117, %c0_118, %c0_119] : memref<16x16x128xf32, #tpu.memory_space<vmem>>, vector<1x16x128xf32>
    %239 = vector.shape_cast %238 : vector<1x16x128xf32> to vector<16x128xf32>
    %240 = arith.addf %237, %239 : vector<16x128xf32>
    %c9_120 = arith.constant 9 : index
    %c0_121 = arith.constant 0 : index
    %c0_122 = arith.constant 0 : index
    %241 = vector.load %arg13[%c9_120, %c0_121, %c0_122] : memref<16x16x128xf32, #tpu.memory_space<vmem>>, vector<1x16x128xf32>
    %242 = vector.shape_cast %241 : vector<1x16x128xf32> to vector<16x128xf32>
    %243 = vector.shape_cast %240 : vector<16x128xf32> to vector<1x16x128xf32>
    tpu.vector_store %arg13[%c9_120, %c0_121, %c0_122], %243 {strides = array<i32>} : memref<16x16x128xf32, #tpu.memory_space<vmem>>, vector<1x16x128xf32>,
    %c10 = arith.constant 10 : index
    %c0_123 = arith.constant 0 : index
    %c0_124 = arith.constant 0 : index
    %244 = vector.load %arg11[%c10, %c0_123, %c0_124] : memref<16x16x128xf32, #tpu.memory_space<vmem>>, vector<1x16x128xf32>
    %245 = vector.shape_cast %244 : vector<1x16x128xf32> to vector<16x128xf32>
    %246 = arith.mulf %245, %240 : vector<16x128xf32>
    %c10_125 = arith.constant 10 : index
    %c0_126 = arith.constant 0 : index
    %c0_127 = arith.constant 0 : index
    %247 = vector.load %arg12[%c10_125, %c0_126, %c0_127] : memref<16x16x128xf32, #tpu.memory_space<vmem>>, vector<1x16x128xf32>
    %248 = vector.shape_cast %247 : vector<1x16x128xf32> to vector<16x128xf32>
    %249 = arith.addf %246, %248 : vector<16x128xf32>
    %c10_128 = arith.constant 10 : index
    %c0_129 = arith.constant 0 : index
    %c0_130 = arith.constant 0 : index
    %250 = vector.load %arg13[%c10_128, %c0_129, %c0_130] : memref<16x16x128xf32, #tpu.memory_space<vmem>>, vector<1x16x128xf32>
    %251 = vector.shape_cast %250 : vector<1x16x128xf32> to vector<16x128xf32>
    %252 = vector.shape_cast %249 : vector<16x128xf32> to vector<1x16x128xf32>
    tpu.vector_store %arg13[%c10_128, %c0_129, %c0_130], %252 {strides = array<i32>} : memref<16x16x128xf32, #tpu.memory_space<vmem>>, vector<1x16x128xf32>,
    %c11 = arith.constant 11 : index
    %c0_131 = arith.constant 0 : index
    %c0_132 = arith.constant 0 : index
    %253 = vector.load %arg11[%c11, %c0_131, %c0_132] : memref<16x16x128xf32, #tpu.memory_space<vmem>>, vector<1x16x128xf32>
    %254 = vector.shape_cast %253 : vector<1x16x128xf32> to vector<16x128xf32>
    %255 = arith.mulf %254, %249 : vector<16x128xf32>
    %c11_133 = arith.constant 11 : index
    %c0_134 = arith.constant 0 : index
    %c0_135 = arith.constant 0 : index
    %256 = vector.load %arg12[%c11_133, %c0_134, %c0_135] : memref<16x16x128xf32, #tpu.memory_space<vmem>>, vector<1x16x128xf32>
    %257 = vector.shape_cast %256 : vector<1x16x128xf32> to vector<16x128xf32>
    %258 = arith.addf %255, %257 : vector<16x128xf32>
    %c11_136 = arith.constant 11 : index
    %c0_137 = arith.constant 0 : index
    %c0_138 = arith.constant 0 : index
    %259 = vector.load %arg13[%c11_136, %c0_137, %c0_138] : memref<16x16x128xf32, #tpu.memory_space<vmem>>, vector<1x16x128xf32>
    %260 = vector.shape_cast %259 : vector<1x16x128xf32> to vector<16x128xf32>
    %261 = vector.shape_cast %258 : vector<16x128xf32> to vector<1x16x128xf32>
    tpu.vector_store %arg13[%c11_136, %c0_137, %c0_138], %261 {strides = array<i32>} : memref<16x16x128xf32, #tpu.memory_space<vmem>>, vector<1x16x128xf32>,
    %c12 = arith.constant 12 : index
    %c0_139 = arith.constant 0 : index
    %c0_140 = arith.constant 0 : index
    %262 = vector.load %arg11[%c12, %c0_139, %c0_140] : memref<16x16x128xf32, #tpu.memory_space<vmem>>, vector<1x16x128xf32>
    %263 = vector.shape_cast %262 : vector<1x16x128xf32> to vector<16x128xf32>
    %264 = arith.mulf %263, %258 : vector<16x128xf32>
    %c12_141 = arith.constant 12 : index
    %c0_142 = arith.constant 0 : index
    %c0_143 = arith.constant 0 : index
    %265 = vector.load %arg12[%c12_141, %c0_142, %c0_143] : memref<16x16x128xf32, #tpu.memory_space<vmem>>, vector<1x16x128xf32>
    %266 = vector.shape_cast %265 : vector<1x16x128xf32> to vector<16x128xf32>
    %267 = arith.addf %264, %266 : vector<16x128xf32>
    %c12_144 = arith.constant 12 : index
    %c0_145 = arith.constant 0 : index
    %c0_146 = arith.constant 0 : index
    %268 = vector.load %arg13[%c12_144, %c0_145, %c0_146] : memref<16x16x128xf32, #tpu.memory_space<vmem>>, vector<1x16x128xf32>
    %269 = vector.shape_cast %268 : vector<1x16x128xf32> to vector<16x128xf32>
    %270 = vector.shape_cast %267 : vector<16x128xf32> to vector<1x16x128xf32>
    tpu.vector_store %arg13[%c12_144, %c0_145, %c0_146], %270 {strides = array<i32>} : memref<16x16x128xf32, #tpu.memory_space<vmem>>, vector<1x16x128xf32>,
    %c13 = arith.constant 13 : index
    %c0_147 = arith.constant 0 : index
    %c0_148 = arith.constant 0 : index
    %271 = vector.load %arg11[%c13, %c0_147, %c0_148] : memref<16x16x128xf32, #tpu.memory_space<vmem>>, vector<1x16x128xf32>
    %272 = vector.shape_cast %271 : vector<1x16x128xf32> to vector<16x128xf32>
    %273 = arith.mulf %272, %267 : vector<16x128xf32>
    %c13_149 = arith.constant 13 : index
    %c0_150 = arith.constant 0 : index
    %c0_151 = arith.constant 0 : index
    %274 = vector.load %arg12[%c13_149, %c0_150, %c0_151] : memref<16x16x128xf32, #tpu.memory_space<vmem>>, vector<1x16x128xf32>
    %275 = vector.shape_cast %274 : vector<1x16x128xf32> to vector<16x128xf32>
    %276 = arith.addf %273, %275 : vector<16x128xf32>
    %c13_152 = arith.constant 13 : index
    %c0_153 = arith.constant 0 : index
    %c0_154 = arith.constant 0 : index
    %277 = vector.load %arg13[%c13_152, %c0_153, %c0_154] : memref<16x16x128xf32, #tpu.memory_space<vmem>>, vector<1x16x128xf32>
    %278 = vector.shape_cast %277 : vector<1x16x128xf32> to vector<16x128xf32>
    %279 = vector.shape_cast %276 : vector<16x128xf32> to vector<1x16x128xf32>
    tpu.vector_store %arg13[%c13_152, %c0_153, %c0_154], %279 {strides = array<i32>} : memref<16x16x128xf32, #tpu.memory_space<vmem>>, vector<1x16x128xf32>,
    %c14 = arith.constant 14 : index
    %c0_155 = arith.constant 0 : index
    %c0_156 = arith.constant 0 : index
    %280 = vector.load %arg11[%c14, %c0_155, %c0_156] : memref<16x16x128xf32, #tpu.memory_space<vmem>>, vector<1x16x128xf32>
    %281 = vector.shape_cast %280 : vector<1x16x128xf32> to vector<16x128xf32>
    %282 = arith.mulf %281, %276 : vector<16x128xf32>
    %c14_157 = arith.constant 14 : index
    %c0_158 = arith.constant 0 : index
    %c0_159 = arith.constant 0 : index
    %283 = vector.load %arg12[%c14_157, %c0_158, %c0_159] : memref<16x16x128xf32, #tpu.memory_space<vmem>>, vector<1x16x128xf32>
    %284 = vector.shape_cast %283 : vector<1x16x128xf32> to vector<16x128xf32>
    %285 = arith.addf %282, %284 : vector<16x128xf32>
    %c14_160 = arith.constant 14 : index
    %c0_161 = arith.constant 0 : index
    %c0_162 = arith.constant 0 : index
    %286 = vector.load %arg13[%c14_160, %c0_161, %c0_162] : memref<16x16x128xf32, #tpu.memory_space<vmem>>, vector<1x16x128xf32>
    %287 = vector.shape_cast %286 : vector<1x16x128xf32> to vector<16x128xf32>
    %288 = vector.shape_cast %285 : vector<16x128xf32> to vector<1x16x128xf32>
    tpu.vector_store %arg13[%c14_160, %c0_161, %c0_162], %288 {strides = array<i32>} : memref<16x16x128xf32, #tpu.memory_space<vmem>>, vector<1x16x128xf32>,
    %c15 = arith.constant 15 : index
    %c0_163 = arith.constant 0 : index
    %c0_164 = arith.constant 0 : index
    %289 = vector.load %arg11[%c15, %c0_163, %c0_164] : memref<16x16x128xf32, #tpu.memory_space<vmem>>, vector<1x16x128xf32>
    %290 = vector.shape_cast %289 : vector<1x16x128xf32> to vector<16x128xf32>
    %291 = arith.mulf %290, %285 : vector<16x128xf32>
    %c15_165 = arith.constant 15 : index
    %c0_166 = arith.constant 0 : index
    %c0_167 = arith.constant 0 : index
    %292 = vector.load %arg12[%c15_165, %c0_166, %c0_167] : memref<16x16x128xf32, #tpu.memory_space<vmem>>, vector<1x16x128xf32>
    %293 = vector.shape_cast %292 : vector<1x16x128xf32> to vector<16x128xf32>
    %294 = arith.addf %291, %293 : vector<16x128xf32>
    %c15_168 = arith.constant 15 : index
    %c0_169 = arith.constant 0 : index
    %c0_170 = arith.constant 0 : index
    %295 = vector.load %arg13[%c15_168, %c0_169, %c0_170] : memref<16x16x128xf32, #tpu.memory_space<vmem>>, vector<1x16x128xf32>
    %296 = vector.shape_cast %295 : vector<1x16x128xf32> to vector<16x128xf32>
    %297 = vector.shape_cast %294 : vector<16x128xf32> to vector<1x16x128xf32>
    tpu.vector_store %arg13[%c15_168, %c0_169, %c0_170], %297 {strides = array<i32>} : memref<16x16x128xf32, #tpu.memory_space<vmem>>, vector<1x16x128xf32>,
    %c0_171 = arith.constant 0 : index
    %c0_172 = arith.constant 0 : index
    %c0_173 = arith.constant 0 : index
    %298 = vector.load %arg13[%c0_171, %c0_172, %c0_173] : memref<16x16x128xf32, #tpu.memory_space<vmem>>, vector<16x16x128xf32>
    %299 = vector.extract_strided_slice %298 {offsets = [0, 0, 0], sizes = [16, 16, 64], strides = [1, 1, 1]} : vector<16x16x128xf32> to vector<16x16x64xf32>
    %300 = vector.extract_strided_slice %69 {offsets = [0, 0], sizes = [16, 16], strides = [1, 1]} : vector<32x16xf32> to vector<16x16xf32>
    %301 = vector.shape_cast %300 : vector<16x16xf32> to vector<16x16x1xf32>
    %302 = vector.broadcast %301 : vector<16x16x1xf32> to vector<16x16x64xf32>
    %303 = arith.mulf %299, %302 : vector<16x16x64xf32>
    %cst_174 = arith.constant dense<0.000000e+00> : vector<16x64xf32>
    %304 = vector.multi_reduction <add>, %303, %cst_174 [1] : vector<16x16x64xf32> to vector<16x64xf32>
    %305 = vector.extract_strided_slice %298 {offsets = [0, 0, 64], sizes = [16, 16, 64], strides = [1, 1, 1]} : vector<16x16x128xf32> to vector<16x16x64xf32>
    %306 = vector.extract_strided_slice %69 {offsets = [16, 0], sizes = [16, 16], strides = [1, 1]} : vector<32x16xf32> to vector<16x16xf32>
    %307 = vector.shape_cast %306 : vector<16x16xf32> to vector<16x16x1xf32>
    %308 = vector.broadcast %307 : vector<16x16x1xf32> to vector<16x16x64xf32>
    %309 = arith.mulf %305, %308 : vector<16x16x64xf32>
    %cst_175 = arith.constant dense<0.000000e+00> : vector<16x64xf32>
    %310 = vector.multi_reduction <add>, %309, %cst_175 [1] : vector<16x16x64xf32> to vector<16x64xf32>
    %311 = tpu.concatenate %304, %310 in 0 : vector<16x64xf32>, vector<16x64xf32> -> vector<32x64xf32>
    %c0_176 = arith.constant 0 : index
    %c0_177 = arith.constant 0 : index
    %312 = vector.load %arg8[%c0_176, %c0_177] : memref<1x64xf32, #tpu.memory_space<vmem>>, vector<1x64xf32>
    %313 = vector.broadcast %312 : vector<1x64xf32> to vector<32x64xf32>
    %314 = arith.mulf %63, %313 : vector<32x64xf32>
    %315 = arith.addf %311, %314 : vector<32x64xf32>
    %cst_178 = arith.constant 0.000000e+00 : f32
    %316 = vector.broadcast %cst_178 : f32 to vector<32x64xf32>
    %317 = arith.subf %316, %18 : vector<32x64xf32>
    %318 = math.exp %317 : vector<32x64xf32>
    %cst_179 = arith.constant 1.000000e+00 : f32
    %319 = vector.broadcast %cst_179 : f32 to vector<32x64xf32>
    %320 = arith.addf %319, %318 : vector<32x64xf32>
    %cst_180 = arith.constant 1.000000e+00 : f32
    %321 = vector.broadcast %cst_180 : f32 to vector<32x64xf32>
    %322 = arith.divf %321, %320 : vector<32x64xf32>
    %323 = arith.mulf %18, %322 : vector<32x64xf32>
    %324 = arith.mulf %315, %323 : vector<32x64xf32>
    %325 = arith.truncf %324 : vector<32x64xf32> to vector<32x64xbf16>
    %c0_181 = arith.constant 0 : index
    %c0_182 = arith.constant 0 : index
    %326 = vector.load %arg9[%c0_181, %c0_182] : memref<64x32xbf16, #tpu.memory_space<vmem>>, vector<64x32xbf16>
    %cst_183 = arith.constant dense<0.000000e+00> : vector<32x32xf32>
    %327 = tpu.matmul %325, %326, %cst_183 {dimension_numbers = #tpu.dot_dimension_numbers<[1], [0], [0], [1], [0, 0, 1, 1], [], []>} : vector<32x64xbf16>, vector<64x32xbf16>, vector<32x32xf32> -> vector<32x32xf32>
    %328 = arith.addf %0, %327 : vector<32x32xf32>
    %c0_184 = arith.constant 0 : index
    %c0_185 = arith.constant 0 : index
    %329 = vector.load %arg10[%c0_184, %c0_185] : memref<32x32xf32, #tpu.memory_space<vmem>>, vector<32x32xf32>
    tpu.vector_store %arg10[%c0_184, %c0_185], %328 {strides = array<i32>} : memref<32x32xf32, #tpu.memory_space<vmem>>, vector<32x32xf32>,
    return
  }
  func.func @transform_0(%arg0: i32) -> (i32, i32) {
    %c0_i32 = arith.constant 0 : i32
    %c0_i32_0 = arith.constant 0 : i32
    %c0_i32_1 = arith.constant 0 : i32
    return %c0_i32, %c0_i32_0 : i32, i32
  }
  func.func @transform_1(%arg0: i32) -> (i32, i32) {
    %c0_i32 = arith.constant 0 : i32
    %c0_i32_0 = arith.constant 0 : i32
    %c0_i32_1 = arith.constant 0 : i32
    return %c0_i32, %c0_i32_0 : i32, i32
  }
  func.func @transform_2(%arg0: i32) -> (i32, i32) {
    %c0_i32 = arith.constant 0 : i32
    %c0_i32_0 = arith.constant 0 : i32
    %c0_i32_1 = arith.constant 0 : i32
    return %c0_i32, %c0_i32_0 : i32, i32
  }
  func.func @transform_3(%arg0: i32) -> (i32, i32) {
    %c0_i32 = arith.constant 0 : i32
    %c0_i32_0 = arith.constant 0 : i32
    %c0_i32_1 = arith.constant 0 : i32
    return %c0_i32, %c0_i32_0 : i32, i32
  }
  func.func @transform_4(%arg0: i32) -> (i32, i32) {
    %c0_i32 = arith.constant 0 : i32
    %c0_i32_0 = arith.constant 0 : i32
    %c0_i32_1 = arith.constant 0 : i32
    return %c0_i32, %c0_i32_0 : i32, i32
  }
  func.func @transform_5(%arg0: i32) -> (i32, i32) {
    %c0_i32 = arith.constant 0 : i32
    %c0_i32_0 = arith.constant 0 : i32
    %c0_i32_1 = arith.constant 0 : i32
    return %c0_i32, %c0_i32_0 : i32, i32
  }
  func.func @transform_6(%arg0: i32) -> (i32, i32) {
    %c0_i32 = arith.constant 0 : i32
    %c0_i32_0 = arith.constant 0 : i32
    %c0_i32_1 = arith.constant 0 : i32
    return %c0_i32, %c0_i32_0 : i32, i32
  }
  func.func @transform_7(%arg0: i32) -> (i32, i32) {
    %c0_i32 = arith.constant 0 : i32
    %c0_i32_0 = arith.constant 0 : i32
    %c0_i32_1 = arith.constant 0 : i32
    return %c0_i32, %c0_i32_0 : i32, i32
  }
  func.func @transform_8(%arg0: i32) -> (i32, i32) {
    %c0_i32 = arith.constant 0 : i32
    %c0_i32_0 = arith.constant 0 : i32
    %c0_i32_1 = arith.constant 0 : i32
    return %c0_i32, %c0_i32_0 : i32, i32
  }
  func.func @transform_9(%arg0: i32) -> (i32, i32) {
    %c0_i32 = arith.constant 0 : i32
    %c0_i32_0 = arith.constant 0 : i32
    %c0_i32_1 = arith.constant 0 : i32
    return %c0_i32, %c0_i32_0 : i32, i32
  }
}

</mosaic_0001>

<llo_original>
// kernel: _run.1
$region0: #{_run.1}
  #allocation0 [shape = 'u32[]', space=smem, size = 0x4, offset = 0x4, fixed_abs, tag = 'smem constant byte address 0x4 - core index']
  #allocation1 [shape = 'u32[72,128]{1,0:T(1,128)}', space=vmem, size = 0x9000, scoped, tag = 'internal scratch']
  #allocation2 [shape = 'f32[16,16,128]{2,1,0:T(8,128)}', space=vmem, size = 0x20000, scoped, tag = 'scratch operand']
  #allocation3 [shape = 'f32[16,16,128]{2,1,0:T(8,128)}', space=vmem, size = 0x20000, scoped, tag = 'scratch operand']
  #allocation4 [shape = 'f32[16,16,128]{2,1,0:T(8,128)}', space=vmem, size = 0x20000, scoped, tag = 'scratch operand']
  %s0 = inlined_call_operand.vmem [shape: f32[32,32], index: 0, kind: input, shape index: {}]
  %s1 = inlined_call_operand.vmem [shape: f32[1,32], index: 1, kind: input, shape index: {}]
  %s2 = inlined_call_operand.vmem [shape: bf16[32,128], index: 2, kind: input, shape index: {}]
  %s3 = inlined_call_operand.hbm [shape: f32[4,64], index: 3, kind: input, shape index: {}]
  %s4 = inlined_call_operand.vmem [shape: f32[1,64], index: 4, kind: input, shape index: {}]
  %s5 = inlined_call_operand.hbm [shape: bf16[64,96], index: 5, kind: input, shape index: {}]
  %s6 = inlined_call_operand.hbm [shape: f32[16,128], index: 6, kind: input, shape index: {}]
  %s7 = inlined_call_operand.vmem [shape: f32[1,64], index: 7, kind: input, shape index: {}]
  %s8 = inlined_call_operand.vmem [shape: bf16[64,32], index: 8, kind: input, shape index: {}]
  %s9 = inlined_call_operand.hbm [shape: f32[32,32], index: 9, kind: output, shape index: {}]
  %s10 = sld [smem:[#allocation0]]
  $region58: #{_run.1} parent=0
    _
  %s12 = ssub.s32 1, %s10
  %s13 = scalar_select 0, %s12, %s10
  $region1: #{_run.1} parent=0
    #allocation5 [shape = 'u8[2048]{0}', space=vmem, size = 0x800, scoped, tag = 'input window, operand 3, single buffered']
    #allocation6 [shape = 's32[1]{0}', space=sflag, size = 0x4, scoped, tag = 'scoped memory for _run.1']
    #allocation7 [shape = 's32[1]{0}', space=sflag, size = 0x4, scoped, tag = 'scoped memory for _run.1']
    #allocation8 [shape = 'u8[16384]{0}', space=vmem, size = 0x4000, scoped, tag = 'input window, operand 5, single buffered']
    #allocation9 [shape = 's32[1]{0}', space=sflag, size = 0x4, scoped, tag = 'scoped memory for _run.1']
    #allocation10 [shape = 'u8[8192]{0}', space=vmem, size = 0x2000, scoped, tag = 'input window, operand 6, single buffered']
    #allocation11 [shape = 'u8[16384]{0}', space=vmem, size = 0x4000, scoped, tag = 'output window, operand 0, single buffered']
    %14 = vsyncpa [#allocation6], 0
    %15 = vsyncpa [#allocation9], 0
    %16 = vsyncpa [#allocation7], 0
    // Predicated region
    $region2: #{_run.1} parent=1 // pred_check
      _
    $region3: #{_run.1} parent=1 // pred_check_branch
      %18 = sbr.rel (0) target = $region5
    $region4: #{_run.1} parent=1 // pred_region
      _
    $region5: #{_run.1} parent=1 // pred_fallthru
      _
    // Predicated region
    $region6: #{_run.1} parent=1 // pred_check
      _
    $region7: #{_run.1} parent=1 // pred_check_branch
      %20 = sbr.rel (0) target = $region9
    $region8: #{_run.1} parent=1 // pred_region
      _
    $region9: #{_run.1} parent=1 // pred_fallthru
      _
    // Predicated region
    $region10: #{_run.1} parent=1 // pred_check
      _
    $region11: #{_run.1} parent=1 // pred_check_branch
      %22 = sbr.rel (0) target = $region13
    $region12: #{_run.1} parent=1 // pred_region
      _
    $region13: #{_run.1} parent=1 // pred_fallthru
      _
    // Predicated region
    $region14: #{_run.1} parent=1 // pred_check
      _
    $region15: #{_run.1} parent=1 // pred_check_branch
      %24 = sbr.rel (0) target = $region17
    $region16: #{_run.1} parent=1 // pred_region
      %26 = vsyncadd [#allocation6], 0
      %s28 = sshll.u32 %s3, 4
      %s29 = int_to_ptr.hbm [resolvable:$true] %s28
      %s30 = sshll.u32 [#allocation5], 4
      %s31 = int_to_ptr.vmem [resolvable:$true] %s30
      %33 = dma.hbm_to_vmem [thread:$0]  %s29, 64, %s31, [#allocation6]
    $region17: #{_run.1} parent=1 // pred_fallthru
      _
    // Predicated region
    $region18: #{_run.1} parent=1 // pred_check
      _
    $region19: #{_run.1} parent=1 // pred_check_branch
      %35 = sbr.rel (0) target = $region21
    $region20: #{_run.1} parent=1 // pred_region
      _
    $region21: #{_run.1} parent=1 // pred_fallthru
      _
    // Predicated region
    $region22: #{_run.1} parent=1 // pred_check
      _
    $region23: #{_run.1} parent=1 // pred_check_branch
      %37 = sbr.rel (0) target = $region25
    $region24: #{_run.1} parent=1 // pred_region
      %39 = vsyncadd [#allocation9], 0
      %s40 = sshll.u32 %s5, 4
      %s41 = int_to_ptr.hbm [resolvable:$true] %s40
      %s42 = sshll.u32 [#allocation8], 4
      %s43 = int_to_ptr.vmem [resolvable:$true] %s42
      %48 = dma.hbm_to_vmem [thread:$0]  %s41, 512, %s43, [#allocation9], 64, 64, 4
    $region25: #{_run.1} parent=1 // pred_fallthru
      _
    // Predicated region
    $region26: #{_run.1} parent=1 // pred_check
      _
    $region27: #{_run.1} parent=1 // pred_check_branch
      %50 = sbr.rel (0) target = $region29
    $region28: #{_run.1} parent=1 // pred_region
      %52 = vsyncadd [#allocation9], 0
      %s53 = sshll.u32 %s6, 4
      %s54 = int_to_ptr.hbm [resolvable:$true] %s53
      %s55 = sshll.u32 [#allocation10], 4
      %s56 = int_to_ptr.vmem [resolvable:$true] %s55
      %61 = dma.hbm_to_vmem [thread:$0]  %s54, 256, %s56, [#allocation9], 128, 128, 8
    $region29: #{_run.1} parent=1 // pred_fallthru
      _
    // Predicated region
    $region30: #{_run.1} parent=1 // pred_check
      _
    $region31: #{_run.1} parent=1 // pred_check_branch
      %63 = sbr.rel (0) target = $region33
    $region32: #{_run.1} parent=1 // pred_region
      _
    $region33: #{_run.1} parent=1 // pred_fallthru
      _
    // Predicated region
    $region34: #{_run.1} parent=1 // pred_check
      _
    $region35: #{_run.1} parent=1 // pred_check_branch
      %65 = sbr.rel (0) target = $region37
    $region36: #{_run.1} parent=1 // pred_region
      _
    $region37: #{_run.1} parent=1 // pred_fallthru
      _
    // Predicated region
    $region38: #{_run.1} parent=1 // pred_check
      _
    $region39: #{_run.1} parent=1 // pred_check_branch
      %67 = sbr.rel (0) target = $region41
    $region40: #{_run.1} parent=1 // pred_region
      %69 = dma.done [#allocation6], 64
    $region41: #{_run.1} parent=1 // pred_fallthru
      _
    // Predicated region
    $region42: #{_run.1} parent=1 // pred_check
      _
    $region43: #{_run.1} parent=1 // pred_check_branch
      %71 = sbr.rel (0) target = $region45
    $region44: #{_run.1} parent=1 // pred_region
      %73 = dma.done [#allocation9], 512
    $region45: #{_run.1} parent=1 // pred_fallthru
      _
    // Predicated region
    $region46: #{_run.1} parent=1 // pred_check
      _
    $region47: #{_run.1} parent=1 // pred_check_branch
      %75 = sbr.rel (0) target = $region49
    $region48: #{_run.1} parent=1 // pred_region
      %77 = dma.done [#allocation9], 256
    $region49: #{_run.1} parent=1 // pred_fallthru
      _
    %v79 = vld [vmem:[%s0] sm:$0xff]
    %v80 = vld [vmem:[%s0 + $0x8] sm:$0xff]
    %v81 = vld [vmem:[%s0 + $0x10] sm:$0xff]
    %v82 = vld [vmem:[%s0 + $0x18] sm:$0xff]
    %v83 = vmul.f32 %v79, %v79
    %v84 = vmul.f32 %v80, %v80
    %v85 = vmul.f32 %v81, %v81
    %v86 = vmul.f32 %v82, %v82
    %vm87 = vcmask 261120
    %v88 = vsel %vm87, %v83, 0.0
    %89 = vadd.xlane.f32.xlu0 %v88
    %v90 = vpop.xlane.xlu0 %89
    %v91 = vsel %vm87, %v84, 0.0
    %92 = vadd.xlane.f32.xlu0 %v91
    %v93 = vpop.xlane.xlu0 %92
    %v94 = vsel %vm87, %v85, 0.0
    %95 = vadd.xlane.f32.xlu0 %v94
    %v96 = vpop.xlane.xlu0 %95
    %v97 = vsel %vm87, %v86, 0.0
    %98 = vadd.xlane.f32.xlu0 %v97
    %v99 = vpop.xlane.xlu0 %98
    %v100 = vrcp.pop 32.0
    %v101 = vmul.f32 32.0, %v100
    %v102 = vsub.f32 1.0, %v101
    %v103 = vmul.f32 %v100, %v102
    %v104 = vadd.f32 %v100, %v103
    %vm105 = vweird.f32 %v100
    %v106 = vsel %vm105, %v100, %v104
    %v107 = vmul.f32 %v90, %v106
    %v108 = vmul.f32 %v93, %v106
    %v109 = vmul.f32 %v96, %v106
    %v110 = vmul.f32 %v99, %v106
    %v111 = vadd.f32 %v107, 1e-05
    %v112 = vadd.f32 %v108, 1e-05
    %v113 = vadd.f32 %v109, 1e-05
    %v114 = vadd.f32 %v110, 1e-05
    %v115 = vrsqrt.pop %v111
    %v116 = vmul.f32 %v115, %v111
    %v117 = vmul.f32 %v116, %v115
    %v118 = vmul.f32 0.5, %v117
    %v119 = vsub.f32 1.5, %v118
    %v120 = vmul.f32 %v115, %v119
    %vm121 = vweird.f32 %v111
    %vm122 = vweird.f32 %v115
    %vm123 = vmor %vm121, %vm122
    %v124 = vsel %vm123, %v115, %v120
    %v125 = vrsqrt.pop %v112
    %v126 = vmul.f32 %v125, %v112
    %v127 = vmul.f32 %v126, %v125
    %v128 = vmul.f32 0.5, %v127
    %v129 = vsub.f32 1.5, %v128
    %v130 = vmul.f32 %v125, %v129
    %vm131 = vweird.f32 %v112
    %vm132 = vweird.f32 %v125
    %vm133 = vmor %vm131, %vm132
    %v134 = vsel %vm133, %v125, %v130
    %v135 = vrsqrt.pop %v113
    %v136 = vmul.f32 %v135, %v113
    %v137 = vmul.f32 %v136, %v135
    %v138 = vmul.f32 0.5, %v137
    %v139 = vsub.f32 1.5, %v138
    %v140 = vmul.f32 %v135, %v139
    %vm141 = vweird.f32 %v113
    %vm142 = vweird.f32 %v135
    %vm143 = vmor %vm141, %vm142
    %v144 = vsel %vm143, %v135, %v140
    %v145 = vrsqrt.pop %v114
    %v146 = vmul.f32 %v145, %v114
    %v147 = vmul.f32 %v146, %v145
    %v148 = vmul.f32 0.5, %v147
    %v149 = vsub.f32 1.5, %v148
    %v150 = vmul.f32 %v145, %v149
    %vm151 = vweird.f32 %v114
    %vm152 = vweird.f32 %v145
    %vm153 = vmor %vm151, %vm152
    %v154 = vsel %vm153, %v145, %v150
    %v155 = vmul.f32 %v79, %v124
    %v156 = vmul.f32 %v80, %v134
    %v157 = vmul.f32 %v81, %v144
    %v158 = vmul.f32 %v82, %v154
    %v159 = vld [vmem:[%s1] sm:$0x1]
    %v161 = vperm.slane %v159, 0
    %v163 = vmul.f32 %v155, %v161
    %v164 = vmul.f32 %v156, %v161
    %v165 = vmul.f32 %v157, %v161
    %v166 = vmul.f32 %v158, %v161
    %v167 = vpack.c.bf16 %v164, %v163
    %v168 = vpack.c.bf16 %v166, %v165
    %v169 = vld [vmem:[%s2] sm:$0xf]
    %v170 = vld [vmem:[%s2 + $0x4] sm:$0xf]
    %v171 = vld [vmem:[%s2 + $0x8] sm:$0xf]
    %v172 = vld [vmem:[%s2 + $0xc] sm:$0xf]
    %v177 = vunpack.c.l.b16 %v169
    %v178 = vunpack.c.l.b16 %v170
    %v179 = vunpack.c.l.b16 %v171
    %v180 = vunpack.c.l.b16 %v172
    %v181 = vpack.c.b16 %v178, %v177
    %v182 = vpack.c.b16 %v180, %v179
    %v186 = vsel %vm87, %v167, 0
    %v189 = vsel %vm87, %v168, 0
    %191 = vmatpush.bf16.msra.mxu0 0
    %192 = vmatpush.bf16.msra.mxu0 0
    %193 = vmatpush.bf16.msra.mxu0 0
    %194 = vmatpush.bf16.msra.mxu0 0
    %195 = vmatpush.bf16.msra.mxu0 0
    %196 = vmatpush.bf16.msra.mxu0 0
    %197 = vmatpush.bf16.msra.mxu0 %v182
    %198 = vmatpush.bf16.msra.mxu0 %v181
    %199 = vmatmul.bf16.gmra.mxu0 %v186
    %v200 = vpop.f32.mrf.mxu0
    %v201 = vadd.f32 0.0, %v200
    %v202 = vpop.f32.mrf.mxu0
    %v203 = vadd.f32 0.0, %v202
    %204 = vmatmul.bf16.gmra.mxu0 %v189
    %v205 = vpop.f32.mrf.mxu0
    %v206 = vadd.f32 0.0, %v205
    %v207 = vpop.f32.mrf.mxu0
    %v208 = vadd.f32 0.0, %v207
    %209 = vdwg.mxu0
    %v210 = vlaneseq
    %v211 = vshrl.u32 %v210, 7
    %v212 = vadd.s32 %v211, 8
    %v213 = vadd.s32 %v211, 16
    %v214 = vadd.s32 %v211, 24
    %v215 = vand.u32 %v211, 15
    %v216 = vand.u32 %v212, 15
    %v217 = vand.u32 %v213, 15
    %v218 = vand.u32 %v214, 15
    %v219 = vld [vmem:[#allocation5] sm:$0xf]
    %v220 = vld [vmem:[%s4] sm:$0x1]
    %v221 = vperm.slane %v219, 0
    %v222 = vmul.f32 %v201, %v221
    %v223 = vmul.f32 %v203, %v221
    %v224 = vmul.f32 %v206, %v221
    %v225 = vmul.f32 %v208, %v221
    %v227 = vperm.slane %v220, 0
    %v229 = vadd.f32 %v227, %v222
    %v230 = vadd.f32 %v227, %v223
    %v231 = vadd.f32 %v227, %v224
    %v232 = vadd.f32 %v227, %v225
    %v233 = vrot.slane %v201, 7
    %v234 = vrot.slane %v203, 7
    %v235 = vrot.slane %v206, 7
    %v236 = vrot.slane %v208, 7
    %vm237 = vcmp.lt.s32.totalorder %v211, 1
    %v238 = vsel %vm237, %v235, %v236
    %v239 = vsel %vm237, %v234, %v235
    %v240 = vsel %vm237, %v233, %v234
    %v241 = vsel %vm237, %v236, %v233
    %vm242 = vcmp.ge.s32.totalorder %v215, 1
    %vm243 = vcmp.ge.s32.totalorder %v216, 1
    %vm244 = vcmp.ge.s32.totalorder %v217, 1
    %vm245 = vcmp.ge.s32.totalorder %v218, 1
    %v246 = vsel %vm242, %v241, 0.0
    %v247 = vsel %vm243, %v240, 0.0
    %v248 = vsel %vm244, %v239, 0.0
    %v249 = vsel %vm245, %v238, 0.0
    %v250 = vperm.slane %v219, 1
    %v251 = vmul.f32 %v246, %v250
    %v252 = vmul.f32 %v247, %v250
    %v253 = vmul.f32 %v248, %v250
    %v254 = vmul.f32 %v249, %v250
    %v255 = vadd.f32 %v229, %v251
    %v256 = vadd.f32 %v230, %v252
    %v257 = vadd.f32 %v231, %v253
    %v258 = vadd.f32 %v232, %v254
    %v259 = vrot.slane %v201, 6
    %v260 = vrot.slane %v203, 6
    %v261 = vrot.slane %v206, 6
    %v262 = vrot.slane %v208, 6
    %vm263 = vcmp.lt.s32.totalorder %v211, 2
    %v264 = vsel %vm263, %v261, %v262
    %v265 = vsel %vm263, %v260, %v261
    %v266 = vsel %vm263, %v259, %v260
    %v267 = vsel %vm263, %v262, %v259
    %vm268 = vcmp.ge.s32.totalorder %v215, 2
    %vm269 = vcmp.ge.s32.totalorder %v216, 2
    %vm270 = vcmp.ge.s32.totalorder %v217, 2
    %vm271 = vcmp.ge.s32.totalorder %v218, 2
    %v272 = vsel %vm268, %v267, 0.0
    %v273 = vsel %vm269, %v266, 0.0
    %v274 = vsel %vm270, %v265, 0.0
    %v275 = vsel %vm271, %v264, 0.0
    %v276 = vperm.slane %v219, 2
    %v277 = vmul.f32 %v272, %v276
    %v278 = vmul.f32 %v273, %v276
    %v279 = vmul.f32 %v274, %v276
    %v280 = vmul.f32 %v275, %v276
    %v281 = vadd.f32 %v255, %v277
    %v282 = vadd.f32 %v256, %v278
    %v283 = vadd.f32 %v257, %v279
    %v284 = vadd.f32 %v258, %v280
    %v285 = vrot.slane %v201, 5
    %v286 = vrot.slane %v203, 5
    %v287 = vrot.slane %v206, 5
    %v288 = vrot.slane %v208, 5
    %vm289 = vcmp.lt.s32.totalorder %v211, 3
    %v290 = vsel %vm289, %v287, %v288
    %v291 = vsel %vm289, %v286, %v287
    %v292 = vsel %vm289, %v285, %v286
    %v293 = vsel %vm289, %v288, %v285
    %vm294 = vcmp.ge.s32.totalorder %v215, 3
    %vm295 = vcmp.ge.s32.totalorder %v216, 3
    %vm296 = vcmp.ge.s32.totalorder %v217, 3
    %vm297 = vcmp.ge.s32.totalorder %v218, 3
    %v298 = vsel %vm294, %v293, 0.0
    %v299 = vsel %vm295, %v292, 0.0
    %v300 = vsel %vm296, %v291, 0.0
    %v301 = vsel %vm297, %v290, 0.0
    %v302 = vperm.slane %v219, 3
    %v303 = vmul.f32 %v298, %v302
    %v304 = vmul.f32 %v299, %v302
    %v305 = vmul.f32 %v300, %v302
    %v306 = vmul.f32 %v301, %v302
    %v307 = vadd.f32 %v281, %v303
    %v308 = vadd.f32 %v282, %v304
    %v309 = vadd.f32 %v283, %v305
    %v310 = vadd.f32 %v284, %v306
    %v311 = vsub.f32 0.0, %v307
    %v312 = vsub.f32 0.0, %v308
    %v313 = vsub.f32 0.0, %v309
    %v314 = vsub.f32 0.0, %v310
    %v315 = vmul.f32 %v311, 1.442695
    %v316 = vpow.pop %v315
    %v317 = vmul.f32 %v312, 1.442695
    %v318 = vpow.pop %v317
    %v319 = vmul.f32 %v313, 1.442695
    %v320 = vpow.pop %v319
    %v321 = vmul.f32 %v314, 1.442695
    %v322 = vpow.pop %v321
    %v323 = vadd.f32 %v316, 1.0
    %v324 = vadd.f32 %v318, 1.0
    %v325 = vadd.f32 %v320, 1.0
    %v326 = vadd.f32 %v322, 1.0
    %v327 = vrcp.pop %v323
    %v328 = vmul.f32 %v323, %v327
    %v329 = vsub.f32 1.0, %v328
    %v330 = vmul.f32 %v327, %v329
    %v331 = vadd.f32 %v327, %v330
    %vm332 = vweird.f32 %v323
    %vm333 = vweird.f32 %v327
    %vm334 = vmor %vm332, %vm333
    %v335 = vsel %vm334, %v327, %v331
    %v336 = vand.u32 2147483647, %v323
    %vm337 = vcmp.eq.f32.partialorder %v336, 8.507059e+37
    %v338 = vand.u32 %v323, 2147483648
    %v339 = vor.u32 1.1754944e-38, %v338
    %v340 = vsel %vm337, %v339, %v335
    %v341 = vmul.f32 1.0, %v340
    %v342 = vrcp.pop %v324
    %v343 = vmul.f32 %v324, %v342
    %v344 = vsub.f32 1.0, %v343
    %v345 = vmul.f32 %v342, %v344
    %v346 = vadd.f32 %v342, %v345
    %vm347 = vweird.f32 %v324
    %vm348 = vweird.f32 %v342
    %vm349 = vmor %vm347, %vm348
    %v350 = vsel %vm349, %v342, %v346
    %v351 = vand.u32 2147483647, %v324
    %vm352 = vcmp.eq.f32.partialorder %v351, 8.507059e+37
    %v353 = vand.u32 %v324, 2147483648
    %v354 = vor.u32 1.1754944e-38, %v353
    %v355 = vsel %vm352, %v354, %v350
    %v356 = vmul.f32 1.0, %v355
    %v357 = vrcp.pop %v325
    %v358 = vmul.f32 %v325, %v357
    %v359 = vsub.f32 1.0, %v358
    %v360 = vmul.f32 %v357, %v359
    %v361 = vadd.f32 %v357, %v360
    %vm362 = vweird.f32 %v325
    %vm363 = vweird.f32 %v357
    %vm364 = vmor %vm362, %vm363
    %v365 = vsel %vm364, %v357, %v361
    %v366 = vand.u32 2147483647, %v325
    %vm367 = vcmp.eq.f32.partialorder %v366, 8.507059e+37
    %v368 = vand.u32 %v325, 2147483648
    %v369 = vor.u32 1.1754944e-38, %v368
    %v370 = vsel %vm367, %v369, %v365
    %v371 = vmul.f32 1.0, %v370
    %v372 = vrcp.pop %v326
    %v373 = vmul.f32 %v326, %v372
    %v374 = vsub.f32 1.0, %v373
    %v375 = vmul.f32 %v372, %v374
    %v376 = vadd.f32 %v372, %v375
    %vm377 = vweird.f32 %v326
    %vm378 = vweird.f32 %v372
    %vm379 = vmor %vm377, %vm378
    %v380 = vsel %vm379, %v372, %v376
    %v381 = vand.u32 2147483647, %v326
    %vm382 = vcmp.eq.f32.partialorder %v381, 8.507059e+37
    %v383 = vand.u32 %v326, 2147483648
    %v384 = vor.u32 1.1754944e-38, %v383
    %v385 = vsel %vm382, %v384, %v380
    %v386 = vmul.f32 1.0, %v385
    %v387 = vmul.f32 %v307, %v341
    %v388 = vmul.f32 %v308, %v356
    %v389 = vmul.f32 %v309, %v371
    %v390 = vmul.f32 %v310, %v386
    %v391 = vpack.c.bf16 %v388, %v387
    %v392 = vpack.c.bf16 %v390, %v389
    %v393 = vld [vmem:[#allocation8] sm:$0xf]
    %v394 = vld [vmem:[#allocation8 + $0x4] sm:$0xf]
    %v395 = vld [vmem:[#allocation8 + $0x8] sm:$0xf]
    %v396 = vld [vmem:[#allocation8 + $0xc] sm:$0xf]
    %v397 = vld [vmem:[#allocation8 + $0x10] sm:$0xf]
    %v398 = vld [vmem:[#allocation8 + $0x14] sm:$0xf]
    %v399 = vld [vmem:[#allocation8 + $0x18] sm:$0xf]
    %v400 = vld [vmem:[#allocation8 + $0x1c] sm:$0xf]
    %v409 = vunpack.c.l.b16 %v393
    %v410 = vunpack.c.l.b16 %v394
    %v411 = vunpack.c.l.b16 %v395
    %v412 = vunpack.c.l.b16 %v396
    %v413 = vunpack.c.l.b16 %v397
    %v414 = vunpack.c.l.b16 %v398
    %v415 = vunpack.c.l.b16 %v399
    %v416 = vunpack.c.l.b16 %v400
    %v417 = vpack.c.b16 %v410, %v409
    %v418 = vpack.c.b16 %v412, %v411
    %v419 = vpack.c.b16 %v414, %v413
    %v420 = vpack.c.b16 %v416, %v415
    %vm425 = vcmask 523264
    %v427 = vsel %vm425, %v391, 0
    %v430 = vsel %vm425, %v392, 0
    %432 = vmatpush.bf16.msra.mxu0 0
    %433 = vmatpush.bf16.msra.mxu0 0
    %434 = vmatpush.bf16.msra.mxu0 0
    %435 = vmatpush.bf16.msra.mxu0 0
    %436 = vmatpush.bf16.msra.mxu0 %v420
    %437 = vmatpush.bf16.msra.mxu0 %v419
    %438 = vmatpush.bf16.msra.mxu0 %v418
    %439 = vmatpush.bf16.msra.mxu0 %v417
    %440 = vmatmul.bf16.gmra.mxu0 %v427
    %v441 = vpop.f32.mrf.mxu0
    %v442 = vadd.f32 0.0, %v441
    %v443 = vpop.f32.mrf.mxu0
    %v444 = vadd.f32 0.0, %v443
    %445 = vmatmul.bf16.gmra.mxu0 %v430
    %v446 = vpop.f32.mrf.mxu0
    %v447 = vadd.f32 0.0, %v446
    %v448 = vpop.f32.mrf.mxu0
    %v449 = vadd.f32 0.0, %v448
    %450 = vdwg.mxu0
    %v451 = vmax.f32 %v442, 0.0
    %v452 = vmax.f32 %v444, 0.0
    %v453 = vmax.f32 %v447, 0.0
    %v454 = vmax.f32 %v449, 0.0
    %v455 = vand.u32 2147483647, %v442
    %v456 = vand.u32 2147483647, %v444
    %v457 = vand.u32 2147483647, %v447
    %v458 = vand.u32 2147483647, %v449
    %v459 = vsub.f32 0.0, %v455
    %v460 = vsub.f32 0.0, %v456
    %v461 = vsub.f32 0.0, %v457
    %v462 = vsub.f32 0.0, %v458
    %v463 = vmul.f32 %v459, 1.442695
    %v464 = vpow.pop %v463
    %v465 = vmul.f32 %v460, 1.442695
    %v466 = vpow.pop %v465
    %v467 = vmul.f32 %v461, 1.442695
    %v468 = vpow.pop %v467
    %v469 = vmul.f32 %v462, 1.442695
    %v470 = vpow.pop %v469
    %v471 = vadd.f32 %v464, 1.0
    %v472 = vlog2.pop %v471
    %v473 = vmul.f32 %v472, 0.6931472
    %v474 = vmul.f32 -0.5, %v464
    %v475 = vadd.f32 %v474, 1.0
    %v476 = vmul.f32 %v475, %v464
    %v477 = vand.u32 2147483647, %v464
    %vm478 = vcmp.lt.f32.partialorder %v477, 0.0004427343
    %v479 = vsel %vm478, %v476, %v473
    %v480 = vadd.f32 %v466, 1.0
    %v481 = vlog2.pop %v480
    %v482 = vmul.f32 %v481, 0.6931472
    %v483 = vmul.f32 -0.5, %v466
    %v484 = vadd.f32 %v483, 1.0
    %v485 = vmul.f32 %v484, %v466
    %v486 = vand.u32 2147483647, %v466
    %vm487 = vcmp.lt.f32.partialorder %v486, 0.0004427343
    %v488 = vsel %vm487, %v485, %v482
    %v489 = vadd.f32 %v468, 1.0
    %v490 = vlog2.pop %v489
    %v491 = vmul.f32 %v490, 0.6931472
    %v492 = vmul.f32 -0.5, %v468
    %v493 = vadd.f32 %v492, 1.0
    %v494 = vmul.f32 %v493, %v468
    %v495 = vand.u32 2147483647, %v468
    %vm496 = vcmp.lt.f32.partialorder %v495, 0.0004427343
    %v497 = vsel %vm496, %v494, %v491
    %v498 = vadd.f32 %v470, 1.0
    %v499 = vlog2.pop %v498
    %v500 = vmul.f32 %v499, 0.6931472
    %v501 = vmul.f32 -0.5, %v470
    %v502 = vadd.f32 %v501, 1.0
    %v503 = vmul.f32 %v502, %v470
    %v504 = vand.u32 2147483647, %v470
    %vm505 = vcmp.lt.f32.partialorder %v504, 0.0004427343
    %v506 = vsel %vm505, %v503, %v500
    %v507 = vadd.f32 %v451, %v479
    %v508 = vadd.f32 %v452, %v488
    %v509 = vadd.f32 %v453, %v497
    %v510 = vadd.f32 %v454, %v506
    %v511 = vmul.f32 %v442, %v387
    %v512 = vmul.f32 %v444, %v388
    %v513 = vmul.f32 %v447, %v389
    %v514 = vmul.f32 %v449, %v390
    %517 = vrot.lane.b32.xlu0 %v509, 64
    %v518 = vpop.permute.xlu0 %517
    %519 = vrot.lane.b32.xlu0 %v510, 64
    %v520 = vpop.permute.xlu0 %519
    %v523 = vsel %vm425, %v507, %v518
    %v524 = vsel %vm425, %v508, %v520
    %v525 = vsub.f32 0.0, %v523
    %v526 = vsub.f32 0.0, %v524
    %v527 = vmul.f32 %v525, 1.442695
    %v528 = vpow.pop %v527
    %v529 = vmul.f32 %v526, 1.442695
    %v530 = vpow.pop %v529
    %v531 = vmul.f32 %v528, %v528
    %v532 = vmul.f32 %v530, %v530
    %v533 = vmul.f32 %v531, %v531
    %v534 = vmul.f32 %v532, %v532
    %v535 = vmul.f32 %v533, %v533
    %v536 = vmul.f32 %v534, %v534
    %v537 = vmul.f32 %v535, %v535
    %v538 = vmul.f32 %v536, %v536
    %v539 = vadd.s32 %v211, 1
    %v540 = vadd.s32 %v212, 1
    %v541 = vand.u32 %v539, 1
    %v542 = vand.u32 %v540, 1
    %vm543 = vcmp.ne.s32.totalorder %v541, 0
    %vm544 = vcmp.ne.s32.totalorder %v542, 0
    %v547 = vrot.slane %v528, 1
    %v548 = vrot.slane %v528, 2
    %v549 = vrot.slane %v528, 3
    %v550 = vrot.slane %v528, 4
    %v551 = vrot.slane %v528, 5
    %v552 = vrot.slane %v528, 6
    %v553 = vrot.slane %v528, 7
    %v554 = vrot.slane %v530, 1
    %v555 = vrot.slane %v530, 2
    %v556 = vrot.slane %v530, 3
    %v557 = vrot.slane %v530, 4
    %v558 = vrot.slane %v530, 5
    %v559 = vrot.slane %v530, 6
    %v560 = vrot.slane %v530, 7
    %v561 = vperm.slane %v528, 0
    %v562 = vperm.slane %v547, 0
    %v563 = vperm.slane %v548, 0
    %v564 = vperm.slane %v549, 0
    %v565 = vperm.slane %v550, 0
    %v566 = vperm.slane %v551, 0
    %v567 = vperm.slane %v552, 0
    %v568 = vperm.slane %v553, 0
    %v569 = vperm.slane %v530, 0
    %v570 = vperm.slane %v554, 0
    %v571 = vperm.slane %v555, 0
    %v572 = vperm.slane %v556, 0
    %v573 = vperm.slane %v557, 0
    %v574 = vperm.slane %v558, 0
    %v575 = vperm.slane %v559, 0
    %v576 = vperm.slane %v560, 0
    %v593 = vsel %vm543, %v561, 1.0
    %v594 = vsel %vm544, %v561, 1.0
    %v595 = vsel %vm543, %v562, 1.0
    %v596 = vsel %vm544, %v562, 1.0
    %v597 = vsel %vm543, %v563, 1.0
    %v598 = vsel %vm544, %v563, 1.0
    %v599 = vsel %vm543, %v564, 1.0
    %v600 = vsel %vm544, %v564, 1.0
    %v601 = vsel %vm543, %v565, 1.0
    %v602 = vsel %vm544, %v565, 1.0
    %v603 = vsel %vm543, %v566, 1.0
    %v604 = vsel %vm544, %v566, 1.0
    %v605 = vsel %vm543, %v567, 1.0
    %v606 = vsel %vm544, %v567, 1.0
    %v607 = vsel %vm543, %v568, 1.0
    %v608 = vsel %vm544, %v568, 1.0
    %v609 = vsel %vm543, %v569, 1.0
    %v610 = vsel %vm544, %v569, 1.0
    %v611 = vsel %vm543, %v570, 1.0
    %v612 = vsel %vm544, %v570, 1.0
    %v613 = vsel %vm543, %v571, 1.0
    %v614 = vsel %vm544, %v571, 1.0
    %v615 = vsel %vm543, %v572, 1.0
    %v616 = vsel %vm544, %v572, 1.0
    %v617 = vsel %vm543, %v573, 1.0
    %v618 = vsel %vm544, %v573, 1.0
    %v619 = vsel %vm543, %v574, 1.0
    %v620 = vsel %vm544, %v574, 1.0
    %v621 = vsel %vm543, %v575, 1.0
    %v622 = vsel %vm544, %v575, 1.0
    %v623 = vsel %vm543, %v576, 1.0
    %v624 = vsel %vm544, %v576, 1.0
    %v625 = vand.u32 %v539, 2
    %v626 = vand.u32 %v540, 2
    %vm627 = vcmp.ne.s32.totalorder %v625, 0
    %vm628 = vcmp.ne.s32.totalorder %v626, 0
    %v631 = vrot.slane %v531, 1
    %v632 = vrot.slane %v531, 2
    %v633 = vrot.slane %v531, 3
    %v634 = vrot.slane %v531, 4
    %v635 = vrot.slane %v531, 5
    %v636 = vrot.slane %v531, 6
    %v637 = vrot.slane %v531, 7
    %v638 = vrot.slane %v532, 1
    %v639 = vrot.slane %v532, 2
    %v640 = vrot.slane %v532, 3
    %v641 = vrot.slane %v532, 4
    %v642 = vrot.slane %v532, 5
    %v643 = vrot.slane %v532, 6
    %v644 = vrot.slane %v532, 7
    %v645 = vperm.slane %v531, 0
    %v646 = vperm.slane %v631, 0
    %v647 = vperm.slane %v632, 0
    %v648 = vperm.slane %v633, 0
    %v649 = vperm.slane %v634, 0
    %v650 = vperm.slane %v635, 0
    %v651 = vperm.slane %v636, 0
    %v652 = vperm.slane %v637, 0
    %v653 = vperm.slane %v532, 0
    %v654 = vperm.slane %v638, 0
    %v655 = vperm.slane %v639, 0
    %v656 = vperm.slane %v640, 0
    %v657 = vperm.slane %v641, 0
    %v658 = vperm.slane %v642, 0
    %v659 = vperm.slane %v643, 0
    %v660 = vperm.slane %v644, 0
    %v677 = vsel %vm627, %v645, 1.0
    %v678 = vsel %vm628, %v645, 1.0
    %v679 = vsel %vm627, %v646, 1.0
    %v680 = vsel %vm628, %v646, 1.0
    %v681 = vsel %vm627, %v647, 1.0
    %v682 = vsel %vm628, %v647, 1.0
    %v683 = vsel %vm627, %v648, 1.0
    %v684 = vsel %vm628, %v648, 1.0
    %v685 = vsel %vm627, %v649, 1.0
    %v686 = vsel %vm628, %v649, 1.0
    %v687 = vsel %vm627, %v650, 1.0
    %v688 = vsel %vm628, %v650, 1.0
    %v689 = vsel %vm627, %v651, 1.0
    %v690 = vsel %vm628, %v651, 1.0
    %v691 = vsel %vm627, %v652, 1.0
    %v692 = vsel %vm628, %v652, 1.0
    %v693 = vsel %vm627, %v653, 1.0
    %v694 = vsel %vm628, %v653, 1.0
    %v695 = vsel %vm627, %v654, 1.0
    %v696 = vsel %vm628, %v654, 1.0
    %v697 = vsel %vm627, %v655, 1.0
    %v698 = vsel %vm628, %v655, 1.0
    %v699 = vsel %vm627, %v656, 1.0
    %v700 = vsel %vm628, %v656, 1.0
    %v701 = vsel %vm627, %v657, 1.0
    %v702 = vsel %vm628, %v657, 1.0
    %v703 = vsel %vm627, %v658, 1.0
    %v704 = vsel %vm628, %v658, 1.0
    %v705 = vsel %vm627, %v659, 1.0
    %v706 = vsel %vm628, %v659, 1.0
    %v707 = vsel %vm627, %v660, 1.0
    %v708 = vsel %vm628, %v660, 1.0
    %v709 = vmul.f32 %v593, %v677
    %v710 = vmul.f32 %v594, %v678
    %v711 = vmul.f32 %v595, %v679
    %v712 = vmul.f32 %v596, %v680
    %v713 = vmul.f32 %v597, %v681
    %v714 = vmul.f32 %v598, %v682
    %v715 = vmul.f32 %v599, %v683
    %v716 = vmul.f32 %v600, %v684
    %v717 = vmul.f32 %v601, %v685
    %v718 = vmul.f32 %v602, %v686
    %v719 = vmul.f32 %v603, %v687
    %v720 = vmul.f32 %v604, %v688
    %v721 = vmul.f32 %v605, %v689
    %v722 = vmul.f32 %v606, %v690
    %v723 = vmul.f32 %v607, %v691
    %v724 = vmul.f32 %v608, %v692
    %v725 = vmul.f32 %v609, %v693
    %v726 = vmul.f32 %v610, %v694
    %v727 = vmul.f32 %v611, %v695
    %v728 = vmul.f32 %v612, %v696
    %v729 = vmul.f32 %v613, %v697
    %v730 = vmul.f32 %v614, %v698
    %v731 = vmul.f32 %v615, %v699
    %v732 = vmul.f32 %v616, %v700
    %v733 = vmul.f32 %v617, %v701
    %v734 = vmul.f32 %v618, %v702
    %v735 = vmul.f32 %v619, %v703
    %v736 = vmul.f32 %v620, %v704
    %v737 = vmul.f32 %v621, %v705
    %v738 = vmul.f32 %v622, %v706
    %v739 = vmul.f32 %v623, %v707
    %v740 = vmul.f32 %v624, %v708
    %v741 = vand.u32 %v539, 4
    %v742 = vand.u32 %v540, 4
    %vm743 = vcmp.ne.s32.totalorder %v741, 0
    %vm744 = vcmp.ne.s32.totalorder %v742, 0
    %v747 = vrot.slane %v533, 1
    %v748 = vrot.slane %v533, 2
    %v749 = vrot.slane %v533, 3
    %v750 = vrot.slane %v533, 4
    %v751 = vrot.slane %v533, 5
    %v752 = vrot.slane %v533, 6
    %v753 = vrot.slane %v533, 7
    %v754 = vrot.slane %v534, 1
    %v755 = vrot.slane %v534, 2
    %v756 = vrot.slane %v534, 3
    %v757 = vrot.slane %v534, 4
    %v758 = vrot.slane %v534, 5
    %v759 = vrot.slane %v534, 6
    %v760 = vrot.slane %v534, 7
    %v761 = vperm.slane %v533, 0
    %v762 = vperm.slane %v747, 0
    %v763 = vperm.slane %v748, 0
    %v764 = vperm.slane %v749, 0
    %v765 = vperm.slane %v750, 0
    %v766 = vperm.slane %v751, 0
    %v767 = vperm.slane %v752, 0
    %v768 = vperm.slane %v753, 0
    %v769 = vperm.slane %v534, 0
    %v770 = vperm.slane %v754, 0
    %v771 = vperm.slane %v755, 0
    %v772 = vperm.slane %v756, 0
    %v773 = vperm.slane %v757, 0
    %v774 = vperm.slane %v758, 0
    %v775 = vperm.slane %v759, 0
    %v776 = vperm.slane %v760, 0
    %v793 = vsel %vm743, %v761, 1.0
    %v794 = vsel %vm744, %v761, 1.0
    %v795 = vsel %vm743, %v762, 1.0
    %v796 = vsel %vm744, %v762, 1.0
    %v797 = vsel %vm743, %v763, 1.0
    %v798 = vsel %vm744, %v763, 1.0
    %v799 = vsel %vm743, %v764, 1.0
    %v800 = vsel %vm744, %v764, 1.0
    %v801 = vsel %vm743, %v765, 1.0
    %v802 = vsel %vm744, %v765, 1.0
    %v803 = vsel %vm743, %v766, 1.0
    %v804 = vsel %vm744, %v766, 1.0
    %v805 = vsel %vm743, %v767, 1.0
    %v806 = vsel %vm744, %v767, 1.0
    %v807 = vsel %vm743, %v768, 1.0
    %v808 = vsel %vm744, %v768, 1.0
    %v809 = vsel %vm743, %v769, 1.0
    %v810 = vsel %vm744, %v769, 1.0
    %v811 = vsel %vm743, %v770, 1.0
    %v812 = vsel %vm744, %v770, 1.0
    %v813 = vsel %vm743, %v771, 1.0
    %v814 = vsel %vm744, %v771, 1.0
    %v815 = vsel %vm743, %v772, 1.0
    %v816 = vsel %vm744, %v772, 1.0
    %v817 = vsel %vm743, %v773, 1.0
    %v818 = vsel %vm744, %v773, 1.0
    %v819 = vsel %vm743, %v774, 1.0
    %v820 = vsel %vm744, %v774, 1.0
    %v821 = vsel %vm743, %v775, 1.0
    %v822 = vsel %vm744, %v775, 1.0
    %v823 = vsel %vm743, %v776, 1.0
    %v824 = vsel %vm744, %v776, 1.0
    %v825 = vmul.f32 %v709, %v793
    %v826 = vmul.f32 %v710, %v794
    %v827 = vmul.f32 %v711, %v795
    %v828 = vmul.f32 %v712, %v796
    %v829 = vmul.f32 %v713, %v797
    %v830 = vmul.f32 %v714, %v798
    %v831 = vmul.f32 %v715, %v799
    %v832 = vmul.f32 %v716, %v800
    %v833 = vmul.f32 %v717, %v801
    %v834 = vmul.f32 %v718, %v802
    %v835 = vmul.f32 %v719, %v803
    %v836 = vmul.f32 %v720, %v804
    %v837 = vmul.f32 %v721, %v805
    %v838 = vmul.f32 %v722, %v806
    %v839 = vmul.f32 %v723, %v807
    %v840 = vmul.f32 %v724, %v808
    %v841 = vmul.f32 %v725, %v809
    %v842 = vmul.f32 %v726, %v810
    %v843 = vmul.f32 %v727, %v811
    %v844 = vmul.f32 %v728, %v812
    %v845 = vmul.f32 %v729, %v813
    %v846 = vmul.f32 %v730, %v814
    %v847 = vmul.f32 %v731, %v815
    %v848 = vmul.f32 %v732, %v816
    %v849 = vmul.f32 %v733, %v817
    %v850 = vmul.f32 %v734, %v818
    %v851 = vmul.f32 %v735, %v819
    %v852 = vmul.f32 %v736, %v820
    %v853 = vmul.f32 %v737, %v821
    %v854 = vmul.f32 %v738, %v822
    %v855 = vmul.f32 %v739, %v823
    %v856 = vmul.f32 %v740, %v824
    %v857 = vand.u32 %v539, 8
    %v858 = vand.u32 %v540, 8
    %vm859 = vcmp.ne.s32.totalorder %v857, 0
    %vm860 = vcmp.ne.s32.totalorder %v858, 0
    %v863 = vrot.slane %v535, 1
    %v864 = vrot.slane %v535, 2
    %v865 = vrot.slane %v535, 3
    %v866 = vrot.slane %v535, 4
    %v867 = vrot.slane %v535, 5
    %v868 = vrot.slane %v535, 6
    %v869 = vrot.slane %v535, 7
    %v870 = vrot.slane %v536, 1
    %v871 = vrot.slane %v536, 2
    %v872 = vrot.slane %v536, 3
    %v873 = vrot.slane %v536, 4
    %v874 = vrot.slane %v536, 5
    %v875 = vrot.slane %v536, 6
    %v876 = vrot.slane %v536, 7
    %v877 = vperm.slane %v535, 0
    %v878 = vperm.slane %v863, 0
    %v879 = vperm.slane %v864, 0
    %v880 = vperm.slane %v865, 0
    %v881 = vperm.slane %v866, 0
    %v882 = vperm.slane %v867, 0
    %v883 = vperm.slane %v868, 0
    %v884 = vperm.slane %v869, 0
    %v885 = vperm.slane %v536, 0
    %v886 = vperm.slane %v870, 0
    %v887 = vperm.slane %v871, 0
    %v888 = vperm.slane %v872, 0
    %v889 = vperm.slane %v873, 0
    %v890 = vperm.slane %v874, 0
    %v891 = vperm.slane %v875, 0
    %v892 = vperm.slane %v876, 0
    %v909 = vsel %vm859, %v877, 1.0
    %v910 = vsel %vm860, %v877, 1.0
    %v911 = vsel %vm859, %v878, 1.0
    %v912 = vsel %vm860, %v878, 1.0
    %v913 = vsel %vm859, %v879, 1.0
    %v914 = vsel %vm860, %v879, 1.0
    %v915 = vsel %vm859, %v880, 1.0
    %v916 = vsel %vm860, %v880, 1.0
    %v917 = vsel %vm859, %v881, 1.0
    %v918 = vsel %vm860, %v881, 1.0
    %v919 = vsel %vm859, %v882, 1.0
    %v920 = vsel %vm860, %v882, 1.0
    %v921 = vsel %vm859, %v883, 1.0
    %v922 = vsel %vm860, %v883, 1.0
    %v923 = vsel %vm859, %v884, 1.0
    %v924 = vsel %vm860, %v884, 1.0
    %v925 = vsel %vm859, %v885, 1.0
    %v926 = vsel %vm860, %v885, 1.0
    %v927 = vsel %vm859, %v886, 1.0
    %v928 = vsel %vm860, %v886, 1.0
    %v929 = vsel %vm859, %v887, 1.0
    %v930 = vsel %vm860, %v887, 1.0
    %v931 = vsel %vm859, %v888, 1.0
    %v932 = vsel %vm860, %v888, 1.0
    %v933 = vsel %vm859, %v889, 1.0
    %v934 = vsel %vm860, %v889, 1.0
    %v935 = vsel %vm859, %v890, 1.0
    %v936 = vsel %vm860, %v890, 1.0
    %v937 = vsel %vm859, %v891, 1.0
    %v938 = vsel %vm860, %v891, 1.0
    %v939 = vsel %vm859, %v892, 1.0
    %v940 = vsel %vm860, %v892, 1.0
    %v941 = vmul.f32 %v825, %v909
    %v942 = vmul.f32 %v826, %v910
    %v943 = vmul.f32 %v827, %v911
    %v944 = vmul.f32 %v828, %v912
    %v945 = vmul.f32 %v829, %v913
    %v946 = vmul.f32 %v830, %v914
    %v947 = vmul.f32 %v831, %v915
    %v948 = vmul.f32 %v832, %v916
    %v949 = vmul.f32 %v833, %v917
    %v950 = vmul.f32 %v834, %v918
    %v951 = vmul.f32 %v835, %v919
    %v952 = vmul.f32 %v836, %v920
    %v953 = vmul.f32 %v837, %v921
    %v954 = vmul.f32 %v838, %v922
    %v955 = vmul.f32 %v839, %v923
    %v956 = vmul.f32 %v840, %v924
    %v957 = vmul.f32 %v841, %v925
    %v958 = vmul.f32 %v842, %v926
    %v959 = vmul.f32 %v843, %v927
    %v960 = vmul.f32 %v844, %v928
    %v961 = vmul.f32 %v845, %v929
    %v962 = vmul.f32 %v846, %v930
    %v963 = vmul.f32 %v847, %v931
    %v964 = vmul.f32 %v848, %v932
    %v965 = vmul.f32 %v849, %v933
    %v966 = vmul.f32 %v850, %v934
    %v967 = vmul.f32 %v851, %v935
    %v968 = vmul.f32 %v852, %v936
    %v969 = vmul.f32 %v853, %v937
    %v970 = vmul.f32 %v854, %v938
    %v971 = vmul.f32 %v855, %v939
    %v972 = vmul.f32 %v856, %v940
    %v973 = vand.u32 %v539, 16
    %v974 = vand.u32 %v540, 16
    %vm975 = vcmp.ne.s32.totalorder %v973, 0
    %vm976 = vcmp.ne.s32.totalorder %v974, 0
    %v979 = vrot.slane %v537, 1
    %v980 = vrot.slane %v537, 2
    %v981 = vrot.slane %v537, 3
    %v982 = vrot.slane %v537, 4
    %v983 = vrot.slane %v537, 5
    %v984 = vrot.slane %v537, 6
    %v985 = vrot.slane %v537, 7
    %v986 = vrot.slane %v538, 1
    %v987 = vrot.slane %v538, 2
    %v988 = vrot.slane %v538, 3
    %v989 = vrot.slane %v538, 4
    %v990 = vrot.slane %v538, 5
    %v991 = vrot.slane %v538, 6
    %v992 = vrot.slane %v538, 7
    %v993 = vperm.slane %v537, 0
    %v994 = vperm.slane %v979, 0
    %v995 = vperm.slane %v980, 0
    %v996 = vperm.slane %v981, 0
    %v997 = vperm.slane %v982, 0
    %v998 = vperm.slane %v983, 0
    %v999 = vperm.slane %v984, 0
    %v1000 = vperm.slane %v985, 0
    %v1001 = vperm.slane %v538, 0
    %v1002 = vperm.slane %v986, 0
    %v1003 = vperm.slane %v987, 0
    %v1004 = vperm.slane %v988, 0
    %v1005 = vperm.slane %v989, 0
    %v1006 = vperm.slane %v990, 0
    %v1007 = vperm.slane %v991, 0
    %v1008 = vperm.slane %v992, 0
    %v1025 = vsel %vm975, %v993, 1.0
    %v1026 = vsel %vm976, %v993, 1.0
    %v1027 = vsel %vm975, %v994, 1.0
    %v1028 = vsel %vm976, %v994, 1.0
    %v1029 = vsel %vm975, %v995, 1.0
    %v1030 = vsel %vm976, %v995, 1.0
    %v1031 = vsel %vm975, %v996, 1.0
    %v1032 = vsel %vm976, %v996, 1.0
    %v1033 = vsel %vm975, %v997, 1.0
    %v1034 = vsel %vm976, %v997, 1.0
    %v1035 = vsel %vm975, %v998, 1.0
    %v1036 = vsel %vm976, %v998, 1.0
    %v1037 = vsel %vm975, %v999, 1.0
    %v1038 = vsel %vm976, %v999, 1.0
    %v1039 = vsel %vm975, %v1000, 1.0
    %v1040 = vsel %vm976, %v1000, 1.0
    %v1041 = vsel %vm975, %v1001, 1.0
    %v1042 = vsel %vm976, %v1001, 1.0
    %v1043 = vsel %vm975, %v1002, 1.0
    %v1044 = vsel %vm976, %v1002, 1.0
    %v1045 = vsel %vm975, %v1003, 1.0
    %v1046 = vsel %vm976, %v1003, 1.0
    %v1047 = vsel %vm975, %v1004, 1.0
    %v1048 = vsel %vm976, %v1004, 1.0
    %v1049 = vsel %vm975, %v1005, 1.0
    %v1050 = vsel %vm976, %v1005, 1.0
    %v1051 = vsel %vm975, %v1006, 1.0
    %v1052 = vsel %vm976, %v1006, 1.0
    %v1053 = vsel %vm975, %v1007, 1.0
    %v1054 = vsel %vm976, %v1007, 1.0
    %v1055 = vsel %vm975, %v1008, 1.0
    %v1056 = vsel %vm976, %v1008, 1.0
    %v1057 = vmul.f32 %v941, %v1025
    %v1058 = vmul.f32 %v942, %v1026
    %v1059 = vmul.f32 %v943, %v1027
    %v1060 = vmul.f32 %v944, %v1028
    %v1061 = vmul.f32 %v945, %v1029
    %v1062 = vmul.f32 %v946, %v1030
    %v1063 = vmul.f32 %v947, %v1031
    %v1064 = vmul.f32 %v948, %v1032
    %v1065 = vmul.f32 %v949, %v1033
    %v1066 = vmul.f32 %v950, %v1034
    %v1067 = vmul.f32 %v951, %v1035
    %v1068 = vmul.f32 %v952, %v1036
    %v1069 = vmul.f32 %v953, %v1037
    %v1070 = vmul.f32 %v954, %v1038
    %v1071 = vmul.f32 %v955, %v1039
    %v1072 = vmul.f32 %v956, %v1040
    %v1073 = vmul.f32 %v957, %v1041
    %v1074 = vmul.f32 %v958, %v1042
    %v1075 = vmul.f32 %v959, %v1043
    %v1076 = vmul.f32 %v960, %v1044
    %v1077 = vmul.f32 %v961, %v1045
    %v1078 = vmul.f32 %v962, %v1046
    %v1079 = vmul.f32 %v963, %v1047
    %v1080 = vmul.f32 %v964, %v1048
    %v1081 = vmul.f32 %v965, %v1049
    %v1082 = vmul.f32 %v966, %v1050
    %v1083 = vmul.f32 %v967, %v1051
    %v1084 = vmul.f32 %v968, %v1052
    %v1085 = vmul.f32 %v969, %v1053
    %v1086 = vmul.f32 %v970, %v1054
    %v1087 = vmul.f32 %v971, %v1055
    %v1088 = vmul.f32 %v972, %v1056
    %1089 = vst [vmem:[#allocation2] sm:$0xff] %v1057
    %1090 = vst [vmem:[#allocation2 + $0x8] sm:$0xff] %v1058
    %1091 = vst [vmem:[#allocation2 + $0x10] sm:$0xff] %v1059
    %1092 = vst [vmem:[#allocation2 + $0x18] sm:$0xff] %v1060
    %1093 = vst [vmem:[#allocation2 + $0x20] sm:$0xff] %v1061
    %1094 = vst [vmem:[#allocation2 + $0x28] sm:$0xff] %v1062
    %1095 = vst [vmem:[#allocation2 + $0x30] sm:$0xff] %v1063
    %1096 = vst [vmem:[#allocation2 + $0x38] sm:$0xff] %v1064
    %1097 = vst [vmem:[#allocation2 + $0x40] sm:$0xff] %v1065
    %1098 = vst [vmem:[#allocation2 + $0x48] sm:$0xff] %v1066
    %1099 = vst [vmem:[#allocation2 + $0x50] sm:$0xff] %v1067
    %1100 = vst [vmem:[#allocation2 + $0x58] sm:$0xff] %v1068
    %1101 = vst [vmem:[#allocation2 + $0x60] sm:$0xff] %v1069
    %1102 = vst [vmem:[#allocation2 + $0x68] sm:$0xff] %v1070
    %1103 = vst [vmem:[#allocation2 + $0x70] sm:$0xff] %v1071
    %1104 = vst [vmem:[#allocation2 + $0x78] sm:$0xff] %v1072
    %1105 = vst [vmem:[#allocation2 + $0x80] sm:$0xff] %v1073
    %1106 = vst [vmem:[#allocation2 + $0x88] sm:$0xff] %v1074
    %1107 = vst [vmem:[#allocation2 + $0x90] sm:$0xff] %v1075
    %1108 = vst [vmem:[#allocation2 + $0x98] sm:$0xff] %v1076
    %1109 = vst [vmem:[#allocation2 + $0xa0] sm:$0xff] %v1077
    %1110 = vst [vmem:[#allocation2 + $0xa8] sm:$0xff] %v1078
    %1111 = vst [vmem:[#allocation2 + $0xb0] sm:$0xff] %v1079
    %1112 = vst [vmem:[#allocation2 + $0xb8] sm:$0xff] %v1080
    %1113 = vst [vmem:[#allocation2 + $0xc0] sm:$0xff] %v1081
    %1114 = vst [vmem:[#allocation2 + $0xc8] sm:$0xff] %v1082
    %1115 = vst [vmem:[#allocation2 + $0xd0] sm:$0xff] %v1083
    %1116 = vst [vmem:[#allocation2 + $0xd8] sm:$0xff] %v1084
    %1117 = vst [vmem:[#allocation2 + $0xe0] sm:$0xff] %v1085
    %1118 = vst [vmem:[#allocation2 + $0xe8] sm:$0xff] %v1086
    %1119 = vst [vmem:[#allocation2 + $0xf0] sm:$0xff] %v1087
    %1120 = vst [vmem:[#allocation2 + $0xf8] sm:$0xff] %v1088
    %v1123 = vrot.slane %v511, 1
    %v1124 = vrot.slane %v511, 2
    %v1125 = vrot.slane %v511, 3
    %v1126 = vrot.slane %v511, 4
    %v1127 = vrot.slane %v511, 5
    %v1128 = vrot.slane %v511, 6
    %v1129 = vrot.slane %v511, 7
    %v1130 = vrot.slane %v512, 1
    %v1131 = vrot.slane %v512, 2
    %v1132 = vrot.slane %v512, 3
    %v1133 = vrot.slane %v512, 4
    %v1134 = vrot.slane %v512, 5
    %v1135 = vrot.slane %v512, 6
    %v1136 = vrot.slane %v512, 7
    %v1137 = vperm.slane %v442, 0
    %v1138 = vlaneseq
    %v1139 = vshrl.u32 %v1138, 7
    %v1140 = vadd.s32 %v1139, 64
    %1141 = vset.pattern.permute.xlu0 %v1140
    %1142 = vperm.xlu0 %1141, %v1137
    %v1143 = vpop.permute.xlu0 %1142
    %v1144 = vlaneseq
    %v1145 = vshrl.u32 %v1144, 7
    %v1146 = vadd.s32 %v1145, 72
    %1147 = vset.pattern.permute.xlu0 %v1146
    %1148 = vperm.xlu0 %1147, %v1137
    %v1149 = vpop.permute.xlu0 %1148
    %v1150 = vperm.slane %v442, 1
    %v1151 = vlaneseq
    %v1152 = vshrl.u32 %v1151, 7
    %v1153 = vadd.s32 %v1152, 64
    %1154 = vset.pattern.permute.xlu0 %v1153
    %1155 = vperm.xlu0 %1154, %v1150
    %v1156 = vpop.permute.xlu0 %1155
    %v1157 = vlaneseq
    %v1158 = vshrl.u32 %v1157, 7
    %v1159 = vadd.s32 %v1158, 72
    %1160 = vset.pattern.permute.xlu0 %v1159
    %1161 = vperm.xlu0 %1160, %v1150
    %v1162 = vpop.permute.xlu0 %1161
    %v1163 = vperm.slane %v442, 2
    %v1164 = vlaneseq
    %v1165 = vshrl.u32 %v1164, 7
    %v1166 = vadd.s32 %v1165, 64
    %1167 = vset.pattern.permute.xlu0 %v1166
    %1168 = vperm.xlu0 %1167, %v1163
    %v1169 = vpop.permute.xlu0 %1168
    %v1170 = vlaneseq
    %v1171 = vshrl.u32 %v1170, 7
    %v1172 = vadd.s32 %v1171, 72
    %1173 = vset.pattern.permute.xlu0 %v1172
    %1174 = vperm.xlu0 %1173, %v1163
    %v1175 = vpop.permute.xlu0 %1174
    %v1176 = vperm.slane %v442, 3
    %v1177 = vlaneseq
    %v1178 = vshrl.u32 %v1177, 7
    %v1179 = vadd.s32 %v1178, 64
    %1180 = vset.pattern.permute.xlu0 %v1179
    %1181 = vperm.xlu0 %1180, %v1176
    %v1182 = vpop.permute.xlu0 %1181
    %v1183 = vlaneseq
    %v1184 = vshrl.u32 %v1183, 7
    %v1185 = vadd.s32 %v1184, 72
    %1186 = vset.pattern.permute.xlu0 %v1185
    %1187 = vperm.xlu0 %1186, %v1176
    %v1188 = vpop.permute.xlu0 %1187
    %v1189 = vperm.slane %v442, 4
    %v1190 = vlaneseq
    %v1191 = vshrl.u32 %v1190, 7
    %v1192 = vadd.s32 %v1191, 64
    %1193 = vset.pattern.permute.xlu0 %v1192
    %1194 = vperm.xlu0 %1193, %v1189
    %v1195 = vpop.permute.xlu0 %1194
    %v1196 = vlaneseq
    %v1197 = vshrl.u32 %v1196, 7
    %v1198 = vadd.s32 %v1197, 72
    %1199 = vset.pattern.permute.xlu0 %v1198
    %1200 = vperm.xlu0 %1199, %v1189
    %v1201 = vpop.permute.xlu0 %1200
    %v1202 = vperm.slane %v442, 5
    %v1203 = vlaneseq
    %v1204 = vshrl.u32 %v1203, 7
    %v1205 = vadd.s32 %v1204, 64
    %1206 = vset.pattern.permute.xlu0 %v1205
    %1207 = vperm.xlu0 %1206, %v1202
    %v1208 = vpop.permute.xlu0 %1207
    %v1209 = vlaneseq
    %v1210 = vshrl.u32 %v1209, 7
    %v1211 = vadd.s32 %v1210, 72
    %1212 = vset.pattern.permute.xlu0 %v1211
    %1213 = vperm.xlu0 %1212, %v1202
    %v1214 = vpop.permute.xlu0 %1213
    %v1215 = vperm.slane %v442, 6
    %v1216 = vlaneseq
    %v1217 = vshrl.u32 %v1216, 7
    %v1218 = vadd.s32 %v1217, 64
    %1219 = vset.pattern.permute.xlu0 %v1218
    %1220 = vperm.xlu0 %1219, %v1215
    %v1221 = vpop.permute.xlu0 %1220
    %v1222 = vlaneseq
    %v1223 = vshrl.u32 %v1222, 7
    %v1224 = vadd.s32 %v1223, 72
    %1225 = vset.pattern.permute.xlu0 %v1224
    %1226 = vperm.xlu0 %1225, %v1215
    %v1227 = vpop.permute.xlu0 %1226
    %v1228 = vperm.slane %v442, 7
    %v1229 = vlaneseq
    %v1230 = vshrl.u32 %v1229, 7
    %v1231 = vadd.s32 %v1230, 64
    %1232 = vset.pattern.permute.xlu0 %v1231
    %1233 = vperm.xlu0 %1232, %v1228
    %v1234 = vpop.permute.xlu0 %1233
    %v1235 = vlaneseq
    %v1236 = vshrl.u32 %v1235, 7
    %v1237 = vadd.s32 %v1236, 72
    %1238 = vset.pattern.permute.xlu0 %v1237
    %1239 = vperm.xlu0 %1238, %v1228
    %v1240 = vpop.permute.xlu0 %1239
    %v1241 = vperm.slane %v444, 0
    %v1242 = vlaneseq
    %v1243 = vshrl.u32 %v1242, 7
    %v1244 = vadd.s32 %v1243, 64
    %1245 = vset.pattern.permute.xlu0 %v1244
    %1246 = vperm.xlu0 %1245, %v1241
    %v1247 = vpop.permute.xlu0 %1246
    %v1248 = vlaneseq
    %v1249 = vshrl.u32 %v1248, 7
    %v1250 = vadd.s32 %v1249, 72
    %1251 = vset.pattern.permute.xlu0 %v1250
    %1252 = vperm.xlu0 %1251, %v1241
    %v1253 = vpop.permute.xlu0 %1252
    %v1254 = vperm.slane %v444, 1
    %v1255 = vlaneseq
    %v1256 = vshrl.u32 %v1255, 7
    %v1257 = vadd.s32 %v1256, 64
    %1258 = vset.pattern.permute.xlu0 %v1257
    %1259 = vperm.xlu0 %1258, %v1254
    %v1260 = vpop.permute.xlu0 %1259
    %v1261 = vlaneseq
    %v1262 = vshrl.u32 %v1261, 7
    %v1263 = vadd.s32 %v1262, 72
    %1264 = vset.pattern.permute.xlu0 %v1263
    %1265 = vperm.xlu0 %1264, %v1254
    %v1266 = vpop.permute.xlu0 %1265
    %v1267 = vperm.slane %v444, 2
    %v1268 = vlaneseq
    %v1269 = vshrl.u32 %v1268, 7
    %v1270 = vadd.s32 %v1269, 64
    %1271 = vset.pattern.permute.xlu0 %v1270
    %1272 = vperm.xlu0 %1271, %v1267
    %v1273 = vpop.permute.xlu0 %1272
    %v1274 = vlaneseq
    %v1275 = vshrl.u32 %v1274, 7
    %v1276 = vadd.s32 %v1275, 72
    %1277 = vset.pattern.permute.xlu0 %v1276
    %1278 = vperm.xlu0 %1277, %v1267
    %v1279 = vpop.permute.xlu0 %1278
    %v1280 = vperm.slane %v444, 3
    %v1281 = vlaneseq
    %v1282 = vshrl.u32 %v1281, 7
    %v1283 = vadd.s32 %v1282, 64
    %1284 = vset.pattern.permute.xlu0 %v1283
    %1285 = vperm.xlu0 %1284, %v1280
    %v1286 = vpop.permute.xlu0 %1285
    %v1287 = vlaneseq
    %v1288 = vshrl.u32 %v1287, 7
    %v1289 = vadd.s32 %v1288, 72
    %1290 = vset.pattern.permute.xlu0 %v1289
    %1291 = vperm.xlu0 %1290, %v1280
    %v1292 = vpop.permute.xlu0 %1291
    %v1293 = vperm.slane %v444, 4
    %v1294 = vlaneseq
    %v1295 = vshrl.u32 %v1294, 7
    %v1296 = vadd.s32 %v1295, 64
    %1297 = vset.pattern.permute.xlu0 %v1296
    %1298 = vperm.xlu0 %1297, %v1293
    %v1299 = vpop.permute.xlu0 %1298
    %v1300 = vlaneseq
    %v1301 = vshrl.u32 %v1300, 7
    %v1302 = vadd.s32 %v1301, 72
    %1303 = vset.pattern.permute.xlu0 %v1302
    %1304 = vperm.xlu0 %1303, %v1293
    %v1305 = vpop.permute.xlu0 %1304
    %v1306 = vperm.slane %v444, 5
    %v1307 = vlaneseq
    %v1308 = vshrl.u32 %v1307, 7
    %v1309 = vadd.s32 %v1308, 64
    %1310 = vset.pattern.permute.xlu0 %v1309
    %1311 = vperm.xlu0 %1310, %v1306
    %v1312 = vpop.permute.xlu0 %1311
    %v1313 = vlaneseq
    %v1314 = vshrl.u32 %v1313, 7
    %v1315 = vadd.s32 %v1314, 72
    %1316 = vset.pattern.permute.xlu0 %v1315
    %1317 = vperm.xlu0 %1316, %v1306
    %v1318 = vpop.permute.xlu0 %1317
    %v1319 = vperm.slane %v444, 6
    %v1320 = vlaneseq
    %v1321 = vshrl.u32 %v1320, 7
    %v1322 = vadd.s32 %v1321, 64
    %1323 = vset.pattern.permute.xlu0 %v1322
    %1324 = vperm.xlu0 %1323, %v1319
    %v1325 = vpop.permute.xlu0 %1324
    %v1326 = vlaneseq
    %v1327 = vshrl.u32 %v1326, 7
    %v1328 = vadd.s32 %v1327, 72
    %1329 = vset.pattern.permute.xlu0 %v1328
    %1330 = vperm.xlu0 %1329, %v1319
    %v1331 = vpop.permute.xlu0 %1330
    %v1332 = vperm.slane %v444, 7
    %v1333 = vlaneseq
    %v1334 = vshrl.u32 %v1333, 7
    %v1335 = vadd.s32 %v1334, 64
    %1336 = vset.pattern.permute.xlu0 %v1335
    %1337 = vperm.xlu0 %1336, %v1332
    %v1338 = vpop.permute.xlu0 %1337
    %v1339 = vlaneseq
    %v1340 = vshrl.u32 %v1339, 7
    %v1341 = vadd.s32 %v1340, 72
    %1342 = vset.pattern.permute.xlu0 %v1341
    %1343 = vperm.xlu0 %1342, %v1332
    %v1344 = vpop.permute.xlu0 %1343
    %v1345 = vperm.slane %v511, 0
    %v1346 = vperm.slane %v1123, 0
    %v1347 = vperm.slane %v1124, 0
    %v1348 = vperm.slane %v1125, 0
    %v1349 = vperm.slane %v1126, 0
    %v1350 = vperm.slane %v1127, 0
    %v1351 = vperm.slane %v1128, 0
    %v1352 = vperm.slane %v1129, 0
    %v1353 = vperm.slane %v512, 0
    %v1354 = vperm.slane %v1130, 0
    %v1355 = vperm.slane %v1131, 0
    %v1356 = vperm.slane %v1132, 0
    %v1357 = vperm.slane %v1133, 0
    %v1358 = vperm.slane %v1134, 0
    %v1359 = vperm.slane %v1135, 0
    %v1360 = vperm.slane %v1136, 0
    %v1377 = vmul.f32 %v1345, %v1143
    %v1378 = vmul.f32 %v1345, %v1149
    %v1379 = vmul.f32 %v1346, %v1156
    %v1380 = vmul.f32 %v1346, %v1162
    %v1381 = vmul.f32 %v1347, %v1169
    %v1382 = vmul.f32 %v1347, %v1175
    %v1383 = vmul.f32 %v1348, %v1182
    %v1384 = vmul.f32 %v1348, %v1188
    %v1385 = vmul.f32 %v1349, %v1195
    %v1386 = vmul.f32 %v1349, %v1201
    %v1387 = vmul.f32 %v1350, %v1208
    %v1388 = vmul.f32 %v1350, %v1214
    %v1389 = vmul.f32 %v1351, %v1221
    %v1390 = vmul.f32 %v1351, %v1227
    %v1391 = vmul.f32 %v1352, %v1234
    %v1392 = vmul.f32 %v1352, %v1240
    %v1393 = vmul.f32 %v1353, %v1247
    %v1394 = vmul.f32 %v1353, %v1253
    %v1395 = vmul.f32 %v1354, %v1260
    %v1396 = vmul.f32 %v1354, %v1266
    %v1397 = vmul.f32 %v1355, %v1273
    %v1398 = vmul.f32 %v1355, %v1279
    %v1399 = vmul.f32 %v1356, %v1286
    %v1400 = vmul.f32 %v1356, %v1292
    %v1401 = vmul.f32 %v1357, %v1299
    %v1402 = vmul.f32 %v1357, %v1305
    %v1403 = vmul.f32 %v1358, %v1312
    %v1404 = vmul.f32 %v1358, %v1318
    %v1405 = vmul.f32 %v1359, %v1325
    %v1406 = vmul.f32 %v1359, %v1331
    %v1407 = vmul.f32 %v1360, %v1338
    %v1408 = vmul.f32 %v1360, %v1344
    %v1411 = vrot.slane %v513, 1
    %v1412 = vrot.slane %v513, 2
    %v1413 = vrot.slane %v513, 3
    %v1414 = vrot.slane %v513, 4
    %v1415 = vrot.slane %v513, 5
    %v1416 = vrot.slane %v513, 6
    %v1417 = vrot.slane %v513, 7
    %v1418 = vrot.slane %v514, 1
    %v1419 = vrot.slane %v514, 2
    %v1420 = vrot.slane %v514, 3
    %v1421 = vrot.slane %v514, 4
    %v1422 = vrot.slane %v514, 5
    %v1423 = vrot.slane %v514, 6
    %v1424 = vrot.slane %v514, 7
    %v1425 = vperm.slane %v447, 0
    %v1426 = vlaneseq
    %v1427 = vshrl.u32 %v1426, 7
    %v1428 = vadd.s32 %v1427, 64
    %1429 = vset.pattern.permute.xlu0 %v1428
    %1430 = vperm.xlu0 %1429, %v1425
    %v1431 = vpop.permute.xlu0 %1430
    %v1432 = vlaneseq
    %v1433 = vshrl.u32 %v1432, 7
    %v1434 = vadd.s32 %v1433, 72
    %1435 = vset.pattern.permute.xlu0 %v1434
    %1436 = vperm.xlu0 %1435, %v1425
    %v1437 = vpop.permute.xlu0 %1436
    %v1438 = vperm.slane %v447, 1
    %v1439 = vlaneseq
    %v1440 = vshrl.u32 %v1439, 7
    %v1441 = vadd.s32 %v1440, 64
    %1442 = vset.pattern.permute.xlu0 %v1441
    %1443 = vperm.xlu0 %1442, %v1438
    %v1444 = vpop.permute.xlu0 %1443
    %v1445 = vlaneseq
    %v1446 = vshrl.u32 %v1445, 7
    %v1447 = vadd.s32 %v1446, 72
    %1448 = vset.pattern.permute.xlu0 %v1447
    %1449 = vperm.xlu0 %1448, %v1438
    %v1450 = vpop.permute.xlu0 %1449
    %v1451 = vperm.slane %v447, 2
    %v1452 = vlaneseq
    %v1453 = vshrl.u32 %v1452, 7
    %v1454 = vadd.s32 %v1453, 64
    %1455 = vset.pattern.permute.xlu0 %v1454
    %1456 = vperm.xlu0 %1455, %v1451
    %v1457 = vpop.permute.xlu0 %1456
    %v1458 = vlaneseq
    %v1459 = vshrl.u32 %v1458, 7
    %v1460 = vadd.s32 %v1459, 72
    %1461 = vset.pattern.permute.xlu0 %v1460
    %1462 = vperm.xlu0 %1461, %v1451
    %v1463 = vpop.permute.xlu0 %1462
    %v1464 = vperm.slane %v447, 3
    %v1465 = vlaneseq
    %v1466 = vshrl.u32 %v1465, 7
    %v1467 = vadd.s32 %v1466, 64
    %1468 = vset.pattern.permute.xlu0 %v1467
    %1469 = vperm.xlu0 %1468, %v1464
    %v1470 = vpop.permute.xlu0 %1469
    %v1471 = vlaneseq
    %v1472 = vshrl.u32 %v1471, 7
    %v1473 = vadd.s32 %v1472, 72
    %1474 = vset.pattern.permute.xlu0 %v1473
    %1475 = vperm.xlu0 %1474, %v1464
    %v1476 = vpop.permute.xlu0 %1475
    %v1477 = vperm.slane %v447, 4
    %v1478 = vlaneseq
    %v1479 = vshrl.u32 %v1478, 7
    %v1480 = vadd.s32 %v1479, 64
    %1481 = vset.pattern.permute.xlu0 %v1480
    %1482 = vperm.xlu0 %1481, %v1477
    %v1483 = vpop.permute.xlu0 %1482
    %v1484 = vlaneseq
    %v1485 = vshrl.u32 %v1484, 7
    %v1486 = vadd.s32 %v1485, 72
    %1487 = vset.pattern.permute.xlu0 %v1486
    %1488 = vperm.xlu0 %1487, %v1477
    %v1489 = vpop.permute.xlu0 %1488
    %v1490 = vperm.slane %v447, 5
    %v1491 = vlaneseq
    %v1492 = vshrl.u32 %v1491, 7
    %v1493 = vadd.s32 %v1492, 64
    %1494 = vset.pattern.permute.xlu0 %v1493
    %1495 = vperm.xlu0 %1494, %v1490
    %v1496 = vpop.permute.xlu0 %1495
    %v1497 = vlaneseq
    %v1498 = vshrl.u32 %v1497, 7
    %v1499 = vadd.s32 %v1498, 72
    %1500 = vset.pattern.permute.xlu0 %v1499
    %1501 = vperm.xlu0 %1500, %v1490
    %v1502 = vpop.permute.xlu0 %1501
    %v1503 = vperm.slane %v447, 6
    %v1504 = vlaneseq
    %v1505 = vshrl.u32 %v1504, 7
    %v1506 = vadd.s32 %v1505, 64
    %1507 = vset.pattern.permute.xlu0 %v1506
    %1508 = vperm.xlu0 %1507, %v1503
    %v1509 = vpop.permute.xlu0 %1508
    %v1510 = vlaneseq
    %v1511 = vshrl.u32 %v1510, 7
    %v1512 = vadd.s32 %v1511, 72
    %1513 = vset.pattern.permute.xlu0 %v1512
    %1514 = vperm.xlu0 %1513, %v1503
    %v1515 = vpop.permute.xlu0 %1514
    %v1516 = vperm.slane %v447, 7
    %v1517 = vlaneseq
    %v1518 = vshrl.u32 %v1517, 7
    %v1519 = vadd.s32 %v1518, 64
    %1520 = vset.pattern.permute.xlu0 %v1519
    %1521 = vperm.xlu0 %1520, %v1516
    %v1522 = vpop.permute.xlu0 %1521
    %v1523 = vlaneseq
    %v1524 = vshrl.u32 %v1523, 7
    %v1525 = vadd.s32 %v1524, 72
    %1526 = vset.pattern.permute.xlu0 %v1525
    %1527 = vperm.xlu0 %1526, %v1516
    %v1528 = vpop.permute.xlu0 %1527
    %v1529 = vperm.slane %v449, 0
    %v1530 = vlaneseq
    %v1531 = vshrl.u32 %v1530, 7
    %v1532 = vadd.s32 %v1531, 64
    %1533 = vset.pattern.permute.xlu0 %v1532
    %1534 = vperm.xlu0 %1533, %v1529
    %v1535 = vpop.permute.xlu0 %1534
    %v1536 = vlaneseq
    %v1537 = vshrl.u32 %v1536, 7
    %v1538 = vadd.s32 %v1537, 72
    %1539 = vset.pattern.permute.xlu0 %v1538
    %1540 = vperm.xlu0 %1539, %v1529
    %v1541 = vpop.permute.xlu0 %1540
    %v1542 = vperm.slane %v449, 1
    %v1543 = vlaneseq
    %v1544 = vshrl.u32 %v1543, 7
    %v1545 = vadd.s32 %v1544, 64
    %1546 = vset.pattern.permute.xlu0 %v1545
    %1547 = vperm.xlu0 %1546, %v1542
    %v1548 = vpop.permute.xlu0 %1547
    %v1549 = vlaneseq
    %v1550 = vshrl.u32 %v1549, 7
    %v1551 = vadd.s32 %v1550, 72
    %1552 = vset.pattern.permute.xlu0 %v1551
    %1553 = vperm.xlu0 %1552, %v1542
    %v1554 = vpop.permute.xlu0 %1553
    %v1555 = vperm.slane %v449, 2
    %v1556 = vlaneseq
    %v1557 = vshrl.u32 %v1556, 7
    %v1558 = vadd.s32 %v1557, 64
    %1559 = vset.pattern.permute.xlu0 %v1558
    %1560 = vperm.xlu0 %1559, %v1555
    %v1561 = vpop.permute.xlu0 %1560
    %v1562 = vlaneseq
    %v1563 = vshrl.u32 %v1562, 7
    %v1564 = vadd.s32 %v1563, 72
    %1565 = vset.pattern.permute.xlu0 %v1564
    %1566 = vperm.xlu0 %1565, %v1555
    %v1567 = vpop.permute.xlu0 %1566
    %v1568 = vperm.slane %v449, 3
    %v1569 = vlaneseq
    %v1570 = vshrl.u32 %v1569, 7
    %v1571 = vadd.s32 %v1570, 64
    %1572 = vset.pattern.permute.xlu0 %v1571
    %1573 = vperm.xlu0 %1572, %v1568
    %v1574 = vpop.permute.xlu0 %1573
    %v1575 = vlaneseq
    %v1576 = vshrl.u32 %v1575, 7
    %v1577 = vadd.s32 %v1576, 72
    %1578 = vset.pattern.permute.xlu0 %v1577
    %1579 = vperm.xlu0 %1578, %v1568
    %v1580 = vpop.permute.xlu0 %1579
    %v1581 = vperm.slane %v449, 4
    %v1582 = vlaneseq
    %v1583 = vshrl.u32 %v1582, 7
    %v1584 = vadd.s32 %v1583, 64
    %1585 = vset.pattern.permute.xlu0 %v1584
    %1586 = vperm.xlu0 %1585, %v1581
    %v1587 = vpop.permute.xlu0 %1586
    %v1588 = vlaneseq
    %v1589 = vshrl.u32 %v1588, 7
    %v1590 = vadd.s32 %v1589, 72
    %1591 = vset.pattern.permute.xlu0 %v1590
    %1592 = vperm.xlu0 %1591, %v1581
    %v1593 = vpop.permute.xlu0 %1592
    %v1594 = vperm.slane %v449, 5
    %v1595 = vlaneseq
    %v1596 = vshrl.u32 %v1595, 7
    %v1597 = vadd.s32 %v1596, 64
    %1598 = vset.pattern.permute.xlu0 %v1597
    %1599 = vperm.xlu0 %1598, %v1594
    %v1600 = vpop.permute.xlu0 %1599
    %v1601 = vlaneseq
    %v1602 = vshrl.u32 %v1601, 7
    %v1603 = vadd.s32 %v1602, 72
    %1604 = vset.pattern.permute.xlu0 %v1603
    %1605 = vperm.xlu0 %1604, %v1594
    %v1606 = vpop.permute.xlu0 %1605
    %v1607 = vperm.slane %v449, 6
    %v1608 = vlaneseq
    %v1609 = vshrl.u32 %v1608, 7
    %v1610 = vadd.s32 %v1609, 64
    %1611 = vset.pattern.permute.xlu0 %v1610
    %1612 = vperm.xlu0 %1611, %v1607
    %v1613 = vpop.permute.xlu0 %1612
    %v1614 = vlaneseq
    %v1615 = vshrl.u32 %v1614, 7
    %v1616 = vadd.s32 %v1615, 72
    %1617 = vset.pattern.permute.xlu0 %v1616
    %1618 = vperm.xlu0 %1617, %v1607
    %v1619 = vpop.permute.xlu0 %1618
    %v1620 = vperm.slane %v449, 7
    %v1621 = vlaneseq
    %v1622 = vshrl.u32 %v1621, 7
    %v1623 = vadd.s32 %v1622, 64
    %1624 = vset.pattern.permute.xlu0 %v1623
    %1625 = vperm.xlu0 %1624, %v1620
    %v1626 = vpop.permute.xlu0 %1625
    %v1627 = vlaneseq
    %v1628 = vshrl.u32 %v1627, 7
    %v1629 = vadd.s32 %v1628, 72
    %1630 = vset.pattern.permute.xlu0 %v1629
    %1631 = vperm.xlu0 %1630, %v1620
    %v1632 = vpop.permute.xlu0 %1631
    %v1633 = vperm.slane %v513, 0
    %v1634 = vperm.slane %v1411, 0
    %v1635 = vperm.slane %v1412, 0
    %v1636 = vperm.slane %v1413, 0
    %v1637 = vperm.slane %v1414, 0
    %v1638 = vperm.slane %v1415, 0
    %v1639 = vperm.slane %v1416, 0
    %v1640 = vperm.slane %v1417, 0
    %v1641 = vperm.slane %v514, 0
    %v1642 = vperm.slane %v1418, 0
    %v1643 = vperm.slane %v1419, 0
    %v1644 = vperm.slane %v1420, 0
    %v1645 = vperm.slane %v1421, 0
    %v1646 = vperm.slane %v1422, 0
    %v1647 = vperm.slane %v1423, 0
    %v1648 = vperm.slane %v1424, 0
    %v1665 = vmul.f32 %v1633, %v1431
    %v1666 = vmul.f32 %v1633, %v1437
    %v1667 = vmul.f32 %v1634, %v1444
    %v1668 = vmul.f32 %v1634, %v1450
    %v1669 = vmul.f32 %v1635, %v1457
    %v1670 = vmul.f32 %v1635, %v1463
    %v1671 = vmul.f32 %v1636, %v1470
    %v1672 = vmul.f32 %v1636, %v1476
    %v1673 = vmul.f32 %v1637, %v1483
    %v1674 = vmul.f32 %v1637, %v1489
    %v1675 = vmul.f32 %v1638, %v1496
    %v1676 = vmul.f32 %v1638, %v1502
    %v1677 = vmul.f32 %v1639, %v1509
    %v1678 = vmul.f32 %v1639, %v1515
    %v1679 = vmul.f32 %v1640, %v1522
    %v1680 = vmul.f32 %v1640, %v1528
    %v1681 = vmul.f32 %v1641, %v1535
    %v1682 = vmul.f32 %v1641, %v1541
    %v1683 = vmul.f32 %v1642, %v1548
    %v1684 = vmul.f32 %v1642, %v1554
    %v1685 = vmul.f32 %v1643, %v1561
    %v1686 = vmul.f32 %v1643, %v1567
    %v1687 = vmul.f32 %v1644, %v1574
    %v1688 = vmul.f32 %v1644, %v1580
    %v1689 = vmul.f32 %v1645, %v1587
    %v1690 = vmul.f32 %v1645, %v1593
    %v1691 = vmul.f32 %v1646, %v1600
    %v1692 = vmul.f32 %v1646, %v1606
    %v1693 = vmul.f32 %v1647, %v1613
    %v1694 = vmul.f32 %v1647, %v1619
    %v1695 = vmul.f32 %v1648, %v1626
    %v1696 = vmul.f32 %v1648, %v1632
    %1729 = vrot.lane.b32.xlu0 %v1665, 64
    %v1730 = vpop.permute.xlu0 %1729
    %1731 = vrot.lane.b32.xlu0 %v1666, 64
    %v1732 = vpop.permute.xlu0 %1731
    %1733 = vrot.lane.b32.xlu0 %v1667, 64
    %v1734 = vpop.permute.xlu0 %1733
    %1735 = vrot.lane.b32.xlu0 %v1668, 64
    %v1736 = vpop.permute.xlu0 %1735
    %1737 = vrot.lane.b32.xlu0 %v1669, 64
    %v1738 = vpop.permute.xlu0 %1737
    %1739 = vrot.lane.b32.xlu0 %v1670, 64
    %v1740 = vpop.permute.xlu0 %1739
    %1741 = vrot.lane.b32.xlu0 %v1671, 64
    %v1742 = vpop.permute.xlu0 %1741
    %1743 = vrot.lane.b32.xlu0 %v1672, 64
    %v1744 = vpop.permute.xlu0 %1743
    %1745 = vrot.lane.b32.xlu0 %v1673, 64
    %v1746 = vpop.permute.xlu0 %1745
    %1747 = vrot.lane.b32.xlu0 %v1674, 64
    %v1748 = vpop.permute.xlu0 %1747
    %1749 = vrot.lane.b32.xlu0 %v1675, 64
    %v1750 = vpop.permute.xlu0 %1749
    %1751 = vrot.lane.b32.xlu0 %v1676, 64
    %v1752 = vpop.permute.xlu0 %1751
    %1753 = vrot.lane.b32.xlu0 %v1677, 64
    %v1754 = vpop.permute.xlu0 %1753
    %1755 = vrot.lane.b32.xlu0 %v1678, 64
    %v1756 = vpop.permute.xlu0 %1755
    %1757 = vrot.lane.b32.xlu0 %v1679, 64
    %v1758 = vpop.permute.xlu0 %1757
    %1759 = vrot.lane.b32.xlu0 %v1680, 64
    %v1760 = vpop.permute.xlu0 %1759
    %1761 = vrot.lane.b32.xlu0 %v1681, 64
    %v1762 = vpop.permute.xlu0 %1761
    %1763 = vrot.lane.b32.xlu0 %v1682, 64
    %v1764 = vpop.permute.xlu0 %1763
    %1765 = vrot.lane.b32.xlu0 %v1683, 64
    %v1766 = vpop.permute.xlu0 %1765
    %1767 = vrot.lane.b32.xlu0 %v1684, 64
    %v1768 = vpop.permute.xlu0 %1767
    %1769 = vrot.lane.b32.xlu0 %v1685, 64
    %v1770 = vpop.permute.xlu0 %1769
    %1771 = vrot.lane.b32.xlu0 %v1686, 64
    %v1772 = vpop.permute.xlu0 %1771
    %1773 = vrot.lane.b32.xlu0 %v1687, 64
    %v1774 = vpop.permute.xlu0 %1773
    %1775 = vrot.lane.b32.xlu0 %v1688, 64
    %v1776 = vpop.permute.xlu0 %1775
    %1777 = vrot.lane.b32.xlu0 %v1689, 64
    %v1778 = vpop.permute.xlu0 %1777
    %1779 = vrot.lane.b32.xlu0 %v1690, 64
    %v1780 = vpop.permute.xlu0 %1779
    %1781 = vrot.lane.b32.xlu0 %v1691, 64
    %v1782 = vpop.permute.xlu0 %1781
    %1783 = vrot.lane.b32.xlu0 %v1692, 64
    %v1784 = vpop.permute.xlu0 %1783
    %1785 = vrot.lane.b32.xlu0 %v1693, 64
    %v1786 = vpop.permute.xlu0 %1785
    %1787 = vrot.lane.b32.xlu0 %v1694, 64
    %v1788 = vpop.permute.xlu0 %1787
    %1789 = vrot.lane.b32.xlu0 %v1695, 64
    %v1790 = vpop.permute.xlu0 %1789
    %1791 = vrot.lane.b32.xlu0 %v1696, 64
    %v1792 = vpop.permute.xlu0 %1791
    %v1825 = vsel %vm425, %v1377, %v1730
    %v1826 = vsel %vm425, %v1378, %v1732
    %v1827 = vsel %vm425, %v1379, %v1734
    %v1828 = vsel %vm425, %v1380, %v1736
    %v1829 = vsel %vm425, %v1381, %v1738
    %v1830 = vsel %vm425, %v1382, %v1740
    %v1831 = vsel %vm425, %v1383, %v1742
    %v1832 = vsel %vm425, %v1384, %v1744
    %v1833 = vsel %vm425, %v1385, %v1746
    %v1834 = vsel %vm425, %v1386, %v1748
    %v1835 = vsel %vm425, %v1387, %v1750
    %v1836 = vsel %vm425, %v1388, %v1752
    %v1837 = vsel %vm425, %v1389, %v1754
    %v1838 = vsel %vm425, %v1390, %v1756
    %v1839 = vsel %vm425, %v1391, %v1758
    %v1840 = vsel %vm425, %v1392, %v1760
    %v1841 = vsel %vm425, %v1393, %v1762
    %v1842 = vsel %vm425, %v1394, %v1764
    %v1843 = vsel %vm425, %v1395, %v1766
    %v1844 = vsel %vm425, %v1396, %v1768
    %v1845 = vsel %vm425, %v1397, %v1770
    %v1846 = vsel %vm425, %v1398, %v1772
    %v1847 = vsel %vm425, %v1399, %v1774
    %v1848 = vsel %vm425, %v1400, %v1776
    %v1849 = vsel %vm425, %v1401, %v1778
    %v1850 = vsel %vm425, %v1402, %v1780
    %v1851 = vsel %vm425, %v1403, %v1782
    %v1852 = vsel %vm425, %v1404, %v1784
    %v1853 = vsel %vm425, %v1405, %v1786
    %v1854 = vsel %vm425, %v1406, %v1788
    %v1855 = vsel %vm425, %v1407, %v1790
    %v1856 = vsel %vm425, %v1408, %v1792
    %1857 = vst [vmem:[#allocation3] sm:$0xff] %v1825
    %1858 = vst [vmem:[#allocation3 + $0x8] sm:$0xff] %v1826
    %1859 = vst [vmem:[#allocation3 + $0x10] sm:$0xff] %v1827
    %1860 = vst [vmem:[#allocation3 + $0x18] sm:$0xff] %v1828
    %1861 = vst [vmem:[#allocation3 + $0x20] sm:$0xff] %v1829
    %1862 = vst [vmem:[#allocation3 + $0x28] sm:$0xff] %v1830
    %1863 = vst [vmem:[#allocation3 + $0x30] sm:$0xff] %v1831
    %1864 = vst [vmem:[#allocation3 + $0x38] sm:$0xff] %v1832
    %1865 = vst [vmem:[#allocation3 + $0x40] sm:$0xff] %v1833
    %1866 = vst [vmem:[#allocation3 + $0x48] sm:$0xff] %v1834
    %1867 = vst [vmem:[#allocation3 + $0x50] sm:$0xff] %v1835
    %1868 = vst [vmem:[#allocation3 + $0x58] sm:$0xff] %v1836
    %1869 = vst [vmem:[#allocation3 + $0x60] sm:$0xff] %v1837
    %1870 = vst [vmem:[#allocation3 + $0x68] sm:$0xff] %v1838
    %1871 = vst [vmem:[#allocation3 + $0x70] sm:$0xff] %v1839
    %1872 = vst [vmem:[#allocation3 + $0x78] sm:$0xff] %v1840
    %1873 = vst [vmem:[#allocation3 + $0x80] sm:$0xff] %v1841
    %1874 = vst [vmem:[#allocation3 + $0x88] sm:$0xff] %v1842
    %1875 = vst [vmem:[#allocation3 + $0x90] sm:$0xff] %v1843
    %1876 = vst [vmem:[#allocation3 + $0x98] sm:$0xff] %v1844
    %1877 = vst [vmem:[#allocation3 + $0xa0] sm:$0xff] %v1845
    %1878 = vst [vmem:[#allocation3 + $0xa8] sm:$0xff] %v1846
    %1879 = vst [vmem:[#allocation3 + $0xb0] sm:$0xff] %v1847
    %1880 = vst [vmem:[#allocation3 + $0xb8] sm:$0xff] %v1848
    %1881 = vst [vmem:[#allocation3 + $0xc0] sm:$0xff] %v1849
    %1882 = vst [vmem:[#allocation3 + $0xc8] sm:$0xff] %v1850
    %1883 = vst [vmem:[#allocation3 + $0xd0] sm:$0xff] %v1851
    %1884 = vst [vmem:[#allocation3 + $0xd8] sm:$0xff] %v1852
    %1885 = vst [vmem:[#allocation3 + $0xe0] sm:$0xff] %v1853
    %1886 = vst [vmem:[#allocation3 + $0xe8] sm:$0xff] %v1854
    %1887 = vst [vmem:[#allocation3 + $0xf0] sm:$0xff] %v1855
    %1888 = vst [vmem:[#allocation3 + $0xf8] sm:$0xff] %v1856
    %v1889 = vld [vmem:[#allocation3] sm:$0xff]
    %v1890 = vld [vmem:[#allocation3 + $0x8] sm:$0xff]
    %1891 = vst [vmem:[#allocation4] sm:$0xff] %v1889
    %1892 = vst [vmem:[#allocation4 + $0x8] sm:$0xff] %v1890
    %s1893 = scalar_lea.vmem [#allocation2], 16
    %v1894 = vld [vmem:[%s1893] sm:$0xff]
    %v1895 = vld [vmem:[%s1893 + $0x8] sm:$0xff]
    %v1896 = vmul.f32 %v1894, %v1889
    %v1897 = vmul.f32 %v1895, %v1890
    %s1898 = scalar_lea.vmem [#allocation3], 16
    %v1899 = vld [vmem:[%s1898] sm:$0xff]
    %v1900 = vld [vmem:[%s1898 + $0x8] sm:$0xff]
    %v1901 = vadd.f32 %v1896, %v1899
    %v1902 = vadd.f32 %v1897, %v1900
    %s1903 = scalar_lea.vmem [#allocation4], 16
    %1904 = vst [vmem:[%s1903] sm:$0xff] %v1901
    %1905 = vst [vmem:[%s1903 + $0x8] sm:$0xff] %v1902
    %s1906 = scalar_lea.vmem [#allocation2], 32
    %v1907 = vld [vmem:[%s1906] sm:$0xff]
    %v1908 = vld [vmem:[%s1906 + $0x8] sm:$0xff]
    %v1909 = vmul.f32 %v1907, %v1901
    %v1910 = vmul.f32 %v1908, %v1902
    %s1911 = scalar_lea.vmem [#allocation3], 32
    %v1912 = vld [vmem:[%s1911] sm:$0xff]
    %v1913 = vld [vmem:[%s1911 + $0x8] sm:$0xff]
    %v1914 = vadd.f32 %v1909, %v1912
    %v1915 = vadd.f32 %v1910, %v1913
    %s1916 = scalar_lea.vmem [#allocation4], 32
    %1917 = vst [vmem:[%s1916] sm:$0xff] %v1914
    %1918 = vst [vmem:[%s1916 + $0x8] sm:$0xff] %v1915
    %s1919 = scalar_lea.vmem [#allocation2], 48
    %v1920 = vld [vmem:[%s1919] sm:$0xff]
    %v1921 = vld [vmem:[%s1919 + $0x8] sm:$0xff]
    %v1922 = vmul.f32 %v1920, %v1914
    %v1923 = vmul.f32 %v1921, %v1915
    %s1924 = scalar_lea.vmem [#allocation3], 48
    %v1925 = vld [vmem:[%s1924] sm:$0xff]
    %v1926 = vld [vmem:[%s1924 + $0x8] sm:$0xff]
    %v1927 = vadd.f32 %v1922, %v1925
    %v1928 = vadd.f32 %v1923, %v1926
    %s1929 = scalar_lea.vmem [#allocation4], 48
    %1930 = vst [vmem:[%s1929] sm:$0xff] %v1927
    %1931 = vst [vmem:[%s1929 + $0x8] sm:$0xff] %v1928
    %s1932 = scalar_lea.vmem [#allocation2], 64
    %v1933 = vld [vmem:[%s1932] sm:$0xff]
    %v1934 = vld [vmem:[%s1932 + $0x8] sm:$0xff]
    %v1935 = vmul.f32 %v1933, %v1927
    %v1936 = vmul.f32 %v1934, %v1928
    %s1937 = scalar_lea.vmem [#allocation3], 64
    %v1938 = vld [vmem:[%s1937] sm:$0xff]
    %v1939 = vld [vmem:[%s1937 + $0x8] sm:$0xff]
    %v1940 = vadd.f32 %v1935, %v1938
    %v1941 = vadd.f32 %v1936, %v1939
    %s1942 = scalar_lea.vmem [#allocation4], 64
    %1943 = vst [vmem:[%s1942] sm:$0xff] %v1940
    %1944 = vst [vmem:[%s1942 + $0x8] sm:$0xff] %v1941
    %s1945 = scalar_lea.vmem [#allocation2], 80
    %v1946 = vld [vmem:[%s1945] sm:$0xff]
    %v1947 = vld [vmem:[%s1945 + $0x8] sm:$0xff]
    %v1948 = vmul.f32 %v1946, %v1940
    %v1949 = vmul.f32 %v1947, %v1941
    %s1950 = scalar_lea.vmem [#allocation3], 80
    %v1951 = vld [vmem:[%s1950] sm:$0xff]
    %v1952 = vld [vmem:[%s1950 + $0x8] sm:$0xff]
    %v1953 = vadd.f32 %v1948, %v1951
    %v1954 = vadd.f32 %v1949, %v1952
    %s1955 = scalar_lea.vmem [#allocation4], 80
    %1956 = vst [vmem:[%s1955] sm:$0xff] %v1953
    %1957 = vst [vmem:[%s1955 + $0x8] sm:$0xff] %v1954
    %s1958 = scalar_lea.vmem [#allocation2], 96
    %v1959 = vld [vmem:[%s1958] sm:$0xff]
    %v1960 = vld [vmem:[%s1958 + $0x8] sm:$0xff]
    %v1961 = vmul.f32 %v1959, %v1953
    %v1962 = vmul.f32 %v1960, %v1954
    %s1963 = scalar_lea.vmem [#allocation3], 96
    %v1964 = vld [vmem:[%s1963] sm:$0xff]
    %v1965 = vld [vmem:[%s1963 + $0x8] sm:$0xff]
    %v1966 = vadd.f32 %v1961, %v1964
    %v1967 = vadd.f32 %v1962, %v1965
    %s1968 = scalar_lea.vmem [#allocation4], 96
    %1969 = vst [vmem:[%s1968] sm:$0xff] %v1966
    %1970 = vst [vmem:[%s1968 + $0x8] sm:$0xff] %v1967
    %s1971 = scalar_lea.vmem [#allocation2], 112
    %v1972 = vld [vmem:[%s1971] sm:$0xff]
    %v1973 = vld [vmem:[%s1971 + $0x8] sm:$0xff]
    %v1974 = vmul.f32 %v1972, %v1966
    %v1975 = vmul.f32 %v1973, %v1967
    %s1976 = scalar_lea.vmem [#allocation3], 112
    %v1977 = vld [vmem:[%s1976] sm:$0xff]
    %v1978 = vld [vmem:[%s1976 + $0x8] sm:$0xff]
    %v1979 = vadd.f32 %v1974, %v1977
    %v1980 = vadd.f32 %v1975, %v1978
    %s1981 = scalar_lea.vmem [#allocation4], 112
    %1982 = vst [vmem:[%s1981] sm:$0xff] %v1979
    %1983 = vst [vmem:[%s1981 + $0x8] sm:$0xff] %v1980
    %s1984 = scalar_lea.vmem [#allocation2], 128
    %v1985 = vld [vmem:[%s1984] sm:$0xff]
    %v1986 = vld [vmem:[%s1984 + $0x8] sm:$0xff]
    %v1987 = vmul.f32 %v1985, %v1979
    %v1988 = vmul.f32 %v1986, %v1980
    %s1989 = scalar_lea.vmem [#allocation3], 128
    %v1990 = vld [vmem:[%s1989] sm:$0xff]
    %v1991 = vld [vmem:[%s1989 + $0x8] sm:$0xff]
    %v1992 = vadd.f32 %v1987, %v1990
    %v1993 = vadd.f32 %v1988, %v1991
    %s1994 = scalar_lea.vmem [#allocation4], 128
    %1995 = vst [vmem:[%s1994] sm:$0xff] %v1992
    %1996 = vst [vmem:[%s1994 + $0x8] sm:$0xff] %v1993
    %s1997 = scalar_lea.vmem [#allocation2], 144
    %v1998 = vld [vmem:[%s1997] sm:$0xff]
    %v1999 = vld [vmem:[%s1997 + $0x8] sm:$0xff]
    %v2000 = vmul.f32 %v1998, %v1992
    %v2001 = vmul.f32 %v1999, %v1993
    %s2002 = scalar_lea.vmem [#allocation3], 144
    %v2003 = vld [vmem:[%s2002] sm:$0xff]
    %v2004 = vld [vmem:[%s2002 + $0x8] sm:$0xff]
    %v2005 = vadd.f32 %v2000, %v2003
    %v2006 = vadd.f32 %v2001, %v2004
    %s2007 = scalar_lea.vmem [#allocation4], 144
    %2008 = vst [vmem:[%s2007] sm:$0xff] %v2005
    %2009 = vst [vmem:[%s2007 + $0x8] sm:$0xff] %v2006
    %s2010 = scalar_lea.vmem [#allocation2], 160
    %v2011 = vld [vmem:[%s2010] sm:$0xff]
    %v2012 = vld [vmem:[%s2010 + $0x8] sm:$0xff]
    %v2013 = vmul.f32 %v2011, %v2005
    %v2014 = vmul.f32 %v2012, %v2006
    %s2015 = scalar_lea.vmem [#allocation3], 160
    %v2016 = vld [vmem:[%s2015] sm:$0xff]
    %v2017 = vld [vmem:[%s2015 + $0x8] sm:$0xff]
    %v2018 = vadd.f32 %v2013, %v2016
    %v2019 = vadd.f32 %v2014, %v2017
    %s2020 = scalar_lea.vmem [#allocation4], 160
    %2021 = vst [vmem:[%s2020] sm:$0xff] %v2018
    %2022 = vst [vmem:[%s2020 + $0x8] sm:$0xff] %v2019
    %s2023 = scalar_lea.vmem [#allocation2], 176
    %v2024 = vld [vmem:[%s2023] sm:$0xff]
    %v2025 = vld [vmem:[%s2023 + $0x8] sm:$0xff]
    %v2026 = vmul.f32 %v2024, %v2018
    %v2027 = vmul.f32 %v2025, %v2019
    %s2028 = scalar_lea.vmem [#allocation3], 176
    %v2029 = vld [vmem:[%s2028] sm:$0xff]
    %v2030 = vld [vmem:[%s2028 + $0x8] sm:$0xff]
    %v2031 = vadd.f32 %v2026, %v2029
    %v2032 = vadd.f32 %v2027, %v2030
    %s2033 = scalar_lea.vmem [#allocation4], 176
    %2034 = vst [vmem:[%s2033] sm:$0xff] %v2031
    %2035 = vst [vmem:[%s2033 + $0x8] sm:$0xff] %v2032
    %s2036 = scalar_lea.vmem [#allocation2], 192
    %v2037 = vld [vmem:[%s2036] sm:$0xff]
    %v2038 = vld [vmem:[%s2036 + $0x8] sm:$0xff]
    %v2039 = vmul.f32 %v2037, %v2031
    %v2040 = vmul.f32 %v2038, %v2032
    %s2041 = scalar_lea.vmem [#allocation3], 192
    %v2042 = vld [vmem:[%s2041] sm:$0xff]
    %v2043 = vld [vmem:[%s2041 + $0x8] sm:$0xff]
    %v2044 = vadd.f32 %v2039, %v2042
    %v2045 = vadd.f32 %v2040, %v2043
    %s2046 = scalar_lea.vmem [#allocation4], 192
    %2047 = vst [vmem:[%s2046] sm:$0xff] %v2044
    %2048 = vst [vmem:[%s2046 + $0x8] sm:$0xff] %v2045
    %s2049 = scalar_lea.vmem [#allocation2], 208
    %v2050 = vld [vmem:[%s2049] sm:$0xff]
    %v2051 = vld [vmem:[%s2049 + $0x8] sm:$0xff]
    %v2052 = vmul.f32 %v2050, %v2044
    %v2053 = vmul.f32 %v2051, %v2045
    %s2054 = scalar_lea.vmem [#allocation3], 208
    %v2055 = vld [vmem:[%s2054] sm:$0xff]
    %v2056 = vld [vmem:[%s2054 + $0x8] sm:$0xff]
    %v2057 = vadd.f32 %v2052, %v2055
    %v2058 = vadd.f32 %v2053, %v2056
    %s2059 = scalar_lea.vmem [#allocation4], 208
    %2060 = vst [vmem:[%s2059] sm:$0xff] %v2057
    %2061 = vst [vmem:[%s2059 + $0x8] sm:$0xff] %v2058
    %s2062 = scalar_lea.vmem [#allocation2], 224
    %v2063 = vld [vmem:[%s2062] sm:$0xff]
    %v2064 = vld [vmem:[%s2062 + $0x8] sm:$0xff]
    %v2065 = vmul.f32 %v2063, %v2057
    %v2066 = vmul.f32 %v2064, %v2058
    %s2067 = scalar_lea.vmem [#allocation3], 224
    %v2068 = vld [vmem:[%s2067] sm:$0xff]
    %v2069 = vld [vmem:[%s2067 + $0x8] sm:$0xff]
    %v2070 = vadd.f32 %v2065, %v2068
    %v2071 = vadd.f32 %v2066, %v2069
    %s2072 = scalar_lea.vmem [#allocation4], 224
    %2073 = vst [vmem:[%s2072] sm:$0xff] %v2070
    %2074 = vst [vmem:[%s2072 + $0x8] sm:$0xff] %v2071
    %s2075 = scalar_lea.vmem [#allocation2], 240
    %v2076 = vld [vmem:[%s2075] sm:$0xff]
    %v2077 = vld [vmem:[%s2075 + $0x8] sm:$0xff]
    %v2078 = vmul.f32 %v2076, %v2070
    %v2079 = vmul.f32 %v2077, %v2071
    %s2080 = scalar_lea.vmem [#allocation3], 240
    %v2081 = vld [vmem:[%s2080] sm:$0xff]
    %v2082 = vld [vmem:[%s2080 + $0x8] sm:$0xff]
    %v2083 = vadd.f32 %v2078, %v2081
    %v2084 = vadd.f32 %v2079, %v2082
    %s2085 = scalar_lea.vmem [#allocation4], 240
    %2086 = vst [vmem:[%s2085] sm:$0xff] %v2083
    %2087 = vst [vmem:[%s2085 + $0x8] sm:$0xff] %v2084
    %v2088 = vld [vmem:[#allocation4] sm:$0xff]
    %v2089 = vld [vmem:[#allocation4 + $0x8] sm:$0xff]
    %v2090 = vld [vmem:[#allocation4 + $0x10] sm:$0xff]
    %v2091 = vld [vmem:[#allocation4 + $0x18] sm:$0xff]
    %v2092 = vld [vmem:[#allocation4 + $0x20] sm:$0xff]
    %v2093 = vld [vmem:[#allocation4 + $0x28] sm:$0xff]
    %v2094 = vld [vmem:[#allocation4 + $0x30] sm:$0xff]
    %v2095 = vld [vmem:[#allocation4 + $0x38] sm:$0xff]
    %v2096 = vld [vmem:[#allocation4 + $0x40] sm:$0xff]
    %v2097 = vld [vmem:[#allocation4 + $0x48] sm:$0xff]
    %v2098 = vld [vmem:[#allocation4 + $0x50] sm:$0xff]
    %v2099 = vld [vmem:[#allocation4 + $0x58] sm:$0xff]
    %v2100 = vld [vmem:[#allocation4 + $0x60] sm:$0xff]
    %v2101 = vld [vmem:[#allocation4 + $0x68] sm:$0xff]
    %v2102 = vld [vmem:[#allocation4 + $0x70] sm:$0xff]
    %v2103 = vld [vmem:[#allocation4 + $0x78] sm:$0xff]
    %v2104 = vld [vmem:[#allocation4 + $0x80] sm:$0xff]
    %v2105 = vld [vmem:[#allocation4 + $0x88] sm:$0xff]
    %v2106 = vld [vmem:[#allocation4 + $0x90] sm:$0xff]
    %v2107 = vld [vmem:[#allocation4 + $0x98] sm:$0xff]
    %v2108 = vld [vmem:[#allocation4 + $0xa0] sm:$0xff]
    %v2109 = vld [vmem:[#allocation4 + $0xa8] sm:$0xff]
    %v2110 = vld [vmem:[#allocation4 + $0xb0] sm:$0xff]
    %v2111 = vld [vmem:[#allocation4 + $0xb8] sm:$0xff]
    %v2112 = vld [vmem:[#allocation4 + $0xc0] sm:$0xff]
    %v2113 = vld [vmem:[#allocation4 + $0xc8] sm:$0xff]
    %v2114 = vld [vmem:[#allocation4 + $0xd0] sm:$0xff]
    %v2115 = vld [vmem:[#allocation4 + $0xd8] sm:$0xff]
    %v2116 = vld [vmem:[#allocation4 + $0xe0] sm:$0xff]
    %v2117 = vld [vmem:[#allocation4 + $0xe8] sm:$0xff]
    %v2118 = vld [vmem:[#allocation4 + $0xf0] sm:$0xff]
    %v2119 = vld [vmem:[#allocation4 + $0xf8] sm:$0xff]
    %v2120 = vlaneseq
    %v2121 = vshrl.u32 %v2120, 7
    %v2122 = vadd.s32 %v2121, 80
    %2123 = vset.pattern.permute.xlu0 %v2122
    %2124 = vperm.xlu0 %2123, %v1137
    %v2125 = vpop.permute.xlu0 %2124
    %v2126 = vlaneseq
    %v2127 = vshrl.u32 %v2126, 7
    %v2128 = vadd.s32 %v2127, 88
    %2129 = vset.pattern.permute.xlu0 %v2128
    %2130 = vperm.xlu0 %2129, %v1137
    %v2131 = vpop.permute.xlu0 %2130
    %v2132 = vlaneseq
    %v2133 = vshrl.u32 %v2132, 7
    %v2134 = vadd.s32 %v2133, 80
    %2135 = vset.pattern.permute.xlu0 %v2134
    %2136 = vperm.xlu0 %2135, %v1150
    %v2137 = vpop.permute.xlu0 %2136
    %v2138 = vlaneseq
    %v2139 = vshrl.u32 %v2138, 7
    %v2140 = vadd.s32 %v2139, 88
    %2141 = vset.pattern.permute.xlu0 %v2140
    %2142 = vperm.xlu0 %2141, %v1150
    %v2143 = vpop.permute.xlu0 %2142
    %v2144 = vlaneseq
    %v2145 = vshrl.u32 %v2144, 7
    %v2146 = vadd.s32 %v2145, 80
    %2147 = vset.pattern.permute.xlu0 %v2146
    %2148 = vperm.xlu0 %2147, %v1163
    %v2149 = vpop.permute.xlu0 %2148
    %v2150 = vlaneseq
    %v2151 = vshrl.u32 %v2150, 7
    %v2152 = vadd.s32 %v2151, 88
    %2153 = vset.pattern.permute.xlu0 %v2152
    %2154 = vperm.xlu0 %2153, %v1163
    %v2155 = vpop.permute.xlu0 %2154
    %v2156 = vlaneseq
    %v2157 = vshrl.u32 %v2156, 7
    %v2158 = vadd.s32 %v2157, 80
    %2159 = vset.pattern.permute.xlu0 %v2158
    %2160 = vperm.xlu0 %2159, %v1176
    %v2161 = vpop.permute.xlu0 %2160
    %v2162 = vlaneseq
    %v2163 = vshrl.u32 %v2162, 7
    %v2164 = vadd.s32 %v2163, 88
    %2165 = vset.pattern.permute.xlu0 %v2164
    %2166 = vperm.xlu0 %2165, %v1176
    %v2167 = vpop.permute.xlu0 %2166
    %v2168 = vlaneseq
    %v2169 = vshrl.u32 %v2168, 7
    %v2170 = vadd.s32 %v2169, 80
    %2171 = vset.pattern.permute.xlu0 %v2170
    %2172 = vperm.xlu0 %2171, %v1189
    %v2173 = vpop.permute.xlu0 %2172
    %v2174 = vlaneseq
    %v2175 = vshrl.u32 %v2174, 7
    %v2176 = vadd.s32 %v2175, 88
    %2177 = vset.pattern.permute.xlu0 %v2176
    %2178 = vperm.xlu0 %2177, %v1189
    %v2179 = vpop.permute.xlu0 %2178
    %v2180 = vlaneseq
    %v2181 = vshrl.u32 %v2180, 7
    %v2182 = vadd.s32 %v2181, 80
    %2183 = vset.pattern.permute.xlu0 %v2182
    %2184 = vperm.xlu0 %2183, %v1202
    %v2185 = vpop.permute.xlu0 %2184
    %v2186 = vlaneseq
    %v2187 = vshrl.u32 %v2186, 7
    %v2188 = vadd.s32 %v2187, 88
    %2189 = vset.pattern.permute.xlu0 %v2188
    %2190 = vperm.xlu0 %2189, %v1202
    %v2191 = vpop.permute.xlu0 %2190
    %v2192 = vlaneseq
    %v2193 = vshrl.u32 %v2192, 7
    %v2194 = vadd.s32 %v2193, 80
    %2195 = vset.pattern.permute.xlu0 %v2194
    %2196 = vperm.xlu0 %2195, %v1215
    %v2197 = vpop.permute.xlu0 %2196
    %v2198 = vlaneseq
    %v2199 = vshrl.u32 %v2198, 7
    %v2200 = vadd.s32 %v2199, 88
    %2201 = vset.pattern.permute.xlu0 %v2200
    %2202 = vperm.xlu0 %2201, %v1215
    %v2203 = vpop.permute.xlu0 %2202
    %v2204 = vlaneseq
    %v2205 = vshrl.u32 %v2204, 7
    %v2206 = vadd.s32 %v2205, 80
    %2207 = vset.pattern.permute.xlu0 %v2206
    %2208 = vperm.xlu0 %2207, %v1228
    %v2209 = vpop.permute.xlu0 %2208
    %v2210 = vlaneseq
    %v2211 = vshrl.u32 %v2210, 7
    %v2212 = vadd.s32 %v2211, 88
    %2213 = vset.pattern.permute.xlu0 %v2212
    %2214 = vperm.xlu0 %2213, %v1228
    %v2215 = vpop.permute.xlu0 %2214
    %v2216 = vlaneseq
    %v2217 = vshrl.u32 %v2216, 7
    %v2218 = vadd.s32 %v2217, 80
    %2219 = vset.pattern.permute.xlu0 %v2218
    %2220 = vperm.xlu0 %2219, %v1241
    %v2221 = vpop.permute.xlu0 %2220
    %v2222 = vlaneseq
    %v2223 = vshrl.u32 %v2222, 7
    %v2224 = vadd.s32 %v2223, 88
    %2225 = vset.pattern.permute.xlu0 %v2224
    %2226 = vperm.xlu0 %2225, %v1241
    %v2227 = vpop.permute.xlu0 %2226
    %v2228 = vlaneseq
    %v2229 = vshrl.u32 %v2228, 7
    %v2230 = vadd.s32 %v2229, 80
    %2231 = vset.pattern.permute.xlu0 %v2230
    %2232 = vperm.xlu0 %2231, %v1254
    %v2233 = vpop.permute.xlu0 %2232
    %v2234 = vlaneseq
    %v2235 = vshrl.u32 %v2234, 7
    %v2236 = vadd.s32 %v2235, 88
    %2237 = vset.pattern.permute.xlu0 %v2236
    %2238 = vperm.xlu0 %2237, %v1254
    %v2239 = vpop.permute.xlu0 %2238
    %v2240 = vlaneseq
    %v2241 = vshrl.u32 %v2240, 7
    %v2242 = vadd.s32 %v2241, 80
    %2243 = vset.pattern.permute.xlu0 %v2242
    %2244 = vperm.xlu0 %2243, %v1267
    %v2245 = vpop.permute.xlu0 %2244
    %v2246 = vlaneseq
    %v2247 = vshrl.u32 %v2246, 7
    %v2248 = vadd.s32 %v2247, 88
    %2249 = vset.pattern.permute.xlu0 %v2248
    %2250 = vperm.xlu0 %2249, %v1267
    %v2251 = vpop.permute.xlu0 %2250
    %v2252 = vlaneseq
    %v2253 = vshrl.u32 %v2252, 7
    %v2254 = vadd.s32 %v2253, 80
    %2255 = vset.pattern.permute.xlu0 %v2254
    %2256 = vperm.xlu0 %2255, %v1280
    %v2257 = vpop.permute.xlu0 %2256
    %v2258 = vlaneseq
    %v2259 = vshrl.u32 %v2258, 7
    %v2260 = vadd.s32 %v2259, 88
    %2261 = vset.pattern.permute.xlu0 %v2260
    %2262 = vperm.xlu0 %2261, %v1280
    %v2263 = vpop.permute.xlu0 %2262
    %v2264 = vlaneseq
    %v2265 = vshrl.u32 %v2264, 7
    %v2266 = vadd.s32 %v2265, 80
    %2267 = vset.pattern.permute.xlu0 %v2266
    %2268 = vperm.xlu0 %2267, %v1293
    %v2269 = vpop.permute.xlu0 %2268
    %v2270 = vlaneseq
    %v2271 = vshrl.u32 %v2270, 7
    %v2272 = vadd.s32 %v2271, 88
    %2273 = vset.pattern.permute.xlu0 %v2272
    %2274 = vperm.xlu0 %2273, %v1293
    %v2275 = vpop.permute.xlu0 %2274
    %v2276 = vlaneseq
    %v2277 = vshrl.u32 %v2276, 7
    %v2278 = vadd.s32 %v2277, 80
    %2279 = vset.pattern.permute.xlu0 %v2278
    %2280 = vperm.xlu0 %2279, %v1306
    %v2281 = vpop.permute.xlu0 %2280
    %v2282 = vlaneseq
    %v2283 = vshrl.u32 %v2282, 7
    %v2284 = vadd.s32 %v2283, 88
    %2285 = vset.pattern.permute.xlu0 %v2284
    %2286 = vperm.xlu0 %2285, %v1306
    %v2287 = vpop.permute.xlu0 %2286
    %v2288 = vlaneseq
    %v2289 = vshrl.u32 %v2288, 7
    %v2290 = vadd.s32 %v2289, 80
    %2291 = vset.pattern.permute.xlu0 %v2290
    %2292 = vperm.xlu0 %2291, %v1319
    %v2293 = vpop.permute.xlu0 %2292
    %v2294 = vlaneseq
    %v2295 = vshrl.u32 %v2294, 7
    %v2296 = vadd.s32 %v2295, 88
    %2297 = vset.pattern.permute.xlu0 %v2296
    %2298 = vperm.xlu0 %2297, %v1319
    %v2299 = vpop.permute.xlu0 %2298
    %v2300 = vlaneseq
    %v2301 = vshrl.u32 %v2300, 7
    %v2302 = vadd.s32 %v2301, 80
    %2303 = vset.pattern.permute.xlu0 %v2302
    %2304 = vperm.xlu0 %2303, %v1332
    %v2305 = vpop.permute.xlu0 %2304
    %v2306 = vlaneseq
    %v2307 = vshrl.u32 %v2306, 7
    %v2308 = vadd.s32 %v2307, 88
    %2309 = vset.pattern.permute.xlu0 %v2308
    %2310 = vperm.xlu0 %2309, %v1332
    %v2311 = vpop.permute.xlu0 %2310
    %v2312 = vmul.f32 %v2088, %v2125
    %v2313 = vmul.f32 %v2089, %v2131
    %v2314 = vmul.f32 %v2090, %v2137
    %v2315 = vmul.f32 %v2091, %v2143
    %v2316 = vmul.f32 %v2092, %v2149
    %v2317 = vmul.f32 %v2093, %v2155
    %v2318 = vmul.f32 %v2094, %v2161
    %v2319 = vmul.f32 %v2095, %v2167
    %v2320 = vmul.f32 %v2096, %v2173
    %v2321 = vmul.f32 %v2097, %v2179
    %v2322 = vmul.f32 %v2098, %v2185
    %v2323 = vmul.f32 %v2099, %v2191
    %v2324 = vmul.f32 %v2100, %v2197
    %v2325 = vmul.f32 %v2101, %v2203
    %v2326 = vmul.f32 %v2102, %v2209
    %v2327 = vmul.f32 %v2103, %v2215
    %v2328 = vmul.f32 %v2104, %v2221
    %v2329 = vmul.f32 %v2105, %v2227
    %v2330 = vmul.f32 %v2106, %v2233
    %v2331 = vmul.f32 %v2107, %v2239
    %v2332 = vmul.f32 %v2108, %v2245
    %v2333 = vmul.f32 %v2109, %v2251
    %v2334 = vmul.f32 %v2110, %v2257
    %v2335 = vmul.f32 %v2111, %v2263
    %v2336 = vmul.f32 %v2112, %v2269
    %v2337 = vmul.f32 %v2113, %v2275
    %v2338 = vmul.f32 %v2114, %v2281
    %v2339 = vmul.f32 %v2115, %v2287
    %v2340 = vmul.f32 %v2116, %v2293
    %v2341 = vmul.f32 %v2117, %v2299
    %v2342 = vmul.f32 %v2118, %v2305
    %v2343 = vmul.f32 %v2119, %v2311
    %v2344 = vsel %vm425, %v2312, 0.0
    %v2345 = vsel %vm425, %v2313, 0.0
    %v2346 = vadd.f32 %v2344, %v2345
    %v2347 = vrot.slane %v2346, 4
    %v2348 = vadd.f32 %v2346, %v2347
    %v2349 = vrot.slane %v2348, 2
    %v2350 = vadd.f32 %v2348, %v2349
    %v2351 = vrot.slane %v2350, 1
    %v2352 = vadd.f32 %v2350, %v2351
    %v2353 = vsel %vm425, %v2314, 0.0
    %v2354 = vsel %vm425, %v2315, 0.0
    %v2355 = vadd.f32 %v2353, %v2354
    %v2356 = vrot.slane %v2355, 4
    %v2357 = vadd.f32 %v2355, %v2356
    %v2358 = vrot.slane %v2357, 2
    %v2359 = vadd.f32 %v2357, %v2358
    %v2360 = vrot.slane %v2359, 1
    %v2361 = vadd.f32 %v2359, %v2360
    %v2362 = vsel %vm425, %v2316, 0.0
    %v2363 = vsel %vm425, %v2317, 0.0
    %v2364 = vadd.f32 %v2362, %v2363
    %v2365 = vrot.slane %v2364, 4
    %v2366 = vadd.f32 %v2364, %v2365
    %v2367 = vrot.slane %v2366, 2
    %v2368 = vadd.f32 %v2366, %v2367
    %v2369 = vrot.slane %v2368, 1
    %v2370 = vadd.f32 %v2368, %v2369
    %v2371 = vsel %vm425, %v2318, 0.0
    %v2372 = vsel %vm425, %v2319, 0.0
    %v2373 = vadd.f32 %v2371, %v2372
    %v2374 = vrot.slane %v2373, 4
    %v2375 = vadd.f32 %v2373, %v2374
    %v2376 = vrot.slane %v2375, 2
    %v2377 = vadd.f32 %v2375, %v2376
    %v2378 = vrot.slane %v2377, 1
    %v2379 = vadd.f32 %v2377, %v2378
    %v2380 = vsel %vm425, %v2320, 0.0
    %v2381 = vsel %vm425, %v2321, 0.0
    %v2382 = vadd.f32 %v2380, %v2381
    %v2383 = vrot.slane %v2382, 4
    %v2384 = vadd.f32 %v2382, %v2383
    %v2385 = vrot.slane %v2384, 2
    %v2386 = vadd.f32 %v2384, %v2385
    %v2387 = vrot.slane %v2386, 1
    %v2388 = vadd.f32 %v2386, %v2387
    %v2389 = vsel %vm425, %v2322, 0.0
    %v2390 = vsel %vm425, %v2323, 0.0
    %v2391 = vadd.f32 %v2389, %v2390
    %v2392 = vrot.slane %v2391, 4
    %v2393 = vadd.f32 %v2391, %v2392
    %v2394 = vrot.slane %v2393, 2
    %v2395 = vadd.f32 %v2393, %v2394
    %v2396 = vrot.slane %v2395, 1
    %v2397 = vadd.f32 %v2395, %v2396
    %v2398 = vsel %vm425, %v2324, 0.0
    %v2399 = vsel %vm425, %v2325, 0.0
    %v2400 = vadd.f32 %v2398, %v2399
    %v2401 = vrot.slane %v2400, 4
    %v2402 = vadd.f32 %v2400, %v2401
    %v2403 = vrot.slane %v2402, 2
    %v2404 = vadd.f32 %v2402, %v2403
    %v2405 = vrot.slane %v2404, 1
    %v2406 = vadd.f32 %v2404, %v2405
    %v2407 = vsel %vm425, %v2326, 0.0
    %v2408 = vsel %vm425, %v2327, 0.0
    %v2409 = vadd.f32 %v2407, %v2408
    %v2410 = vrot.slane %v2409, 4
    %v2411 = vadd.f32 %v2409, %v2410
    %v2412 = vrot.slane %v2411, 2
    %v2413 = vadd.f32 %v2411, %v2412
    %v2414 = vrot.slane %v2413, 1
    %v2415 = vadd.f32 %v2413, %v2414
    %v2416 = vsel %vm425, %v2328, 0.0
    %v2417 = vsel %vm425, %v2329, 0.0
    %v2418 = vadd.f32 %v2416, %v2417
    %v2419 = vrot.slane %v2418, 4
    %v2420 = vadd.f32 %v2418, %v2419
    %v2421 = vrot.slane %v2420, 2
    %v2422 = vadd.f32 %v2420, %v2421
    %v2423 = vrot.slane %v2422, 1
    %v2424 = vadd.f32 %v2422, %v2423
    %v2425 = vsel %vm425, %v2330, 0.0
    %v2426 = vsel %vm425, %v2331, 0.0
    %v2427 = vadd.f32 %v2425, %v2426
    %v2428 = vrot.slane %v2427, 4
    %v2429 = vadd.f32 %v2427, %v2428
    %v2430 = vrot.slane %v2429, 2
    %v2431 = vadd.f32 %v2429, %v2430
    %v2432 = vrot.slane %v2431, 1
    %v2433 = vadd.f32 %v2431, %v2432
    %v2434 = vsel %vm425, %v2332, 0.0
    %v2435 = vsel %vm425, %v2333, 0.0
    %v2436 = vadd.f32 %v2434, %v2435
    %v2437 = vrot.slane %v2436, 4
    %v2438 = vadd.f32 %v2436, %v2437
    %v2439 = vrot.slane %v2438, 2
    %v2440 = vadd.f32 %v2438, %v2439
    %v2441 = vrot.slane %v2440, 1
    %v2442 = vadd.f32 %v2440, %v2441
    %v2443 = vsel %vm425, %v2334, 0.0
    %v2444 = vsel %vm425, %v2335, 0.0
    %v2445 = vadd.f32 %v2443, %v2444
    %v2446 = vrot.slane %v2445, 4
    %v2447 = vadd.f32 %v2445, %v2446
    %v2448 = vrot.slane %v2447, 2
    %v2449 = vadd.f32 %v2447, %v2448
    %v2450 = vrot.slane %v2449, 1
    %v2451 = vadd.f32 %v2449, %v2450
    %v2452 = vsel %vm425, %v2336, 0.0
    %v2453 = vsel %vm425, %v2337, 0.0
    %v2454 = vadd.f32 %v2452, %v2453
    %v2455 = vrot.slane %v2454, 4
    %v2456 = vadd.f32 %v2454, %v2455
    %v2457 = vrot.slane %v2456, 2
    %v2458 = vadd.f32 %v2456, %v2457
    %v2459 = vrot.slane %v2458, 1
    %v2460 = vadd.f32 %v2458, %v2459
    %v2461 = vsel %vm425, %v2338, 0.0
    %v2462 = vsel %vm425, %v2339, 0.0
    %v2463 = vadd.f32 %v2461, %v2462
    %v2464 = vrot.slane %v2463, 4
    %v2465 = vadd.f32 %v2463, %v2464
    %v2466 = vrot.slane %v2465, 2
    %v2467 = vadd.f32 %v2465, %v2466
    %v2468 = vrot.slane %v2467, 1
    %v2469 = vadd.f32 %v2467, %v2468
    %v2470 = vsel %vm425, %v2340, 0.0
    %v2471 = vsel %vm425, %v2341, 0.0
    %v2472 = vadd.f32 %v2470, %v2471
    %v2473 = vrot.slane %v2472, 4
    %v2474 = vadd.f32 %v2472, %v2473
    %v2475 = vrot.slane %v2474, 2
    %v2476 = vadd.f32 %v2474, %v2475
    %v2477 = vrot.slane %v2476, 1
    %v2478 = vadd.f32 %v2476, %v2477
    %v2479 = vsel %vm425, %v2342, 0.0
    %v2480 = vsel %vm425, %v2343, 0.0
    %v2481 = vadd.f32 %v2479, %v2480
    %v2482 = vrot.slane %v2481, 4
    %v2483 = vadd.f32 %v2481, %v2482
    %v2484 = vrot.slane %v2483, 2
    %v2485 = vadd.f32 %v2483, %v2484
    %v2486 = vrot.slane %v2485, 1
    %v2487 = vadd.f32 %v2485, %v2486
    %v2488 = vlaneseq
    %v2489 = vshrl.u32 %v2488, 7
    %v2490 = vadd.s32 %v2489, 80
    %2491 = vset.pattern.permute.xlu0 %v2490
    %2492 = vperm.xlu0 %2491, %v1425
    %v2493 = vpop.permute.xlu0 %2492
    %v2494 = vlaneseq
    %v2495 = vshrl.u32 %v2494, 7
    %v2496 = vadd.s32 %v2495, 88
    %2497 = vset.pattern.permute.xlu0 %v2496
    %2498 = vperm.xlu0 %2497, %v1425
    %v2499 = vpop.permute.xlu0 %2498
    %v2500 = vlaneseq
    %v2501 = vshrl.u32 %v2500, 7
    %v2502 = vadd.s32 %v2501, 80
    %2503 = vset.pattern.permute.xlu0 %v2502
    %2504 = vperm.xlu0 %2503, %v1438
    %v2505 = vpop.permute.xlu0 %2504
    %v2506 = vlaneseq
    %v2507 = vshrl.u32 %v2506, 7
    %v2508 = vadd.s32 %v2507, 88
    %2509 = vset.pattern.permute.xlu0 %v2508
    %2510 = vperm.xlu0 %2509, %v1438
    %v2511 = vpop.permute.xlu0 %2510
    %v2512 = vlaneseq
    %v2513 = vshrl.u32 %v2512, 7
    %v2514 = vadd.s32 %v2513, 80
    %2515 = vset.pattern.permute.xlu0 %v2514
    %2516 = vperm.xlu0 %2515, %v1451
    %v2517 = vpop.permute.xlu0 %2516
    %v2518 = vlaneseq
    %v2519 = vshrl.u32 %v2518, 7
    %v2520 = vadd.s32 %v2519, 88
    %2521 = vset.pattern.permute.xlu0 %v2520
    %2522 = vperm.xlu0 %2521, %v1451
    %v2523 = vpop.permute.xlu0 %2522
    %v2524 = vlaneseq
    %v2525 = vshrl.u32 %v2524, 7
    %v2526 = vadd.s32 %v2525, 80
    %2527 = vset.pattern.permute.xlu0 %v2526
    %2528 = vperm.xlu0 %2527, %v1464
    %v2529 = vpop.permute.xlu0 %2528
    %v2530 = vlaneseq
    %v2531 = vshrl.u32 %v2530, 7
    %v2532 = vadd.s32 %v2531, 88
    %2533 = vset.pattern.permute.xlu0 %v2532
    %2534 = vperm.xlu0 %2533, %v1464
    %v2535 = vpop.permute.xlu0 %2534
    %v2536 = vlaneseq
    %v2537 = vshrl.u32 %v2536, 7
    %v2538 = vadd.s32 %v2537, 80
    %2539 = vset.pattern.permute.xlu0 %v2538
    %2540 = vperm.xlu0 %2539, %v1477
    %v2541 = vpop.permute.xlu0 %2540
    %v2542 = vlaneseq
    %v2543 = vshrl.u32 %v2542, 7
    %v2544 = vadd.s32 %v2543, 88
    %2545 = vset.pattern.permute.xlu0 %v2544
    %2546 = vperm.xlu0 %2545, %v1477
    %v2547 = vpop.permute.xlu0 %2546
    %v2548 = vlaneseq
    %v2549 = vshrl.u32 %v2548, 7
    %v2550 = vadd.s32 %v2549, 80
    %2551 = vset.pattern.permute.xlu0 %v2550
    %2552 = vperm.xlu0 %2551, %v1490
    %v2553 = vpop.permute.xlu0 %2552
    %v2554 = vlaneseq
    %v2555 = vshrl.u32 %v2554, 7
    %v2556 = vadd.s32 %v2555, 88
    %2557 = vset.pattern.permute.xlu0 %v2556
    %2558 = vperm.xlu0 %2557, %v1490
    %v2559 = vpop.permute.xlu0 %2558
    %v2560 = vlaneseq
    %v2561 = vshrl.u32 %v2560, 7
    %v2562 = vadd.s32 %v2561, 80
    %2563 = vset.pattern.permute.xlu0 %v2562
    %2564 = vperm.xlu0 %2563, %v1503
    %v2565 = vpop.permute.xlu0 %2564
    %v2566 = vlaneseq
    %v2567 = vshrl.u32 %v2566, 7
    %v2568 = vadd.s32 %v2567, 88
    %2569 = vset.pattern.permute.xlu0 %v2568
    %2570 = vperm.xlu0 %2569, %v1503
    %v2571 = vpop.permute.xlu0 %2570
    %v2572 = vlaneseq
    %v2573 = vshrl.u32 %v2572, 7
    %v2574 = vadd.s32 %v2573, 80
    %2575 = vset.pattern.permute.xlu0 %v2574
    %2576 = vperm.xlu0 %2575, %v1516
    %v2577 = vpop.permute.xlu0 %2576
    %v2578 = vlaneseq
    %v2579 = vshrl.u32 %v2578, 7
    %v2580 = vadd.s32 %v2579, 88
    %2581 = vset.pattern.permute.xlu0 %v2580
    %2582 = vperm.xlu0 %2581, %v1516
    %v2583 = vpop.permute.xlu0 %2582
    %v2584 = vlaneseq
    %v2585 = vshrl.u32 %v2584, 7
    %v2586 = vadd.s32 %v2585, 80
    %2587 = vset.pattern.permute.xlu0 %v2586
    %2588 = vperm.xlu0 %2587, %v1529
    %v2589 = vpop.permute.xlu0 %2588
    %v2590 = vlaneseq
    %v2591 = vshrl.u32 %v2590, 7
    %v2592 = vadd.s32 %v2591, 88
    %2593 = vset.pattern.permute.xlu0 %v2592
    %2594 = vperm.xlu0 %2593, %v1529
    %v2595 = vpop.permute.xlu0 %2594
    %v2596 = vlaneseq
    %v2597 = vshrl.u32 %v2596, 7
    %v2598 = vadd.s32 %v2597, 80
    %2599 = vset.pattern.permute.xlu0 %v2598
    %2600 = vperm.xlu0 %2599, %v1542
    %v2601 = vpop.permute.xlu0 %2600
    %v2602 = vlaneseq
    %v2603 = vshrl.u32 %v2602, 7
    %v2604 = vadd.s32 %v2603, 88
    %2605 = vset.pattern.permute.xlu0 %v2604
    %2606 = vperm.xlu0 %2605, %v1542
    %v2607 = vpop.permute.xlu0 %2606
    %v2608 = vlaneseq
    %v2609 = vshrl.u32 %v2608, 7
    %v2610 = vadd.s32 %v2609, 80
    %2611 = vset.pattern.permute.xlu0 %v2610
    %2612 = vperm.xlu0 %2611, %v1555
    %v2613 = vpop.permute.xlu0 %2612
    %v2614 = vlaneseq
    %v2615 = vshrl.u32 %v2614, 7
    %v2616 = vadd.s32 %v2615, 88
    %2617 = vset.pattern.permute.xlu0 %v2616
    %2618 = vperm.xlu0 %2617, %v1555
    %v2619 = vpop.permute.xlu0 %2618
    %v2620 = vlaneseq
    %v2621 = vshrl.u32 %v2620, 7
    %v2622 = vadd.s32 %v2621, 80
    %2623 = vset.pattern.permute.xlu0 %v2622
    %2624 = vperm.xlu0 %2623, %v1568
    %v2625 = vpop.permute.xlu0 %2624
    %v2626 = vlaneseq
    %v2627 = vshrl.u32 %v2626, 7
    %v2628 = vadd.s32 %v2627, 88
    %2629 = vset.pattern.permute.xlu0 %v2628
    %2630 = vperm.xlu0 %2629, %v1568
    %v2631 = vpop.permute.xlu0 %2630
    %v2632 = vlaneseq
    %v2633 = vshrl.u32 %v2632, 7
    %v2634 = vadd.s32 %v2633, 80
    %2635 = vset.pattern.permute.xlu0 %v2634
    %2636 = vperm.xlu0 %2635, %v1581
    %v2637 = vpop.permute.xlu0 %2636
    %v2638 = vlaneseq
    %v2639 = vshrl.u32 %v2638, 7
    %v2640 = vadd.s32 %v2639, 88
    %2641 = vset.pattern.permute.xlu0 %v2640
    %2642 = vperm.xlu0 %2641, %v1581
    %v2643 = vpop.permute.xlu0 %2642
    %v2644 = vlaneseq
    %v2645 = vshrl.u32 %v2644, 7
    %v2646 = vadd.s32 %v2645, 80
    %2647 = vset.pattern.permute.xlu0 %v2646
    %2648 = vperm.xlu0 %2647, %v1594
    %v2649 = vpop.permute.xlu0 %2648
    %v2650 = vlaneseq
    %v2651 = vshrl.u32 %v2650, 7
    %v2652 = vadd.s32 %v2651, 88
    %2653 = vset.pattern.permute.xlu0 %v2652
    %2654 = vperm.xlu0 %2653, %v1594
    %v2655 = vpop.permute.xlu0 %2654
    %v2656 = vlaneseq
    %v2657 = vshrl.u32 %v2656, 7
    %v2658 = vadd.s32 %v2657, 80
    %2659 = vset.pattern.permute.xlu0 %v2658
    %2660 = vperm.xlu0 %2659, %v1607
    %v2661 = vpop.permute.xlu0 %2660
    %v2662 = vlaneseq
    %v2663 = vshrl.u32 %v2662, 7
    %v2664 = vadd.s32 %v2663, 88
    %2665 = vset.pattern.permute.xlu0 %v2664
    %2666 = vperm.xlu0 %2665, %v1607
    %v2667 = vpop.permute.xlu0 %2666
    %v2668 = vlaneseq
    %v2669 = vshrl.u32 %v2668, 7
    %v2670 = vadd.s32 %v2669, 80
    %2671 = vset.pattern.permute.xlu0 %v2670
    %2672 = vperm.xlu0 %2671, %v1620
    %v2673 = vpop.permute.xlu0 %2672
    %v2674 = vlaneseq
    %v2675 = vshrl.u32 %v2674, 7
    %v2676 = vadd.s32 %v2675, 88
    %2677 = vset.pattern.permute.xlu0 %v2676
    %2678 = vperm.xlu0 %2677, %v1620
    %v2679 = vpop.permute.xlu0 %2678
    %v2680 = vmul.f32 %v2088, %v2493
    %v2681 = vmul.f32 %v2089, %v2499
    %v2682 = vmul.f32 %v2090, %v2505
    %v2683 = vmul.f32 %v2091, %v2511
    %v2684 = vmul.f32 %v2092, %v2517
    %v2685 = vmul.f32 %v2093, %v2523
    %v2686 = vmul.f32 %v2094, %v2529
    %v2687 = vmul.f32 %v2095, %v2535
    %v2688 = vmul.f32 %v2096, %v2541
    %v2689 = vmul.f32 %v2097, %v2547
    %v2690 = vmul.f32 %v2098, %v2553
    %v2691 = vmul.f32 %v2099, %v2559
    %v2692 = vmul.f32 %v2100, %v2565
    %v2693 = vmul.f32 %v2101, %v2571
    %v2694 = vmul.f32 %v2102, %v2577
    %v2695 = vmul.f32 %v2103, %v2583
    %v2696 = vmul.f32 %v2104, %v2589
    %v2697 = vmul.f32 %v2105, %v2595
    %v2698 = vmul.f32 %v2106, %v2601
    %v2699 = vmul.f32 %v2107, %v2607
    %v2700 = vmul.f32 %v2108, %v2613
    %v2701 = vmul.f32 %v2109, %v2619
    %v2702 = vmul.f32 %v2110, %v2625
    %v2703 = vmul.f32 %v2111, %v2631
    %v2704 = vmul.f32 %v2112, %v2637
    %v2705 = vmul.f32 %v2113, %v2643
    %v2706 = vmul.f32 %v2114, %v2649
    %v2707 = vmul.f32 %v2115, %v2655
    %v2708 = vmul.f32 %v2116, %v2661
    %v2709 = vmul.f32 %v2117, %v2667
    %v2710 = vmul.f32 %v2118, %v2673
    %v2711 = vmul.f32 %v2119, %v2679
    %vm2712 = vcmask 1048064
    %v2713 = vsel %vm2712, %v2680, 0.0
    %v2714 = vsel %vm2712, %v2681, 0.0
    %v2715 = vadd.f32 %v2713, %v2714
    %v2716 = vrot.slane %v2715, 4
    %v2717 = vadd.f32 %v2715, %v2716
    %v2718 = vrot.slane %v2717, 2
    %v2719 = vadd.f32 %v2717, %v2718
    %v2720 = vrot.slane %v2719, 1
    %v2721 = vadd.f32 %v2719, %v2720
    %v2722 = vsel %vm2712, %v2682, 0.0
    %v2723 = vsel %vm2712, %v2683, 0.0
    %v2724 = vadd.f32 %v2722, %v2723
    %v2725 = vrot.slane %v2724, 4
    %v2726 = vadd.f32 %v2724, %v2725
    %v2727 = vrot.slane %v2726, 2
    %v2728 = vadd.f32 %v2726, %v2727
    %v2729 = vrot.slane %v2728, 1
    %v2730 = vadd.f32 %v2728, %v2729
    %v2731 = vsel %vm2712, %v2684, 0.0
    %v2732 = vsel %vm2712, %v2685, 0.0
    %v2733 = vadd.f32 %v2731, %v2732
    %v2734 = vrot.slane %v2733, 4
    %v2735 = vadd.f32 %v2733, %v2734
    %v2736 = vrot.slane %v2735, 2
    %v2737 = vadd.f32 %v2735, %v2736
    %v2738 = vrot.slane %v2737, 1
    %v2739 = vadd.f32 %v2737, %v2738
    %v2740 = vsel %vm2712, %v2686, 0.0
    %v2741 = vsel %vm2712, %v2687, 0.0
    %v2742 = vadd.f32 %v2740, %v2741
    %v2743 = vrot.slane %v2742, 4
    %v2744 = vadd.f32 %v2742, %v2743
    %v2745 = vrot.slane %v2744, 2
    %v2746 = vadd.f32 %v2744, %v2745
    %v2747 = vrot.slane %v2746, 1
    %v2748 = vadd.f32 %v2746, %v2747
    %v2749 = vsel %vm2712, %v2688, 0.0
    %v2750 = vsel %vm2712, %v2689, 0.0
    %v2751 = vadd.f32 %v2749, %v2750
    %v2752 = vrot.slane %v2751, 4
    %v2753 = vadd.f32 %v2751, %v2752
    %v2754 = vrot.slane %v2753, 2
    %v2755 = vadd.f32 %v2753, %v2754
    %v2756 = vrot.slane %v2755, 1
    %v2757 = vadd.f32 %v2755, %v2756
    %v2758 = vsel %vm2712, %v2690, 0.0
    %v2759 = vsel %vm2712, %v2691, 0.0
    %v2760 = vadd.f32 %v2758, %v2759
    %v2761 = vrot.slane %v2760, 4
    %v2762 = vadd.f32 %v2760, %v2761
    %v2763 = vrot.slane %v2762, 2
    %v2764 = vadd.f32 %v2762, %v2763
    %v2765 = vrot.slane %v2764, 1
    %v2766 = vadd.f32 %v2764, %v2765
    %v2767 = vsel %vm2712, %v2692, 0.0
    %v2768 = vsel %vm2712, %v2693, 0.0
    %v2769 = vadd.f32 %v2767, %v2768
    %v2770 = vrot.slane %v2769, 4
    %v2771 = vadd.f32 %v2769, %v2770
    %v2772 = vrot.slane %v2771, 2
    %v2773 = vadd.f32 %v2771, %v2772
    %v2774 = vrot.slane %v2773, 1
    %v2775 = vadd.f32 %v2773, %v2774
    %v2776 = vsel %vm2712, %v2694, 0.0
    %v2777 = vsel %vm2712, %v2695, 0.0
    %v2778 = vadd.f32 %v2776, %v2777
    %v2779 = vrot.slane %v2778, 4
    %v2780 = vadd.f32 %v2778, %v2779
    %v2781 = vrot.slane %v2780, 2
    %v2782 = vadd.f32 %v2780, %v2781
    %v2783 = vrot.slane %v2782, 1
    %v2784 = vadd.f32 %v2782, %v2783
    %v2785 = vsel %vm2712, %v2696, 0.0
    %v2786 = vsel %vm2712, %v2697, 0.0
    %v2787 = vadd.f32 %v2785, %v2786
    %v2788 = vrot.slane %v2787, 4
    %v2789 = vadd.f32 %v2787, %v2788
    %v2790 = vrot.slane %v2789, 2
    %v2791 = vadd.f32 %v2789, %v2790
    %v2792 = vrot.slane %v2791, 1
    %v2793 = vadd.f32 %v2791, %v2792
    %v2794 = vsel %vm2712, %v2698, 0.0
    %v2795 = vsel %vm2712, %v2699, 0.0
    %v2796 = vadd.f32 %v2794, %v2795
    %v2797 = vrot.slane %v2796, 4
    %v2798 = vadd.f32 %v2796, %v2797
    %v2799 = vrot.slane %v2798, 2
    %v2800 = vadd.f32 %v2798, %v2799
    %v2801 = vrot.slane %v2800, 1
    %v2802 = vadd.f32 %v2800, %v2801
    %v2803 = vsel %vm2712, %v2700, 0.0
    %v2804 = vsel %vm2712, %v2701, 0.0
    %v2805 = vadd.f32 %v2803, %v2804
    %v2806 = vrot.slane %v2805, 4
    %v2807 = vadd.f32 %v2805, %v2806
    %v2808 = vrot.slane %v2807, 2
    %v2809 = vadd.f32 %v2807, %v2808
    %v2810 = vrot.slane %v2809, 1
    %v2811 = vadd.f32 %v2809, %v2810
    %v2812 = vsel %vm2712, %v2702, 0.0
    %v2813 = vsel %vm2712, %v2703, 0.0
    %v2814 = vadd.f32 %v2812, %v2813
    %v2815 = vrot.slane %v2814, 4
    %v2816 = vadd.f32 %v2814, %v2815
    %v2817 = vrot.slane %v2816, 2
    %v2818 = vadd.f32 %v2816, %v2817
    %v2819 = vrot.slane %v2818, 1
    %v2820 = vadd.f32 %v2818, %v2819
    %v2821 = vsel %vm2712, %v2704, 0.0
    %v2822 = vsel %vm2712, %v2705, 0.0
    %v2823 = vadd.f32 %v2821, %v2822
    %v2824 = vrot.slane %v2823, 4
    %v2825 = vadd.f32 %v2823, %v2824
    %v2826 = vrot.slane %v2825, 2
    %v2827 = vadd.f32 %v2825, %v2826
    %v2828 = vrot.slane %v2827, 1
    %v2829 = vadd.f32 %v2827, %v2828
    %v2830 = vsel %vm2712, %v2706, 0.0
    %v2831 = vsel %vm2712, %v2707, 0.0
    %v2832 = vadd.f32 %v2830, %v2831
    %v2833 = vrot.slane %v2832, 4
    %v2834 = vadd.f32 %v2832, %v2833
    %v2835 = vrot.slane %v2834, 2
    %v2836 = vadd.f32 %v2834, %v2835
    %v2837 = vrot.slane %v2836, 1
    %v2838 = vadd.f32 %v2836, %v2837
    %v2839 = vsel %vm2712, %v2708, 0.0
    %v2840 = vsel %vm2712, %v2709, 0.0
    %v2841 = vadd.f32 %v2839, %v2840
    %v2842 = vrot.slane %v2841, 4
    %v2843 = vadd.f32 %v2841, %v2842
    %v2844 = vrot.slane %v2843, 2
    %v2845 = vadd.f32 %v2843, %v2844
    %v2846 = vrot.slane %v2845, 1
    %v2847 = vadd.f32 %v2845, %v2846
    %v2848 = vsel %vm2712, %v2710, 0.0
    %v2849 = vsel %vm2712, %v2711, 0.0
    %v2850 = vadd.f32 %v2848, %v2849
    %v2851 = vrot.slane %v2850, 4
    %v2852 = vadd.f32 %v2850, %v2851
    %v2853 = vrot.slane %v2852, 2
    %v2854 = vadd.f32 %v2852, %v2853
    %v2855 = vrot.slane %v2854, 1
    %v2856 = vadd.f32 %v2854, %v2855
    %vm2873 = vcmask 1041409
    %v2874 = vsel %vm2873, %v2361, %v2352
    %vm2875 = vcmask 1042434
    %v2876 = vsel %vm2875, %v2370, %v2874
    %vm2877 = vcmask 1043459
    %v2878 = vsel %vm2877, %v2379, %v2876
    %vm2879 = vcmask 1044484
    %v2880 = vsel %vm2879, %v2388, %v2878
    %vm2881 = vcmask 1045509
    %v2882 = vsel %vm2881, %v2397, %v2880
    %vm2883 = vcmask 1046534
    %v2884 = vsel %vm2883, %v2406, %v2882
    %vm2885 = vcmask 1047559
    %v2886 = vsel %vm2885, %v2415, %v2884
    %v2887 = vsel %vm2873, %v2433, %v2424
    %v2888 = vsel %vm2875, %v2442, %v2887
    %v2889 = vsel %vm2877, %v2451, %v2888
    %v2890 = vsel %vm2879, %v2460, %v2889
    %v2891 = vsel %vm2881, %v2469, %v2890
    %v2892 = vsel %vm2883, %v2478, %v2891
    %v2893 = vsel %vm2885, %v2487, %v2892
    %v2912 = vsel %vm2873, %v2730, %v2721
    %v2913 = vsel %vm2875, %v2739, %v2912
    %v2914 = vsel %vm2877, %v2748, %v2913
    %v2915 = vsel %vm2879, %v2757, %v2914
    %v2916 = vsel %vm2881, %v2766, %v2915
    %v2917 = vsel %vm2883, %v2775, %v2916
    %v2918 = vsel %vm2885, %v2784, %v2917
    %v2919 = vsel %vm2873, %v2802, %v2793
    %v2920 = vsel %vm2875, %v2811, %v2919
    %v2921 = vsel %vm2877, %v2820, %v2920
    %v2922 = vsel %vm2879, %v2829, %v2921
    %v2923 = vsel %vm2881, %v2838, %v2922
    %v2924 = vsel %vm2883, %v2847, %v2923
    %v2925 = vsel %vm2885, %v2856, %v2924
    %2926 = vrot.lane.b32.xlu0 %v2918, 64
    %v2927 = vpop.permute.xlu0 %2926
    %2928 = vrot.lane.b32.xlu0 %v2925, 64
    %v2929 = vpop.permute.xlu0 %2928
    %v2932 = vld [vmem:[%s7] sm:$0x1]
    %v2934 = vperm.slane %v2932, 0
    %v2936 = vmul.f32 %v387, %v2934
    %v2937 = vmul.f32 %v388, %v2934
    %v2938 = vmul.f32 %v389, %v2934
    %v2939 = vmul.f32 %v390, %v2934
    %v2940 = vadd.f32 %v2886, %v2936
    %v2941 = vadd.f32 %v2893, %v2937
    %v2942 = vadd.f32 %v2927, %v2938
    %v2943 = vadd.f32 %v2929, %v2939
    %v2944 = vsub.f32 0.0, %v201
    %v2945 = vsub.f32 0.0, %v203
    %v2946 = vsub.f32 0.0, %v206
    %v2947 = vsub.f32 0.0, %v208
    %v2948 = vmul.f32 %v2944, 1.442695
    %v2949 = vpow.pop %v2948
    %v2950 = vmul.f32 %v2945, 1.442695
    %v2951 = vpow.pop %v2950
    %v2952 = vmul.f32 %v2946, 1.442695
    %v2953 = vpow.pop %v2952
    %v2954 = vmul.f32 %v2947, 1.442695
    %v2955 = vpow.pop %v2954
    %v2956 = vadd.f32 %v2949, 1.0
    %v2957 = vadd.f32 %v2951, 1.0
    %v2958 = vadd.f32 %v2953, 1.0
    %v2959 = vadd.f32 %v2955, 1.0
    %v2960 = vrcp.pop %v2956
    %v2961 = vmul.f32 %v2956, %v2960
    %v2962 = vsub.f32 1.0, %v2961
    %v2963 = vmul.f32 %v2960, %v2962
    %v2964 = vadd.f32 %v2960, %v2963
    %vm2965 = vweird.f32 %v2956
    %vm2966 = vweird.f32 %v2960
    %vm2967 = vmor %vm2965, %vm2966
    %v2968 = vsel %vm2967, %v2960, %v2964
    %v2969 = vand.u32 2147483647, %v2956
    %vm2970 = vcmp.eq.f32.partialorder %v2969, 8.507059e+37
    %v2971 = vand.u32 %v2956, 2147483648
    %v2972 = vor.u32 1.1754944e-38, %v2971
    %v2973 = vsel %vm2970, %v2972, %v2968
    %v2974 = vmul.f32 1.0, %v2973
    %v2975 = vrcp.pop %v2957
    %v2976 = vmul.f32 %v2957, %v2975
    %v2977 = vsub.f32 1.0, %v2976
    %v2978 = vmul.f32 %v2975, %v2977
    %v2979 = vadd.f32 %v2975, %v2978
    %vm2980 = vweird.f32 %v2957
    %vm2981 = vweird.f32 %v2975
    %vm2982 = vmor %vm2980, %vm2981
    %v2983 = vsel %vm2982, %v2975, %v2979
    %v2984 = vand.u32 2147483647, %v2957
    %vm2985 = vcmp.eq.f32.partialorder %v2984, 8.507059e+37
    %v2986 = vand.u32 %v2957, 2147483648
    %v2987 = vor.u32 1.1754944e-38, %v2986
    %v2988 = vsel %vm2985, %v2987, %v2983
    %v2989 = vmul.f32 1.0, %v2988
    %v2990 = vrcp.pop %v2958
    %v2991 = vmul.f32 %v2958, %v2990
    %v2992 = vsub.f32 1.0, %v2991
    %v2993 = vmul.f32 %v2990, %v2992
    %v2994 = vadd.f32 %v2990, %v2993
    %vm2995 = vweird.f32 %v2958
    %vm2996 = vweird.f32 %v2990
    %vm2997 = vmor %vm2995, %vm2996
    %v2998 = vsel %vm2997, %v2990, %v2994
    %v2999 = vand.u32 2147483647, %v2958
    %vm3000 = vcmp.eq.f32.partialorder %v2999, 8.507059e+37
    %v3001 = vand.u32 %v2958, 2147483648
    %v3002 = vor.u32 1.1754944e-38, %v3001
    %v3003 = vsel %vm3000, %v3002, %v2998
    %v3004 = vmul.f32 1.0, %v3003
    %v3005 = vrcp.pop %v2959
    %v3006 = vmul.f32 %v2959, %v3005
    %v3007 = vsub.f32 1.0, %v3006
    %v3008 = vmul.f32 %v3005, %v3007
    %v3009 = vadd.f32 %v3005, %v3008
    %vm3010 = vweird.f32 %v2959
    %vm3011 = vweird.f32 %v3005
    %vm3012 = vmor %vm3010, %vm3011
    %v3013 = vsel %vm3012, %v3005, %v3009
    %v3014 = vand.u32 2147483647, %v2959
    %vm3015 = vcmp.eq.f32.partialorder %v3014, 8.507059e+37
    %v3016 = vand.u32 %v2959, 2147483648
    %v3017 = vor.u32 1.1754944e-38, %v3016
    %v3018 = vsel %vm3015, %v3017, %v3013
    %v3019 = vmul.f32 1.0, %v3018
    %v3020 = vmul.f32 %v201, %v2974
    %v3021 = vmul.f32 %v203, %v2989
    %v3022 = vmul.f32 %v206, %v3004
    %v3023 = vmul.f32 %v208, %v3019
    %3028 = vrot.lane.b32.xlu0 %v3020, 64
    %v3029 = vpop.permute.xlu0 %3028
    %3030 = vrot.lane.b32.xlu0 %v3021, 64
    %v3031 = vpop.permute.xlu0 %3030
    %3032 = vrot.lane.b32.xlu0 %v3022, 64
    %v3033 = vpop.permute.xlu0 %3032
    %3034 = vrot.lane.b32.xlu0 %v3023, 64
    %v3035 = vpop.permute.xlu0 %3034
    %v3040 = vmul.f32 %v2940, %v3029
    %v3041 = vmul.f32 %v2941, %v3031
    %v3042 = vmul.f32 %v2942, %v3033
    %v3043 = vmul.f32 %v2943, %v3035
    %v3044 = vpack.c.bf16 %v3041, %v3040
    %v3045 = vpack.c.bf16 %v3043, %v3042
    %v3046 = vld [vmem:[%s8] sm:$0xf]
    %v3047 = vld [vmem:[%s8 + $0x4] sm:$0xf]
    %v3048 = vld [vmem:[%s8 + $0x8] sm:$0xf]
    %v3049 = vld [vmem:[%s8 + $0xc] sm:$0xf]
    %v3050 = vld [vmem:[%s8 + $0x10] sm:$0xf]
    %v3051 = vld [vmem:[%s8 + $0x14] sm:$0xf]
    %v3052 = vld [vmem:[%s8 + $0x18] sm:$0xf]
    %v3053 = vld [vmem:[%s8 + $0x1c] sm:$0xf]
    %v3062 = vunpack.c.l.b16 %v3046
    %v3063 = vunpack.c.l.b16 %v3047
    %v3064 = vunpack.c.l.b16 %v3048
    %v3065 = vunpack.c.l.b16 %v3049
    %v3066 = vunpack.c.l.b16 %v3050
    %v3067 = vunpack.c.l.b16 %v3051
    %v3068 = vunpack.c.l.b16 %v3052
    %v3069 = vunpack.c.l.b16 %v3053
    %v3070 = vpack.c.b16 %v3063, %v3062
    %v3071 = vpack.c.b16 %v3065, %v3064
    %v3072 = vpack.c.b16 %v3067, %v3066
    %v3073 = vpack.c.b16 %v3069, %v3068
    %v3079 = vsel %vm425, %v3044, 0
    %v3082 = vsel %vm425, %v3045, 0
    %3084 = vmatpush.bf16.msra.mxu0 0
    %3085 = vmatpush.bf16.msra.mxu0 0
    %3086 = vmatpush.bf16.msra.mxu0 0
    %3087 = vmatpush.bf16.msra.mxu0 0
    %3088 = vmatpush.bf16.msra.mxu0 %v3073
    %3089 = vmatpush.bf16.msra.mxu0 %v3072
    %3090 = vmatpush.bf16.msra.mxu0 %v3071
    %3091 = vmatpush.bf16.msra.mxu0 %v3070
    %3092 = vmatmul.bf16.gmra.mxu0 %v3079
    %v3093 = vpop.f32.mrf.mxu0
    %v3094 = vadd.f32 0.0, %v3093
    %v3095 = vpop.f32.mrf.mxu0
    %v3096 = vadd.f32 0.0, %v3095
    %3097 = vmatmul.bf16.gmra.mxu0 %v3082
    %v3098 = vpop.f32.mrf.mxu0
    %v3099 = vadd.f32 0.0, %v3098
    %v3100 = vpop.f32.mrf.mxu0
    %v3101 = vadd.f32 0.0, %v3100
    %3102 = vdwg.mxu0
    %v3103 = vadd.f32 %v79, %v3094
    %v3104 = vadd.f32 %v80, %v3096
    %v3105 = vadd.f32 %v81, %v3099
    %v3106 = vadd.f32 %v82, %v3101
    %3107 = vst.msk [vmem:[#allocation11] sm:$0xff] %vm87, %v3103
    %3108 = vst.msk [vmem:[#allocation11 + $0x8] sm:$0xff] %vm87, %v3104
    %3109 = vst.msk [vmem:[#allocation11 + $0x10] sm:$0xff] %vm87, %v3105
    %3110 = vst.msk [vmem:[#allocation11 + $0x18] sm:$0xff] %vm87, %v3106
    // Predicated region
    $region50: #{_run.1} parent=1 // pred_check
      _
    $region51: #{_run.1} parent=1 // pred_check_branch
      %3112 = sbr.rel (0) target = $region53
    $region52: #{_run.1} parent=1 // pred_region
      %3114 = vsyncadd [#allocation7], 0
      %s3115 = sshll.u32 [#allocation11], 4
      %s3116 = int_to_ptr.vmem [resolvable:$true] %s3115
      %s3117 = sshll.u32 %s9, 4
      %s3118 = int_to_ptr.hbm [resolvable:$true] %s3117
      %3123 = dma.vmem_to_hbm [thread:$0]  %s3116, 512, %s3118, [#allocation7], 128, 128, 8
    $region53: #{_run.1} parent=1 // pred_fallthru
      _
    // Predicated region
    $region54: #{_run.1} parent=1 // pred_check
      _
    $region55: #{_run.1} parent=1 // pred_check_branch
      %3125 = sbr.rel (0) target = $region57
    $region56: #{_run.1} parent=1 // pred_region
      %3127 = dma.done [#allocation7], 512
    $region57: #{_run.1} parent=1 // pred_fallthru
      _
    %3128 = vsyncpa [#allocation6], 1
    %3129 = vsyncpa [#allocation9], 1
    %3130 = vsyncpa [#allocation7], 1

</llo_original>
